<compile_context>
chip_gen: v5e
topology: v5e:2x2
jax: 0.10.0
libtpu: 0.0.40
codegen_flags: <defaults>
</compile_context>

<pallas_src>
import functools

import jax
import jax.numpy as jnp
from jax.experimental import pallas as pl
from jax.experimental.pallas import tpu as pltpu

Y_DIM = 3
N_HIDDEN = 512
N_LAYERS = 5          # first Linear(y_dim,H) + (N_LAYERS-1) x Linear(H,H)
OUT_PAD = 128         # lane-dense output slab width (cols >= Y_DIM are zero)
BATCH_TILE = 512      # max row tile for large-B calls (multiple of 128)


def _round_up(x, m):
    return ((x + m - 1) // m) * m


def _cdiv(a, b):
    return (a + b - 1) // b


def _ode_mlp_skip_kernel(n_hidden_layers,
                         y_ref, w_in_ref, b_in_ref, wh_ref, bh_ref,
                         wo_ref, bo_ref, out_ref):
    """One (tb, ...) batch tile of the forward pass.

    Shapes:
      y_ref   : (tb, Y_DIM)      f32   input tile (K padded to MXU depth by Mosaic)
      w_in_ref: (Y_DIM, 2H)      bf16  fused [first-layer | skip-layer] weights
      b_in_ref: (1, 2H)          f32   fused biases
      wh_ref  : (L-1, H, H)      bf16  stacked hidden-layer weights
      bh_ref  : (L-1, 1, H)      f32
      wo_ref  : (H, OUT_PAD)     bf16  output weights (cols >= Y_DIM are zero)
      bo_ref  : (1, OUT_PAD)     f32
      out_ref : (tb, OUT_PAD)    f32
    """
    y = y_ref[...].astype(jnp.bfloat16)

    # Fused first + skip projection: one (tb,3)x(3,2H) dot, then ReLU + split.
    hs = jnp.dot(y, w_in_ref[...], preferred_element_type=jnp.float32) + b_in_ref[...]
    hs = jnp.maximum(hs, 0.0)
    h = hs[:, :N_HIDDEN]       # net first layer (post-ReLU)
    s = hs[:, N_HIDDEN:]       # skip branch     (post-ReLU)

    # net: (n_layers - 1) x [Linear(H, H) + ReLU]   (static unroll, resident weights)
    for l in range(n_hidden_layers):
        h = jnp.dot(h.astype(jnp.bfloat16), wh_ref[l],
                    preferred_element_type=jnp.float32) + bh_ref[l]
        h = jnp.maximum(h, 0.0)

    res = (h + s).astype(jnp.bfloat16)

    # output: Linear(H, y_dim) computed into a lane-dense 128-wide slab.
    out_ref[...] = (jnp.dot(res, wo_ref[...], preferred_element_type=jnp.float32)
                    + bo_ref[...])


def prepare_kernel_params(params):
    """One-time packing of the f32 module parameters into kernel-ready form.

    Hoisted out of the per-call forward so repeated ODE-solver steps do not
    re-pay the fusion/pad/cast HBM traffic. Weights -> bf16, biases f32.
    """
    w0, b0, wh, bh, ws, bs, wo, bo = params
    H = N_HIDDEN

    # Fuse first net layer + skip layer into one (Y_DIM, 2H) weight.
    w_in = jnp.concatenate([w0, ws], axis=1).astype(jnp.bfloat16)        # (3, 2H)
    b_in = jnp.concatenate([b0, bs]).reshape(1, 2 * H).astype(jnp.float32)

    wh_b = wh.astype(jnp.bfloat16)                                       # (L-1, H, H)
    bh_b = bh.reshape(N_LAYERS - 1, 1, H).astype(jnp.float32)            # (L-1, 1, H)

    wo_p = (jnp.zeros((H, OUT_PAD), jnp.float32)
            .at[:, :Y_DIM].set(wo).astype(jnp.bfloat16))
    bo_p = jnp.zeros((1, OUT_PAD), jnp.float32).at[:, :Y_DIM].set(bo.reshape(-1))

    return (w_in, b_in, wh_b, bh_b, wo_p, bo_p)


def _select_batch_tile(B, batch_tile):
    """Row-tile heuristic (generation aware).

    Small B: one grid step, tile rounded to the f32 sublane (8). Splitting a
    weight-streaming-bound call across v7x's two TensorCores would only
    duplicate the ~2.2 MiB HBM weight traffic.
    Large B: MXU-friendly 128-multiple tiles, capped at batch_tile, chosen so
    there are >=2 grid steps for dual-TC sharding on v7x.
    """
    B = max(int(B), 1)
    if B <= 256:
        return _round_up(B, 8)
    bt = _round_up(int(batch_tile), 128)
    return max(128, min(bt, _round_up(_cdiv(B, 2), 128)))


def ode_mlp_skip_forward(t, y, kernel_params, *, batch_tile=BATCH_TILE):
    """JAX wrapper. `t` is unused (kept for parity with the PyTorch signature)."""
    del t
    B = y.shape[0]
    assert y.shape[1] == Y_DIM
    w_in, b_in, wh, bh, wo_p, bo_p = kernel_params
    H = N_HIDDEN

    tb = _select_batch_tile(B, batch_tile)
    grid = (_cdiv(B, tb),)

    kernel = functools.partial(_ode_mlp_skip_kernel, N_LAYERS - 1)

    # Advisory cost estimate so XLA can schedule neighboring solver ops.
    weight_bytes = sum(int(a.size) * a.dtype.itemsize
                       for a in (w_in, b_in, wh, bh, wo_p, bo_p))
    flops = 2 * B * (Y_DIM * 2 * H + (N_LAYERS - 1) * H * H + H * OUT_PAD)
    bytes_accessed = weight_bytes + B * (Y_DIM + OUT_PAD) * 4

    # Constant-index weight blocks: single-buffer (loaded once, VMEM-resident).
    resident = functools.partial(pl.BlockSpec, pipeline_mode=pl.Buffered(1))

    out_p = pl.pallas_call(
        kernel,
        out_shape=jax.ShapeDtypeStruct((B, OUT_PAD), jnp.float32),
        grid=grid,
        in_specs=[
            pl.BlockSpec((tb, Y_DIM), lambda i: (i, 0)),             # y row tile
            resident((Y_DIM, 2 * H), lambda i: (0, 0)),              # fused in-proj W
            resident((1, 2 * H), lambda i: (0, 0)),                  # fused in-proj b
            resident((N_LAYERS - 1, H, H), lambda i: (0, 0, 0)),     # hidden W stack
            resident((N_LAYERS - 1, 1, H), lambda i: (0, 0, 0)),     # hidden b stack
            resident((H, OUT_PAD), lambda i: (0, 0)),                # out-proj W
            resident((1, OUT_PAD), lambda i: (0, 0)),                # out-proj b
        ],
        out_specs=pl.BlockSpec((tb, OUT_PAD), lambda i: (i, 0)),
        compiler_params=pltpu.CompilerParams(
            dimension_semantics=("parallel",),
            vmem_limit_bytes=32 * 1024 * 1024),
        cost_estimate=pl.CostEstimate(flops=flops, transcendentals=0,
                                      bytes_accessed=bytes_accessed),
    )(y.astype(jnp.float32), w_in, b_in, wh, bh, wo_p, bo_p)

    return out_p[:, :Y_DIM]


def init_params(key):
    """Deterministic init mimicking torch.nn.Linear (uniform +/- 1/sqrt(fan_in)).

    Weights are stored as (in_features, out_features) so forward computes x @ W.
    """
    keys = jax.random.split(key, 16)
    ki = iter(keys)

    def linear(kw, kb, fan_in, fan_out):
        bound = 1.0 / jnp.sqrt(fan_in)
        w = jax.random.uniform(kw, (fan_in, fan_out), jnp.float32, -bound, bound)
        b = jax.random.uniform(kb, (fan_out,), jnp.float32, -bound, bound)
        return w, b

    w0, b0 = linear(next(ki), next(ki), Y_DIM, N_HIDDEN)
    wh_list, bh_list = [], []
    for _ in range(N_LAYERS - 1):
        w, b = linear(next(ki), next(ki), N_HIDDEN, N_HIDDEN)
        wh_list.append(w)
        bh_list.append(b)
    wh = jnp.stack(wh_list)          # (L-1, H, H)
    bh = jnp.stack(bh_list)          # (L-1, H)
    ws, bs = linear(next(ki), next(ki), Y_DIM, N_HIDDEN)
    wo, bo = linear(next(ki), next(ki), N_HIDDEN, Y_DIM)
    bo = bo.reshape(1, Y_DIM)
    return (w0, b0, wh, bh, ws, bs, wo, bo)


def reference_forward_f32(t, y, params):
    """Pure-JAX f32 reference (mirrors the PyTorch module exactly)."""
    del t
    w0, b0, wh, bh, ws, bs, wo, bo = params
    h = jnp.maximum(y @ w0 + b0, 0.0)
    for l in range(N_LAYERS - 1):
        h = jnp.maximum(h @ wh[l] + bh[l], 0.0)
    s = jnp.maximum(y @ ws + bs, 0.0)
    return (h + s) @ wo + bo


def reference_forward_bf16(t, y, params):
    """Pure-JAX reference matching the kernel's mixed precision (bf16 MXU, f32 acc)."""
    del t
    w0, b0, wh, bh, ws, bs, wo, bo = params

    def bf(x):
        return x.astype(jnp.bfloat16)

    h = jnp.maximum(
        jnp.dot(bf(y), bf(w0), preferred_element_type=jnp.float32) + b0, 0.0)
    for l in range(N_LAYERS - 1):
        h = jnp.maximum(
            jnp.dot(bf(h), bf(wh[l]), preferred_element_type=jnp.float32) + bh[l], 0.0)
    s = jnp.maximum(
        jnp.dot(bf(y), bf(ws), preferred_element_type=jnp.float32) + bs, 0.0)
    return jnp.dot(bf(h + s), bf(wo), preferred_element_type=jnp.float32) + bo


if __name__ == "__main__":
    key = jax.random.PRNGKey(0)
    k_params, k_y1, k_y2 = jax.random.split(key, 3)

    params = init_params(k_params)
    kernel_params = prepare_kernel_params(params)   # one-time packing (hoisted)
    t = jnp.float32(0.0)   # unused by forward, kept for signature parity

    # Small-batch path (single grid step, grid=1).
    B1 = 8
    y1 = jax.random.normal(k_y1, (B1, Y_DIM), jnp.float32)
    out1 = jax.block_until_ready(ode_mlp_skip_forward(t, y1, kernel_params))
    assert out1.shape == (B1, Y_DIM)
    assert jnp.allclose(out1, reference_forward_bf16(t, y1, params),
                        atol=1e-3, rtol=1e-3), "small-B mismatch vs bf16 ref"
    assert jnp.allclose(out1, reference_forward_f32(t, y1, params),
                        atol=5e-2, rtol=5e-2), "small-B mismatch vs f32 ref"

    # Multi-tile path (grid=2, ragged last tile) to exercise the pipelined case.
    B2 = 260
    y2 = jax.random.normal(k_y2, (B2, Y_DIM), jnp.float32)
    out2 = jax.block_until_ready(ode_mlp_skip_forward(t, y2, kernel_params))
    assert out2.shape == (B2, Y_DIM)
    assert jnp.allclose(out2, reference_forward_bf16(t, y2, params),
                        atol=1e-3, rtol=1e-3), "multi-tile mismatch vs bf16 ref"
    assert jnp.allclose(out2, reference_forward_f32(t, y2, params),
                        atol=5e-2, rtol=5e-2), "multi-tile mismatch vs f32 ref"

    print("KERNEL_OK")
</pallas_src>

<mosaic_0001>
module attributes {stable_mosaic.version = 11 : i64} {
  func.func @_ode_mlp_skip_kernel(%arg0: i32, %arg1: memref<8x3xf32, #tpu.memory_space<vmem>>, %arg2: memref<3x1024xbf16, #tpu.memory_space<vmem>>, %arg3: memref<1x1024xf32, #tpu.memory_space<vmem>>, %arg4: memref<4x512x512xbf16, #tpu.memory_space<vmem>>, %arg5: memref<4x1x512xf32, #tpu.memory_space<vmem>>, %arg6: memref<512x128xbf16, #tpu.memory_space<vmem>>, %arg7: memref<1x128xf32, #tpu.memory_space<vmem>>, %arg8: memref<8x128xf32, #tpu.memory_space<vmem>>) attributes {dimension_semantics = [#tpu.dimension_semantics<parallel>], iteration_bounds = array<i64: 1>, scalar_prefetch = 0 : i64, scratch_operands = 0 : i64, tpu.core_type = #tpu.core_type<tc>, window_params = [{transform_indices = @transform_0, window_bounds = array<i64: 8, 3>}, {pipeline_mode = #tpu.pipeline_mode<synchronous>, transform_indices = @transform_1, window_bounds = array<i64: 3, 1024>}, {pipeline_mode = #tpu.pipeline_mode<synchronous>, transform_indices = @transform_2, window_bounds = array<i64: 1, 1024>}, {pipeline_mode = #tpu.pipeline_mode<synchronous>, transform_indices = @transform_3, window_bounds = array<i64: 4, 512, 512>}, {pipeline_mode = #tpu.pipeline_mode<synchronous>, transform_indices = @transform_4, window_bounds = array<i64: 4, 1, 512>}, {pipeline_mode = #tpu.pipeline_mode<synchronous>, transform_indices = @transform_5, window_bounds = array<i64: 512, 128>}, {pipeline_mode = #tpu.pipeline_mode<synchronous>, transform_indices = @transform_6, window_bounds = array<i64: 1, 128>}, {transform_indices = @transform_7, window_bounds = array<i64: 8, 128>}]} {
    %c0 = arith.constant 0 : index
    %c0_0 = arith.constant 0 : index
    %0 = vector.load %arg1[%c0, %c0_0] : memref<8x3xf32, #tpu.memory_space<vmem>>, vector<8x3xf32>
    %1 = arith.truncf %0 : vector<8x3xf32> to vector<8x3xbf16>
    %c0_1 = arith.constant 0 : index
    %c0_2 = arith.constant 0 : index
    %2 = vector.load %arg2[%c0_1, %c0_2] : memref<3x1024xbf16, #tpu.memory_space<vmem>>, vector<3x1024xbf16>
    %cst = arith.constant dense<0.000000e+00> : vector<8x1024xf32>
    %3 = tpu.matmul %1, %2, %cst {dimension_numbers = #tpu.dot_dimension_numbers<[1], [0], [0], [1], [0, 0, 1, 1], [], []>} : vector<8x3xbf16>, vector<3x1024xbf16>, vector<8x1024xf32> -> vector<8x1024xf32>
    %c0_3 = arith.constant 0 : index
    %c0_4 = arith.constant 0 : index
    %4 = vector.load %arg3[%c0_3, %c0_4] : memref<1x1024xf32, #tpu.memory_space<vmem>>, vector<1x1024xf32>
    %5 = vector.broadcast %4 : vector<1x1024xf32> to vector<8x1024xf32>
    %6 = arith.addf %3, %5 : vector<8x1024xf32>
    %cst_5 = arith.constant 0.000000e+00 : f32
    %7 = vector.broadcast %cst_5 : f32 to vector<8x1024xf32>
    %8 = arith.maximumf %6, %7 : vector<8x1024xf32>
    %9 = vector.extract_strided_slice %8 {offsets = [0, 0], sizes = [8, 512], strides = [1, 1]} : vector<8x1024xf32> to vector<8x512xf32>
    %10 = vector.extract_strided_slice %8 {offsets = [0, 512], sizes = [8, 512], strides = [1, 1]} : vector<8x1024xf32> to vector<8x512xf32>
    %11 = arith.truncf %9 : vector<8x512xf32> to vector<8x512xbf16>
    %c0_6 = arith.constant 0 : index
    %c0_7 = arith.constant 0 : index
    %c0_8 = arith.constant 0 : index
    %12 = vector.load %arg4[%c0_6, %c0_7, %c0_8] : memref<4x512x512xbf16, #tpu.memory_space<vmem>>, vector<1x512x512xbf16>
    %13 = vector.shape_cast %12 : vector<1x512x512xbf16> to vector<512x512xbf16>
    %cst_9 = arith.constant dense<0.000000e+00> : vector<8x512xf32>
    %14 = tpu.matmul %11, %13, %cst_9 {dimension_numbers = #tpu.dot_dimension_numbers<[1], [0], [0], [1], [0, 0, 1, 1], [], []>} : vector<8x512xbf16>, vector<512x512xbf16>, vector<8x512xf32> -> vector<8x512xf32>
    %c0_10 = arith.constant 0 : index
    %c0_11 = arith.constant 0 : index
    %c0_12 = arith.constant 0 : index
    %15 = vector.load %arg5[%c0_10, %c0_11, %c0_12] : memref<4x1x512xf32, #tpu.memory_space<vmem>>, vector<1x1x512xf32>
    %16 = vector.shape_cast %15 : vector<1x1x512xf32> to vector<1x512xf32>
    %17 = vector.broadcast %16 : vector<1x512xf32> to vector<8x512xf32>
    %18 = arith.addf %14, %17 : vector<8x512xf32>
    %cst_13 = arith.constant 0.000000e+00 : f32
    %19 = vector.broadcast %cst_13 : f32 to vector<8x512xf32>
    %20 = arith.maximumf %18, %19 : vector<8x512xf32>
    %21 = arith.truncf %20 : vector<8x512xf32> to vector<8x512xbf16>
    %c1 = arith.constant 1 : index
    %c0_14 = arith.constant 0 : index
    %c0_15 = arith.constant 0 : index
    %22 = vector.load %arg4[%c1, %c0_14, %c0_15] : memref<4x512x512xbf16, #tpu.memory_space<vmem>>, vector<1x512x512xbf16>
    %23 = vector.shape_cast %22 : vector<1x512x512xbf16> to vector<512x512xbf16>
    %cst_16 = arith.constant dense<0.000000e+00> : vector<8x512xf32>
    %24 = tpu.matmul %21, %23, %cst_16 {dimension_numbers = #tpu.dot_dimension_numbers<[1], [0], [0], [1], [0, 0, 1, 1], [], []>} : vector<8x512xbf16>, vector<512x512xbf16>, vector<8x512xf32> -> vector<8x512xf32>
    %c1_17 = arith.constant 1 : index
    %c0_18 = arith.constant 0 : index
    %c0_19 = arith.constant 0 : index
    %25 = vector.load %arg5[%c1_17, %c0_18, %c0_19] : memref<4x1x512xf32, #tpu.memory_space<vmem>>, vector<1x1x512xf32>
    %26 = vector.shape_cast %25 : vector<1x1x512xf32> to vector<1x512xf32>
    %27 = vector.broadcast %26 : vector<1x512xf32> to vector<8x512xf32>
    %28 = arith.addf %24, %27 : vector<8x512xf32>
    %cst_20 = arith.constant 0.000000e+00 : f32
    %29 = vector.broadcast %cst_20 : f32 to vector<8x512xf32>
    %30 = arith.maximumf %28, %29 : vector<8x512xf32>
    %31 = arith.truncf %30 : vector<8x512xf32> to vector<8x512xbf16>
    %c2 = arith.constant 2 : index
    %c0_21 = arith.constant 0 : index
    %c0_22 = arith.constant 0 : index
    %32 = vector.load %arg4[%c2, %c0_21, %c0_22] : memref<4x512x512xbf16, #tpu.memory_space<vmem>>, vector<1x512x512xbf16>
    %33 = vector.shape_cast %32 : vector<1x512x512xbf16> to vector<512x512xbf16>
    %cst_23 = arith.constant dense<0.000000e+00> : vector<8x512xf32>
    %34 = tpu.matmul %31, %33, %cst_23 {dimension_numbers = #tpu.dot_dimension_numbers<[1], [0], [0], [1], [0, 0, 1, 1], [], []>} : vector<8x512xbf16>, vector<512x512xbf16>, vector<8x512xf32> -> vector<8x512xf32>
    %c2_24 = arith.constant 2 : index
    %c0_25 = arith.constant 0 : index
    %c0_26 = arith.constant 0 : index
    %35 = vector.load %arg5[%c2_24, %c0_25, %c0_26] : memref<4x1x512xf32, #tpu.memory_space<vmem>>, vector<1x1x512xf32>
    %36 = vector.shape_cast %35 : vector<1x1x512xf32> to vector<1x512xf32>
    %37 = vector.broadcast %36 : vector<1x512xf32> to vector<8x512xf32>
    %38 = arith.addf %34, %37 : vector<8x512xf32>
    %cst_27 = arith.constant 0.000000e+00 : f32
    %39 = vector.broadcast %cst_27 : f32 to vector<8x512xf32>
    %40 = arith.maximumf %38, %39 : vector<8x512xf32>
    %41 = arith.truncf %40 : vector<8x512xf32> to vector<8x512xbf16>
    %c3 = arith.constant 3 : index
    %c0_28 = arith.constant 0 : index
    %c0_29 = arith.constant 0 : index
    %42 = vector.load %arg4[%c3, %c0_28, %c0_29] : memref<4x512x512xbf16, #tpu.memory_space<vmem>>, vector<1x512x512xbf16>
    %43 = vector.shape_cast %42 : vector<1x512x512xbf16> to vector<512x512xbf16>
    %cst_30 = arith.constant dense<0.000000e+00> : vector<8x512xf32>
    %44 = tpu.matmul %41, %43, %cst_30 {dimension_numbers = #tpu.dot_dimension_numbers<[1], [0], [0], [1], [0, 0, 1, 1], [], []>} : vector<8x512xbf16>, vector<512x512xbf16>, vector<8x512xf32> -> vector<8x512xf32>
    %c3_31 = arith.constant 3 : index
    %c0_32 = arith.constant 0 : index
    %c0_33 = arith.constant 0 : index
    %45 = vector.load %arg5[%c3_31, %c0_32, %c0_33] : memref<4x1x512xf32, #tpu.memory_space<vmem>>, vector<1x1x512xf32>
    %46 = vector.shape_cast %45 : vector<1x1x512xf32> to vector<1x512xf32>
    %47 = vector.broadcast %46 : vector<1x512xf32> to vector<8x512xf32>
    %48 = arith.addf %44, %47 : vector<8x512xf32>
    %cst_34 = arith.constant 0.000000e+00 : f32
    %49 = vector.broadcast %cst_34 : f32 to vector<8x512xf32>
    %50 = arith.maximumf %48, %49 : vector<8x512xf32>
    %51 = arith.addf %50, %10 : vector<8x512xf32>
    %52 = arith.truncf %51 : vector<8x512xf32> to vector<8x512xbf16>
    %c0_35 = arith.constant 0 : index
    %c0_36 = arith.constant 0 : index
    %53 = vector.load %arg6[%c0_35, %c0_36] : memref<512x128xbf16, #tpu.memory_space<vmem>>, vector<512x128xbf16>
    %cst_37 = arith.constant dense<0.000000e+00> : vector<8x128xf32>
    %54 = tpu.matmul %52, %53, %cst_37 {dimension_numbers = #tpu.dot_dimension_numbers<[1], [0], [0], [1], [0, 0, 1, 1], [], []>} : vector<8x512xbf16>, vector<512x128xbf16>, vector<8x128xf32> -> vector<8x128xf32>
    %c0_38 = arith.constant 0 : index
    %c0_39 = arith.constant 0 : index
    %55 = vector.load %arg7[%c0_38, %c0_39] : memref<1x128xf32, #tpu.memory_space<vmem>>, vector<1x128xf32>
    %56 = vector.broadcast %55 : vector<1x128xf32> to vector<8x128xf32>
    %57 = arith.addf %54, %56 : vector<8x128xf32>
    %c0_40 = arith.constant 0 : index
    %c0_41 = arith.constant 0 : index
    %58 = vector.load %arg8[%c0_40, %c0_41] : memref<8x128xf32, #tpu.memory_space<vmem>>, vector<8x128xf32>
    tpu.vector_store %arg8[%c0_40, %c0_41], %57 {strides = array<i32>} : memref<8x128xf32, #tpu.memory_space<vmem>>, vector<8x128xf32>,
    return
  }
  func.func @transform_0(%arg0: i32) -> (i32, i32) {
    %c0_i32 = arith.constant 0 : i32
    %c0_i32_0 = arith.constant 0 : i32
    return %arg0, %c0_i32 : i32, i32
  }
  func.func @transform_1(%arg0: i32) -> (i32, i32) {
    %c0_i32 = arith.constant 0 : i32
    %c0_i32_0 = arith.constant 0 : i32
    %c0_i32_1 = arith.constant 0 : i32
    return %c0_i32, %c0_i32_0 : i32, i32
  }
  func.func @transform_2(%arg0: i32) -> (i32, i32) {
    %c0_i32 = arith.constant 0 : i32
    %c0_i32_0 = arith.constant 0 : i32
    %c0_i32_1 = arith.constant 0 : i32
    return %c0_i32, %c0_i32_0 : i32, i32
  }
  func.func @transform_3(%arg0: i32) -> (i32, i32, i32) {
    %c0_i32 = arith.constant 0 : i32
    %c0_i32_0 = arith.constant 0 : i32
    %c0_i32_1 = arith.constant 0 : i32
    %c0_i32_2 = arith.constant 0 : i32
    return %c0_i32, %c0_i32_0, %c0_i32_1 : i32, i32, i32
  }
  func.func @transform_4(%arg0: i32) -> (i32, i32, i32) {
    %c0_i32 = arith.constant 0 : i32
    %c0_i32_0 = arith.constant 0 : i32
    %c0_i32_1 = arith.constant 0 : i32
    %c0_i32_2 = arith.constant 0 : i32
    return %c0_i32, %c0_i32_0, %c0_i32_1 : i32, i32, i32
  }
  func.func @transform_5(%arg0: i32) -> (i32, i32) {
    %c0_i32 = arith.constant 0 : i32
    %c0_i32_0 = arith.constant 0 : i32
    %c0_i32_1 = arith.constant 0 : i32
    return %c0_i32, %c0_i32_0 : i32, i32
  }
  func.func @transform_6(%arg0: i32) -> (i32, i32) {
    %c0_i32 = arith.constant 0 : i32
    %c0_i32_0 = arith.constant 0 : i32
    %c0_i32_1 = arith.constant 0 : i32
    return %c0_i32, %c0_i32_0 : i32, i32
  }
  func.func @transform_7(%arg0: i32) -> (i32, i32) {
    %c0_i32 = arith.constant 0 : i32
    %c0_i32_0 = arith.constant 0 : i32
    return %arg0, %c0_i32 : i32, i32
  }
}

</mosaic_0001>

<llo_original>
// kernel: tpu_custom_call.1
$region0: #{tpu_custom_call.1}
  #allocation0 [shape = 'u32[]', space=smem, size = 0x4, offset = 0x4, fixed_abs, tag = 'smem constant byte address 0x4 - core index']
  #allocation1 [shape = 'u32[72,128]{1,0:T(1,128)}', space=vmem, size = 0x9000, scoped, tag = 'internal scratch']
  %s0 = inlined_call_operand.vmem [shape: f32[8,3], index: 0, kind: input, shape index: {}]
  %s1 = inlined_call_operand.hbm [shape: bf16[3,1024], index: 1, kind: input, shape index: {}]
  %s2 = inlined_call_operand.hbm [shape: f32[1,1024], index: 2, kind: input, shape index: {}]
  %s3 = inlined_call_operand.hbm [shape: bf16[4,512,512], index: 3, kind: input, shape index: {}]
  %s4 = inlined_call_operand.hbm [shape: f32[4,1,512], index: 4, kind: input, shape index: {}]
  %s5 = inlined_call_operand.hbm [shape: bf16[512,128], index: 5, kind: input, shape index: {}]
  %s6 = inlined_call_operand.hbm [shape: f32[1,128], index: 6, kind: input, shape index: {}]
  %s7 = inlined_call_operand.hbm [shape: f32[8,128], index: 7, kind: output, shape index: {}]
  %s8 = sld [smem:[#allocation0]]
  $region62: #{tpu_custom_call.1} parent=0
    _
  %s10 = ssub.s32 1, %s8
  %s11 = scalar_select 0, %s10, %s8
  $region1: #{tpu_custom_call.1} parent=0
    #allocation2 [shape = 'u8[8192]{0}', space=vmem, size = 0x2000, scoped, tag = 'input window, operand 1, single buffered']
    #allocation3 [shape = 's32[1]{0}', space=sflag, size = 0x4, scoped, tag = 'scoped memory for tpu_custom_call.1']
    #allocation4 [shape = 's32[1]{0}', space=sflag, size = 0x4, scoped, tag = 'scoped memory for tpu_custom_call.1']
    #allocation5 [shape = 'u8[4096]{0}', space=vmem, size = 0x1000, scoped, tag = 'input window, operand 2, single buffered']
    #allocation6 [shape = 's32[1]{0}', space=sflag, size = 0x4, scoped, tag = 'scoped memory for tpu_custom_call.1']
    #allocation7 [shape = 'u8[2097152]{0}', space=vmem, size = 0x200000, scoped, tag = 'input window, operand 3, single buffered']
    #allocation8 [shape = 'u8[8192]{0}', space=vmem, size = 0x2000, scoped, tag = 'input window, operand 4, single buffered']
    #allocation9 [shape = 's32[1]{0}', space=sflag, size = 0x4, scoped, tag = 'scoped memory for tpu_custom_call.1']
    #allocation10 [shape = 'u8[131072]{0}', space=vmem, size = 0x20000, scoped, tag = 'input window, operand 5, single buffered']
    #allocation11 [shape = 'u8[512]{0}', space=vmem, size = 0x400, scoped, tag = 'input window, operand 6, single buffered']
    #allocation12 [shape = 's32[1]{0}', space=sflag, size = 0x4, scoped, tag = 'scoped memory for tpu_custom_call.1']
    #allocation13 [shape = 'u8[4096]{0}', space=vmem, size = 0x1000, scoped, tag = 'output window, operand 0, single buffered']
    %12 = vsyncpa [#allocation3], 0
    %13 = vsyncpa [#allocation6], 0
    %14 = vsyncpa [#allocation9], 0
    %15 = vsyncpa [#allocation12], 0
    %16 = vsyncpa [#allocation4], 0
    // Predicated region
    $region2: #{tpu_custom_call.1} parent=1 // pred_check
      _
    $region3: #{tpu_custom_call.1} parent=1 // pred_check_branch
      %18 = sbr.rel (0) target = $region5
    $region4: #{tpu_custom_call.1} parent=1 // pred_region
      _
    $region5: #{tpu_custom_call.1} parent=1 // pred_fallthru
      _
    // Predicated region
    $region6: #{tpu_custom_call.1} parent=1 // pred_check
      _
    $region7: #{tpu_custom_call.1} parent=1 // pred_check_branch
      %20 = sbr.rel (0) target = $region9
    $region8: #{tpu_custom_call.1} parent=1 // pred_region
      %22 = vsyncadd [#allocation3], 0
      %s24 = sshll.u32 %s1, 4
      %s25 = int_to_ptr.hbm [resolvable:$true] %s24
      %s26 = sshll.u32 [#allocation2], 4
      %s27 = int_to_ptr.vmem [resolvable:$true] %s26
      %29 = dma.hbm_to_vmem [thread:$0]  %s25, 256, %s27, [#allocation3]
    $region9: #{tpu_custom_call.1} parent=1 // pred_fallthru
      _
    // Predicated region
    $region10: #{tpu_custom_call.1} parent=1 // pred_check
      _
    $region11: #{tpu_custom_call.1} parent=1 // pred_check_branch
      %31 = sbr.rel (0) target = $region13
    $region12: #{tpu_custom_call.1} parent=1 // pred_region
      %33 = vsyncadd [#allocation6], 0
      %s35 = sshll.u32 %s2, 4
      %s36 = int_to_ptr.hbm [resolvable:$true] %s35
      %s37 = sshll.u32 [#allocation5], 4
      %s38 = int_to_ptr.vmem [resolvable:$true] %s37
      %40 = dma.hbm_to_vmem [thread:$0]  %s36, 128, %s38, [#allocation6]
    $region13: #{tpu_custom_call.1} parent=1 // pred_fallthru
      _
    // Predicated region
    $region14: #{tpu_custom_call.1} parent=1 // pred_check
      _
    $region15: #{tpu_custom_call.1} parent=1 // pred_check_branch
      %42 = sbr.rel (0) target = $region17
    $region16: #{tpu_custom_call.1} parent=1 // pred_region
      %44 = vsyncadd [#allocation6], 0
      %s45 = sshll.u32 %s3, 4
      %s46 = int_to_ptr.hbm [resolvable:$true] %s45
      %s47 = sshll.u32 [#allocation7], 4
      %s48 = int_to_ptr.vmem [resolvable:$true] %s47
      %53 = dma.hbm_to_vmem [thread:$0]  %s46, 65536, %s48, [#allocation6], 256, 256, 16
    $region17: #{tpu_custom_call.1} parent=1 // pred_fallthru
      _
    // Predicated region
    $region18: #{tpu_custom_call.1} parent=1 // pred_check
      _
    $region19: #{tpu_custom_call.1} parent=1 // pred_check_branch
      %55 = sbr.rel (0) target = $region21
    $region20: #{tpu_custom_call.1} parent=1 // pred_region
      %57 = vsyncadd [#allocation9], 0
      %s58 = sshll.u32 %s4, 4
      %s59 = int_to_ptr.hbm [resolvable:$true] %s58
      %s60 = sshll.u32 [#allocation8], 4
      %s61 = int_to_ptr.vmem [resolvable:$true] %s60
      %66 = dma.hbm_to_vmem [thread:$0]  %s59, 256, %s61, [#allocation9], 64, 64, 4
    $region21: #{tpu_custom_call.1} parent=1 // pred_fallthru
      _
    // Predicated region
    $region22: #{tpu_custom_call.1} parent=1 // pred_check
      _
    $region23: #{tpu_custom_call.1} parent=1 // pred_check_branch
      %68 = sbr.rel (0) target = $region25
    $region24: #{tpu_custom_call.1} parent=1 // pred_region
      %70 = vsyncadd [#allocation9], 0
      %s71 = sshll.u32 %s5, 4
      %s72 = int_to_ptr.hbm [resolvable:$true] %s71
      %s73 = sshll.u32 [#allocation10], 4
      %s74 = int_to_ptr.vmem [resolvable:$true] %s73
      %79 = dma.hbm_to_vmem [thread:$0]  %s72, 4096, %s74, [#allocation9], 64, 64, 4
    $region25: #{tpu_custom_call.1} parent=1 // pred_fallthru
      _
    // Predicated region
    $region26: #{tpu_custom_call.1} parent=1 // pred_check
      _
    $region27: #{tpu_custom_call.1} parent=1 // pred_check_branch
      %81 = sbr.rel (0) target = $region29
    $region28: #{tpu_custom_call.1} parent=1 // pred_region
      %83 = vsyncadd [#allocation12], 0
      %s85 = sshll.u32 %s6, 4
      %s86 = int_to_ptr.hbm [resolvable:$true] %s85
      %s87 = sshll.u32 [#allocation11], 4
      %s88 = int_to_ptr.vmem [resolvable:$true] %s87
      %90 = dma.hbm_to_vmem [thread:$0]  %s86, 16, %s88, [#allocation12]
    $region29: #{tpu_custom_call.1} parent=1 // pred_fallthru
      _
    // Predicated region
    $region30: #{tpu_custom_call.1} parent=1 // pred_check
      _
    $region31: #{tpu_custom_call.1} parent=1 // pred_check_branch
      %92 = sbr.rel (0) target = $region33
    $region32: #{tpu_custom_call.1} parent=1 // pred_region
      %94 = dma.done [#allocation3], 256
    $region33: #{tpu_custom_call.1} parent=1 // pred_fallthru
      _
    // Predicated region
    $region34: #{tpu_custom_call.1} parent=1 // pred_check
      _
    $region35: #{tpu_custom_call.1} parent=1 // pred_check_branch
      %96 = sbr.rel (0) target = $region37
    $region36: #{tpu_custom_call.1} parent=1 // pred_region
      %98 = dma.done [#allocation6], 128
    $region37: #{tpu_custom_call.1} parent=1 // pred_fallthru
      _
    // Predicated region
    $region38: #{tpu_custom_call.1} parent=1 // pred_check
      _
    $region39: #{tpu_custom_call.1} parent=1 // pred_check_branch
      %100 = sbr.rel (0) target = $region41
    $region40: #{tpu_custom_call.1} parent=1 // pred_region
      %102 = dma.done [#allocation6], 65536
    $region41: #{tpu_custom_call.1} parent=1 // pred_fallthru
      _
    // Predicated region
    $region42: #{tpu_custom_call.1} parent=1 // pred_check
      _
    $region43: #{tpu_custom_call.1} parent=1 // pred_check_branch
      %104 = sbr.rel (0) target = $region45
    $region44: #{tpu_custom_call.1} parent=1 // pred_region
      %106 = dma.done [#allocation9], 256
    $region45: #{tpu_custom_call.1} parent=1 // pred_fallthru
      _
    // Predicated region
    $region46: #{tpu_custom_call.1} parent=1 // pred_check
      _
    $region47: #{tpu_custom_call.1} parent=1 // pred_check_branch
      %108 = sbr.rel (0) target = $region49
    $region48: #{tpu_custom_call.1} parent=1 // pred_region
      %110 = dma.done [#allocation9], 4096
    $region49: #{tpu_custom_call.1} parent=1 // pred_fallthru
      _
    // Predicated region
    $region50: #{tpu_custom_call.1} parent=1 // pred_check
      _
    $region51: #{tpu_custom_call.1} parent=1 // pred_check_branch
      %112 = sbr.rel (0) target = $region53
    $region52: #{tpu_custom_call.1} parent=1 // pred_region
      %114 = dma.done [#allocation12], 16
    $region53: #{tpu_custom_call.1} parent=1 // pred_fallthru
      _
    %v116 = vld [vmem:[%s0] sm:$0xff]
    %v117 = vpack.c.bf16 %v116, %v116
    %v118 = vld [vmem:[#allocation2] sm:$0xff]
    %v119 = vld [vmem:[#allocation2 + $0x8] sm:$0xff]
    %v120 = vld [vmem:[#allocation5] sm:$0xff]
    %v122 = vperm.slane %v120, 0
    %v123 = vperm.slane %v120, 1
    %v124 = vperm.slane %v120, 2
    %v125 = vperm.slane %v120, 3
    %v126 = vperm.slane %v120, 4
    %v127 = vperm.slane %v120, 5
    %v128 = vperm.slane %v120, 6
    %v129 = vperm.slane %v120, 7
    %139 = vst [vmem:[#allocation1] ss:$4 sm:$0xff] %v118
    %s141 = scalar_lea.vmem [#allocation1], 32
    %142 = vst [vmem:[%s141] ss:$4 sm:$0xff] %v119
    %v143 = vld.sshfl [vmem:[#allocation1] sm:$0xff pattern:$0x73625140]
    %v144 = vld.sshfl [vmem:[#allocation1 + $0x8] sm:$0xff pattern:$0x73625140]
    %v145 = vld.sshfl [vmem:[#allocation1 + $0x10] sm:$0xff pattern:$0x73625140]
    %v146 = vld.sshfl [vmem:[#allocation1 + $0x18] sm:$0xff pattern:$0x73625140]
    %v147 = vld.sshfl [vmem:[#allocation1 + $0x20] sm:$0xff pattern:$0x73625140]
    %v148 = vld.sshfl [vmem:[#allocation1 + $0x28] sm:$0xff pattern:$0x73625140]
    %v149 = vld.sshfl [vmem:[#allocation1 + $0x30] sm:$0xff pattern:$0x73625140]
    %v150 = vld.sshfl [vmem:[#allocation1 + $0x38] sm:$0xff pattern:$0x73625140]
    %vm151 = vcmask 23552
    %v153 = vsel %vm151, %v117, 0
    %vm155 = vcmask 1040384
    %vm156 = vcmask 1041408
    %v157 = vsel %vm155, 4294967295, 65535
    %v158 = vsel %vm156, %v157, 0
    %v159 = vand.u32 %v143, %v158
    %v161 = vand.u32 %v144, %v158
    %v163 = vand.u32 %v145, %v158
    %v165 = vand.u32 %v146, %v158
    %v167 = vand.u32 %v147, %v158
    %v169 = vand.u32 %v148, %v158
    %v171 = vand.u32 %v149, %v158
    %v173 = vand.u32 %v150, %v158
    %175 = vmatpush.bf16.msra.mxu0 0
    %176 = vmatpush.bf16.msra.mxu0 0
    %177 = vmatpush.bf16.msra.mxu0 0
    %178 = vmatpush.bf16.msra.mxu0 0
    %179 = vmatpush.bf16.msra.mxu0 0
    %180 = vmatpush.bf16.msra.mxu0 0
    %181 = vmatpush.bf16.msra.mxu0 0
    %182 = vmatpush.bf16.msra.mxu0 %v159
    %183 = vmatmul.bf16.gmra.mxu0 %v153
    %v184 = vpop.f32.mrf.mxu0
    %v185 = vadd.f32 %v122, %v184
    %v186 = vpop.f32.mrf.mxu0
    %187 = vdwg.mxu0
    %188 = vmatpush.bf16.msra.mxu0 0
    %189 = vmatpush.bf16.msra.mxu0 0
    %190 = vmatpush.bf16.msra.mxu0 0
    %191 = vmatpush.bf16.msra.mxu0 0
    %192 = vmatpush.bf16.msra.mxu0 0
    %193 = vmatpush.bf16.msra.mxu0 0
    %194 = vmatpush.bf16.msra.mxu0 0
    %195 = vmatpush.bf16.msra.mxu0 %v161
    %196 = vmatmul.bf16.gmra.mxu0 %v153
    %v197 = vpop.f32.mrf.mxu0
    %v198 = vadd.f32 %v123, %v197
    %v199 = vpop.f32.mrf.mxu0
    %200 = vdwg.mxu0
    %201 = vmatpush.bf16.msra.mxu0 0
    %202 = vmatpush.bf16.msra.mxu0 0
    %203 = vmatpush.bf16.msra.mxu0 0
    %204 = vmatpush.bf16.msra.mxu0 0
    %205 = vmatpush.bf16.msra.mxu0 0
    %206 = vmatpush.bf16.msra.mxu0 0
    %207 = vmatpush.bf16.msra.mxu0 0
    %208 = vmatpush.bf16.msra.mxu0 %v163
    %209 = vmatmul.bf16.gmra.mxu0 %v153
    %v210 = vpop.f32.mrf.mxu0
    %v211 = vadd.f32 %v124, %v210
    %v212 = vpop.f32.mrf.mxu0
    %213 = vdwg.mxu0
    %214 = vmatpush.bf16.msra.mxu0 0
    %215 = vmatpush.bf16.msra.mxu0 0
    %216 = vmatpush.bf16.msra.mxu0 0
    %217 = vmatpush.bf16.msra.mxu0 0
    %218 = vmatpush.bf16.msra.mxu0 0
    %219 = vmatpush.bf16.msra.mxu0 0
    %220 = vmatpush.bf16.msra.mxu0 0
    %221 = vmatpush.bf16.msra.mxu0 %v165
    %222 = vmatmul.bf16.gmra.mxu0 %v153
    %v223 = vpop.f32.mrf.mxu0
    %v224 = vadd.f32 %v125, %v223
    %v225 = vpop.f32.mrf.mxu0
    %226 = vdwg.mxu0
    %227 = vmatpush.bf16.msra.mxu0 0
    %228 = vmatpush.bf16.msra.mxu0 0
    %229 = vmatpush.bf16.msra.mxu0 0
    %230 = vmatpush.bf16.msra.mxu0 0
    %231 = vmatpush.bf16.msra.mxu0 0
    %232 = vmatpush.bf16.msra.mxu0 0
    %233 = vmatpush.bf16.msra.mxu0 0
    %234 = vmatpush.bf16.msra.mxu0 %v167
    %235 = vmatmul.bf16.gmra.mxu0 %v153
    %v236 = vpop.f32.mrf.mxu0
    %v237 = vadd.f32 %v126, %v236
    %v238 = vpop.f32.mrf.mxu0
    %239 = vdwg.mxu0
    %240 = vmatpush.bf16.msra.mxu0 0
    %241 = vmatpush.bf16.msra.mxu0 0
    %242 = vmatpush.bf16.msra.mxu0 0
    %243 = vmatpush.bf16.msra.mxu0 0
    %244 = vmatpush.bf16.msra.mxu0 0
    %245 = vmatpush.bf16.msra.mxu0 0
    %246 = vmatpush.bf16.msra.mxu0 0
    %247 = vmatpush.bf16.msra.mxu0 %v169
    %248 = vmatmul.bf16.gmra.mxu0 %v153
    %v249 = vpop.f32.mrf.mxu0
    %v250 = vadd.f32 %v127, %v249
    %v251 = vpop.f32.mrf.mxu0
    %252 = vdwg.mxu0
    %253 = vmatpush.bf16.msra.mxu0 0
    %254 = vmatpush.bf16.msra.mxu0 0
    %255 = vmatpush.bf16.msra.mxu0 0
    %256 = vmatpush.bf16.msra.mxu0 0
    %257 = vmatpush.bf16.msra.mxu0 0
    %258 = vmatpush.bf16.msra.mxu0 0
    %259 = vmatpush.bf16.msra.mxu0 0
    %260 = vmatpush.bf16.msra.mxu0 %v171
    %261 = vmatmul.bf16.gmra.mxu0 %v153
    %v262 = vpop.f32.mrf.mxu0
    %v263 = vadd.f32 %v128, %v262
    %v264 = vpop.f32.mrf.mxu0
    %265 = vdwg.mxu0
    %266 = vmatpush.bf16.msra.mxu0 0
    %267 = vmatpush.bf16.msra.mxu0 0
    %268 = vmatpush.bf16.msra.mxu0 0
    %269 = vmatpush.bf16.msra.mxu0 0
    %270 = vmatpush.bf16.msra.mxu0 0
    %271 = vmatpush.bf16.msra.mxu0 0
    %272 = vmatpush.bf16.msra.mxu0 0
    %273 = vmatpush.bf16.msra.mxu0 %v173
    %274 = vmatmul.bf16.gmra.mxu0 %v153
    %v275 = vpop.f32.mrf.mxu0
    %v276 = vadd.f32 %v129, %v275
    %v277 = vpop.f32.mrf.mxu0
    %278 = vdwg.mxu0
    %v279 = vmax.f32 %v185, 0.0
    %v280 = vmax.f32 %v198, 0.0
    %v281 = vmax.f32 %v211, 0.0
    %v282 = vmax.f32 %v224, 0.0
    %v283 = vmax.f32 %v237, 0.0
    %v284 = vmax.f32 %v250, 0.0
    %v285 = vmax.f32 %v263, 0.0
    %v286 = vmax.f32 %v276, 0.0
    %v287 = vpack.c.bf16 %v279, %v279
    %v288 = vpack.c.bf16 %v280, %v280
    %v289 = vpack.c.bf16 %v281, %v281
    %v290 = vpack.c.bf16 %v282, %v282
    %v291 = vld [vmem:[#allocation7] sm:$0xff]
    %v292 = vld [vmem:[#allocation7 + $0x8] sm:$0xff]
    %v293 = vld [vmem:[#allocation7 + $0x10] sm:$0xff]
    %v294 = vld [vmem:[#allocation7 + $0x18] sm:$0xff]
    %v295 = vld [vmem:[#allocation7 + $0x20] sm:$0xff]
    %v296 = vld [vmem:[#allocation7 + $0x28] sm:$0xff]
    %v297 = vld [vmem:[#allocation7 + $0x30] sm:$0xff]
    %v298 = vld [vmem:[#allocation7 + $0x38] sm:$0xff]
    %v299 = vld [vmem:[#allocation7 + $0x40] sm:$0xff]
    %v300 = vld [vmem:[#allocation7 + $0x48] sm:$0xff]
    %v301 = vld [vmem:[#allocation7 + $0x50] sm:$0xff]
    %v302 = vld [vmem:[#allocation7 + $0x58] sm:$0xff]
    %v303 = vld [vmem:[#allocation7 + $0x60] sm:$0xff]
    %v304 = vld [vmem:[#allocation7 + $0x68] sm:$0xff]
    %v305 = vld [vmem:[#allocation7 + $0x70] sm:$0xff]
    %v306 = vld [vmem:[#allocation7 + $0x78] sm:$0xff]
    %v307 = vld [vmem:[#allocation7 + $0x80] sm:$0xff]
    %v308 = vld [vmem:[#allocation7 + $0x88] sm:$0xff]
    %v309 = vld [vmem:[#allocation7 + $0x90] sm:$0xff]
    %v310 = vld [vmem:[#allocation7 + $0x98] sm:$0xff]
    %v311 = vld [vmem:[#allocation7 + $0xa0] sm:$0xff]
    %v312 = vld [vmem:[#allocation7 + $0xa8] sm:$0xff]
    %v313 = vld [vmem:[#allocation7 + $0xb0] sm:$0xff]
    %v314 = vld [vmem:[#allocation7 + $0xb8] sm:$0xff]
    %v315 = vld [vmem:[#allocation7 + $0xc0] sm:$0xff]
    %v316 = vld [vmem:[#allocation7 + $0xc8] sm:$0xff]
    %v317 = vld [vmem:[#allocation7 + $0xd0] sm:$0xff]
    %v318 = vld [vmem:[#allocation7 + $0xd8] sm:$0xff]
    %v319 = vld [vmem:[#allocation7 + $0xe0] sm:$0xff]
    %v320 = vld [vmem:[#allocation7 + $0xe8] sm:$0xff]
    %v321 = vld [vmem:[#allocation7 + $0xf0] sm:$0xff]
    %v322 = vld [vmem:[#allocation7 + $0xf8] sm:$0xff]
    %v323 = vld [vmem:[#allocation7 + $0x100] sm:$0xff]
    %v324 = vld [vmem:[#allocation7 + $0x108] sm:$0xff]
    %v325 = vld [vmem:[#allocation7 + $0x110] sm:$0xff]
    %v326 = vld [vmem:[#allocation7 + $0x118] sm:$0xff]
    %v327 = vld [vmem:[#allocation7 + $0x120] sm:$0xff]
    %v328 = vld [vmem:[#allocation7 + $0x128] sm:$0xff]
    %v329 = vld [vmem:[#allocation7 + $0x130] sm:$0xff]
    %v330 = vld [vmem:[#allocation7 + $0x138] sm:$0xff]
    %v331 = vld [vmem:[#allocation7 + $0x140] sm:$0xff]
    %v332 = vld [vmem:[#allocation7 + $0x148] sm:$0xff]
    %v333 = vld [vmem:[#allocation7 + $0x150] sm:$0xff]
    %v334 = vld [vmem:[#allocation7 + $0x158] sm:$0xff]
    %v335 = vld [vmem:[#allocation7 + $0x160] sm:$0xff]
    %v336 = vld [vmem:[#allocation7 + $0x168] sm:$0xff]
    %v337 = vld [vmem:[#allocation7 + $0x170] sm:$0xff]
    %v338 = vld [vmem:[#allocation7 + $0x178] sm:$0xff]
    %v339 = vld [vmem:[#allocation7 + $0x180] sm:$0xff]
    %v340 = vld [vmem:[#allocation7 + $0x188] sm:$0xff]
    %v341 = vld [vmem:[#allocation7 + $0x190] sm:$0xff]
    %v342 = vld [vmem:[#allocation7 + $0x198] sm:$0xff]
    %v343 = vld [vmem:[#allocation7 + $0x1a0] sm:$0xff]
    %v344 = vld [vmem:[#allocation7 + $0x1a8] sm:$0xff]
    %v345 = vld [vmem:[#allocation7 + $0x1b0] sm:$0xff]
    %v346 = vld [vmem:[#allocation7 + $0x1b8] sm:$0xff]
    %v347 = vld [vmem:[#allocation7 + $0x1c0] sm:$0xff]
    %v348 = vld [vmem:[#allocation7 + $0x1c8] sm:$0xff]
    %v349 = vld [vmem:[#allocation7 + $0x1d0] sm:$0xff]
    %v350 = vld [vmem:[#allocation7 + $0x1d8] sm:$0xff]
    %v351 = vld [vmem:[#allocation7 + $0x1e0] sm:$0xff]
    %v352 = vld [vmem:[#allocation7 + $0x1e8] sm:$0xff]
    %v353 = vld [vmem:[#allocation7 + $0x1f0] sm:$0xff]
    %v354 = vld [vmem:[#allocation7 + $0x1f8] sm:$0xff]
    %v355 = vld [vmem:[#allocation7 + $0x200] sm:$0xff]
    %v356 = vld [vmem:[#allocation7 + $0x208] sm:$0xff]
    %v357 = vld [vmem:[#allocation7 + $0x210] sm:$0xff]
    %v358 = vld [vmem:[#allocation7 + $0x218] sm:$0xff]
    %v359 = vld [vmem:[#allocation7 + $0x220] sm:$0xff]
    %v360 = vld [vmem:[#allocation7 + $0x228] sm:$0xff]
    %v361 = vld [vmem:[#allocation7 + $0x230] sm:$0xff]
    %v362 = vld [vmem:[#allocation7 + $0x238] sm:$0xff]
    %v363 = vld [vmem:[#allocation7 + $0x240] sm:$0xff]
    %v364 = vld [vmem:[#allocation7 + $0x248] sm:$0xff]
    %v365 = vld [vmem:[#allocation7 + $0x250] sm:$0xff]
    %v366 = vld [vmem:[#allocation7 + $0x258] sm:$0xff]
    %v367 = vld [vmem:[#allocation7 + $0x260] sm:$0xff]
    %v368 = vld [vmem:[#allocation7 + $0x268] sm:$0xff]
    %v369 = vld [vmem:[#allocation7 + $0x270] sm:$0xff]
    %v370 = vld [vmem:[#allocation7 + $0x278] sm:$0xff]
    %v371 = vld [vmem:[#allocation7 + $0x280] sm:$0xff]
    %v372 = vld [vmem:[#allocation7 + $0x288] sm:$0xff]
    %v373 = vld [vmem:[#allocation7 + $0x290] sm:$0xff]
    %v374 = vld [vmem:[#allocation7 + $0x298] sm:$0xff]
    %v375 = vld [vmem:[#allocation7 + $0x2a0] sm:$0xff]
    %v376 = vld [vmem:[#allocation7 + $0x2a8] sm:$0xff]
    %v377 = vld [vmem:[#allocation7 + $0x2b0] sm:$0xff]
    %v378 = vld [vmem:[#allocation7 + $0x2b8] sm:$0xff]
    %v379 = vld [vmem:[#allocation7 + $0x2c0] sm:$0xff]
    %v380 = vld [vmem:[#allocation7 + $0x2c8] sm:$0xff]
    %v381 = vld [vmem:[#allocation7 + $0x2d0] sm:$0xff]
    %v382 = vld [vmem:[#allocation7 + $0x2d8] sm:$0xff]
    %v383 = vld [vmem:[#allocation7 + $0x2e0] sm:$0xff]
    %v384 = vld [vmem:[#allocation7 + $0x2e8] sm:$0xff]
    %v385 = vld [vmem:[#allocation7 + $0x2f0] sm:$0xff]
    %v386 = vld [vmem:[#allocation7 + $0x2f8] sm:$0xff]
    %v387 = vld [vmem:[#allocation7 + $0x300] sm:$0xff]
    %v388 = vld [vmem:[#allocation7 + $0x308] sm:$0xff]
    %v389 = vld [vmem:[#allocation7 + $0x310] sm:$0xff]
    %v390 = vld [vmem:[#allocation7 + $0x318] sm:$0xff]
    %v391 = vld [vmem:[#allocation7 + $0x320] sm:$0xff]
    %v392 = vld [vmem:[#allocation7 + $0x328] sm:$0xff]
    %v393 = vld [vmem:[#allocation7 + $0x330] sm:$0xff]
    %v394 = vld [vmem:[#allocation7 + $0x338] sm:$0xff]
    %v395 = vld [vmem:[#allocation7 + $0x340] sm:$0xff]
    %v396 = vld [vmem:[#allocation7 + $0x348] sm:$0xff]
    %v397 = vld [vmem:[#allocation7 + $0x350] sm:$0xff]
    %v398 = vld [vmem:[#allocation7 + $0x358] sm:$0xff]
    %v399 = vld [vmem:[#allocation7 + $0x360] sm:$0xff]
    %v400 = vld [vmem:[#allocation7 + $0x368] sm:$0xff]
    %v401 = vld [vmem:[#allocation7 + $0x370] sm:$0xff]
    %v402 = vld [vmem:[#allocation7 + $0x378] sm:$0xff]
    %v403 = vld [vmem:[#allocation7 + $0x380] sm:$0xff]
    %v404 = vld [vmem:[#allocation7 + $0x388] sm:$0xff]
    %v405 = vld [vmem:[#allocation7 + $0x390] sm:$0xff]
    %v406 = vld [vmem:[#allocation7 + $0x398] sm:$0xff]
    %v407 = vld [vmem:[#allocation7 + $0x3a0] sm:$0xff]
    %v408 = vld [vmem:[#allocation7 + $0x3a8] sm:$0xff]
    %v409 = vld [vmem:[#allocation7 + $0x3b0] sm:$0xff]
    %v410 = vld [vmem:[#allocation7 + $0x3b8] sm:$0xff]
    %v411 = vld [vmem:[#allocation7 + $0x3c0] sm:$0xff]
    %v412 = vld [vmem:[#allocation7 + $0x3c8] sm:$0xff]
    %v413 = vld [vmem:[#allocation7 + $0x3d0] sm:$0xff]
    %v414 = vld [vmem:[#allocation7 + $0x3d8] sm:$0xff]
    %v415 = vld [vmem:[#allocation7 + $0x3e0] sm:$0xff]
    %v416 = vld [vmem:[#allocation7 + $0x3e8] sm:$0xff]
    %v417 = vld [vmem:[#allocation7 + $0x3f0] sm:$0xff]
    %v418 = vld [vmem:[#allocation7 + $0x3f8] sm:$0xff]
    %v419 = vld [vmem:[#allocation8] sm:$0xf]
    %v421 = vperm.slane %v419, 0
    %v422 = vperm.slane %v419, 1
    %v423 = vperm.slane %v419, 2
    %v424 = vperm.slane %v419, 3
    %v557 = vunpack.c.l.b16 %v291
    %v558 = vunpack.c.h.b16 %v291
    %v559 = vunpack.c.l.b16 %v292
    %v560 = vunpack.c.h.b16 %v292
    %v561 = vunpack.c.l.b16 %v293
    %v562 = vunpack.c.h.b16 %v293
    %v563 = vunpack.c.l.b16 %v294
    %v564 = vunpack.c.h.b16 %v294
    %v565 = vunpack.c.l.b16 %v295
    %v566 = vunpack.c.h.b16 %v295
    %v567 = vunpack.c.l.b16 %v296
    %v568 = vunpack.c.h.b16 %v296
    %v569 = vunpack.c.l.b16 %v297
    %v570 = vunpack.c.h.b16 %v297
    %v571 = vunpack.c.l.b16 %v298
    %v572 = vunpack.c.h.b16 %v298
    %v573 = vunpack.c.l.b16 %v299
    %v574 = vunpack.c.h.b16 %v299
    %v575 = vunpack.c.l.b16 %v300
    %v576 = vunpack.c.h.b16 %v300
    %v577 = vunpack.c.l.b16 %v301
    %v578 = vunpack.c.h.b16 %v301
    %v579 = vunpack.c.l.b16 %v302
    %v580 = vunpack.c.h.b16 %v302
    %v581 = vunpack.c.l.b16 %v303
    %v582 = vunpack.c.h.b16 %v303
    %v583 = vunpack.c.l.b16 %v304
    %v584 = vunpack.c.h.b16 %v304
    %v585 = vunpack.c.l.b16 %v305
    %v586 = vunpack.c.h.b16 %v305
    %v587 = vunpack.c.l.b16 %v306
    %v588 = vunpack.c.h.b16 %v306
    %v589 = vunpack.c.l.b16 %v307
    %v590 = vunpack.c.h.b16 %v307
    %v591 = vunpack.c.l.b16 %v308
    %v592 = vunpack.c.h.b16 %v308
    %v593 = vunpack.c.l.b16 %v309
    %v594 = vunpack.c.h.b16 %v309
    %v595 = vunpack.c.l.b16 %v310
    %v596 = vunpack.c.h.b16 %v310
    %v597 = vunpack.c.l.b16 %v311
    %v598 = vunpack.c.h.b16 %v311
    %v599 = vunpack.c.l.b16 %v312
    %v600 = vunpack.c.h.b16 %v312
    %v601 = vunpack.c.l.b16 %v313
    %v602 = vunpack.c.h.b16 %v313
    %v603 = vunpack.c.l.b16 %v314
    %v604 = vunpack.c.h.b16 %v314
    %v605 = vunpack.c.l.b16 %v315
    %v606 = vunpack.c.h.b16 %v315
    %v607 = vunpack.c.l.b16 %v316
    %v608 = vunpack.c.h.b16 %v316
    %v609 = vunpack.c.l.b16 %v317
    %v610 = vunpack.c.h.b16 %v317
    %v611 = vunpack.c.l.b16 %v318
    %v612 = vunpack.c.h.b16 %v318
    %v613 = vunpack.c.l.b16 %v319
    %v614 = vunpack.c.h.b16 %v319
    %v615 = vunpack.c.l.b16 %v320
    %v616 = vunpack.c.h.b16 %v320
    %v617 = vunpack.c.l.b16 %v321
    %v618 = vunpack.c.h.b16 %v321
    %v619 = vunpack.c.l.b16 %v322
    %v620 = vunpack.c.h.b16 %v322
    %v621 = vunpack.c.l.b16 %v323
    %v622 = vunpack.c.h.b16 %v323
    %v623 = vunpack.c.l.b16 %v324
    %v624 = vunpack.c.h.b16 %v324
    %v625 = vunpack.c.l.b16 %v325
    %v626 = vunpack.c.h.b16 %v325
    %v627 = vunpack.c.l.b16 %v326
    %v628 = vunpack.c.h.b16 %v326
    %v629 = vunpack.c.l.b16 %v327
    %v630 = vunpack.c.h.b16 %v327
    %v631 = vunpack.c.l.b16 %v328
    %v632 = vunpack.c.h.b16 %v328
    %v633 = vunpack.c.l.b16 %v329
    %v634 = vunpack.c.h.b16 %v329
    %v635 = vunpack.c.l.b16 %v330
    %v636 = vunpack.c.h.b16 %v330
    %v637 = vunpack.c.l.b16 %v331
    %v638 = vunpack.c.h.b16 %v331
    %v639 = vunpack.c.l.b16 %v332
    %v640 = vunpack.c.h.b16 %v332
    %v641 = vunpack.c.l.b16 %v333
    %v642 = vunpack.c.h.b16 %v333
    %v643 = vunpack.c.l.b16 %v334
    %v644 = vunpack.c.h.b16 %v334
    %v645 = vunpack.c.l.b16 %v335
    %v646 = vunpack.c.h.b16 %v335
    %v647 = vunpack.c.l.b16 %v336
    %v648 = vunpack.c.h.b16 %v336
    %v649 = vunpack.c.l.b16 %v337
    %v650 = vunpack.c.h.b16 %v337
    %v651 = vunpack.c.l.b16 %v338
    %v652 = vunpack.c.h.b16 %v338
    %v653 = vunpack.c.l.b16 %v339
    %v654 = vunpack.c.h.b16 %v339
    %v655 = vunpack.c.l.b16 %v340
    %v656 = vunpack.c.h.b16 %v340
    %v657 = vunpack.c.l.b16 %v341
    %v658 = vunpack.c.h.b16 %v341
    %v659 = vunpack.c.l.b16 %v342
    %v660 = vunpack.c.h.b16 %v342
    %v661 = vunpack.c.l.b16 %v343
    %v662 = vunpack.c.h.b16 %v343
    %v663 = vunpack.c.l.b16 %v344
    %v664 = vunpack.c.h.b16 %v344
    %v665 = vunpack.c.l.b16 %v345
    %v666 = vunpack.c.h.b16 %v345
    %v667 = vunpack.c.l.b16 %v346
    %v668 = vunpack.c.h.b16 %v346
    %v669 = vunpack.c.l.b16 %v347
    %v670 = vunpack.c.h.b16 %v347
    %v671 = vunpack.c.l.b16 %v348
    %v672 = vunpack.c.h.b16 %v348
    %v673 = vunpack.c.l.b16 %v349
    %v674 = vunpack.c.h.b16 %v349
    %v675 = vunpack.c.l.b16 %v350
    %v676 = vunpack.c.h.b16 %v350
    %v677 = vunpack.c.l.b16 %v351
    %v678 = vunpack.c.h.b16 %v351
    %v679 = vunpack.c.l.b16 %v352
    %v680 = vunpack.c.h.b16 %v352
    %v681 = vunpack.c.l.b16 %v353
    %v682 = vunpack.c.h.b16 %v353
    %v683 = vunpack.c.l.b16 %v354
    %v684 = vunpack.c.h.b16 %v354
    %v685 = vunpack.c.l.b16 %v355
    %v686 = vunpack.c.h.b16 %v355
    %v687 = vunpack.c.l.b16 %v356
    %v688 = vunpack.c.h.b16 %v356
    %v689 = vunpack.c.l.b16 %v357
    %v690 = vunpack.c.h.b16 %v357
    %v691 = vunpack.c.l.b16 %v358
    %v692 = vunpack.c.h.b16 %v358
    %v693 = vunpack.c.l.b16 %v359
    %v694 = vunpack.c.h.b16 %v359
    %v695 = vunpack.c.l.b16 %v360
    %v696 = vunpack.c.h.b16 %v360
    %v697 = vunpack.c.l.b16 %v361
    %v698 = vunpack.c.h.b16 %v361
    %v699 = vunpack.c.l.b16 %v362
    %v700 = vunpack.c.h.b16 %v362
    %v701 = vunpack.c.l.b16 %v363
    %v702 = vunpack.c.h.b16 %v363
    %v703 = vunpack.c.l.b16 %v364
    %v704 = vunpack.c.h.b16 %v364
    %v705 = vunpack.c.l.b16 %v365
    %v706 = vunpack.c.h.b16 %v365
    %v707 = vunpack.c.l.b16 %v366
    %v708 = vunpack.c.h.b16 %v366
    %v709 = vunpack.c.l.b16 %v367
    %v710 = vunpack.c.h.b16 %v367
    %v711 = vunpack.c.l.b16 %v368
    %v712 = vunpack.c.h.b16 %v368
    %v713 = vunpack.c.l.b16 %v369
    %v714 = vunpack.c.h.b16 %v369
    %v715 = vunpack.c.l.b16 %v370
    %v716 = vunpack.c.h.b16 %v370
    %v717 = vunpack.c.l.b16 %v371
    %v718 = vunpack.c.h.b16 %v371
    %v719 = vunpack.c.l.b16 %v372
    %v720 = vunpack.c.h.b16 %v372
    %v721 = vunpack.c.l.b16 %v373
    %v722 = vunpack.c.h.b16 %v373
    %v723 = vunpack.c.l.b16 %v374
    %v724 = vunpack.c.h.b16 %v374
    %v725 = vunpack.c.l.b16 %v375
    %v726 = vunpack.c.h.b16 %v375
    %v727 = vunpack.c.l.b16 %v376
    %v728 = vunpack.c.h.b16 %v376
    %v729 = vunpack.c.l.b16 %v377
    %v730 = vunpack.c.h.b16 %v377
    %v731 = vunpack.c.l.b16 %v378
    %v732 = vunpack.c.h.b16 %v378
    %v733 = vunpack.c.l.b16 %v379
    %v734 = vunpack.c.h.b16 %v379
    %v735 = vunpack.c.l.b16 %v380
    %v736 = vunpack.c.h.b16 %v380
    %v737 = vunpack.c.l.b16 %v381
    %v738 = vunpack.c.h.b16 %v381
    %v739 = vunpack.c.l.b16 %v382
    %v740 = vunpack.c.h.b16 %v382
    %v741 = vunpack.c.l.b16 %v383
    %v742 = vunpack.c.h.b16 %v383
    %v743 = vunpack.c.l.b16 %v384
    %v744 = vunpack.c.h.b16 %v384
    %v745 = vunpack.c.l.b16 %v385
    %v746 = vunpack.c.h.b16 %v385
    %v747 = vunpack.c.l.b16 %v386
    %v748 = vunpack.c.h.b16 %v386
    %v749 = vunpack.c.l.b16 %v387
    %v750 = vunpack.c.h.b16 %v387
    %v751 = vunpack.c.l.b16 %v388
    %v752 = vunpack.c.h.b16 %v388
    %v753 = vunpack.c.l.b16 %v389
    %v754 = vunpack.c.h.b16 %v389
    %v755 = vunpack.c.l.b16 %v390
    %v756 = vunpack.c.h.b16 %v390
    %v757 = vunpack.c.l.b16 %v391
    %v758 = vunpack.c.h.b16 %v391
    %v759 = vunpack.c.l.b16 %v392
    %v760 = vunpack.c.h.b16 %v392
    %v761 = vunpack.c.l.b16 %v393
    %v762 = vunpack.c.h.b16 %v393
    %v763 = vunpack.c.l.b16 %v394
    %v764 = vunpack.c.h.b16 %v394
    %v765 = vunpack.c.l.b16 %v395
    %v766 = vunpack.c.h.b16 %v395
    %v767 = vunpack.c.l.b16 %v396
    %v768 = vunpack.c.h.b16 %v396
    %v769 = vunpack.c.l.b16 %v397
    %v770 = vunpack.c.h.b16 %v397
    %v771 = vunpack.c.l.b16 %v398
    %v772 = vunpack.c.h.b16 %v398
    %v773 = vunpack.c.l.b16 %v399
    %v774 = vunpack.c.h.b16 %v399
    %v775 = vunpack.c.l.b16 %v400
    %v776 = vunpack.c.h.b16 %v400
    %v777 = vunpack.c.l.b16 %v401
    %v778 = vunpack.c.h.b16 %v401
    %v779 = vunpack.c.l.b16 %v402
    %v780 = vunpack.c.h.b16 %v402
    %v781 = vunpack.c.l.b16 %v403
    %v782 = vunpack.c.h.b16 %v403
    %v783 = vunpack.c.l.b16 %v404
    %v784 = vunpack.c.h.b16 %v404
    %v785 = vunpack.c.l.b16 %v405
    %v786 = vunpack.c.h.b16 %v405
    %v787 = vunpack.c.l.b16 %v406
    %v788 = vunpack.c.h.b16 %v406
    %v789 = vunpack.c.l.b16 %v407
    %v790 = vunpack.c.h.b16 %v407
    %v791 = vunpack.c.l.b16 %v408
    %v792 = vunpack.c.h.b16 %v408
    %v793 = vunpack.c.l.b16 %v409
    %v794 = vunpack.c.h.b16 %v409
    %v795 = vunpack.c.l.b16 %v410
    %v796 = vunpack.c.h.b16 %v410
    %v797 = vunpack.c.l.b16 %v411
    %v798 = vunpack.c.h.b16 %v411
    %v799 = vunpack.c.l.b16 %v412
    %v800 = vunpack.c.h.b16 %v412
    %v801 = vunpack.c.l.b16 %v413
    %v802 = vunpack.c.h.b16 %v413
    %v803 = vunpack.c.l.b16 %v414
    %v804 = vunpack.c.h.b16 %v414
    %v805 = vunpack.c.l.b16 %v415
    %v806 = vunpack.c.h.b16 %v415
    %v807 = vunpack.c.l.b16 %v416
    %v808 = vunpack.c.h.b16 %v416
    %v809 = vunpack.c.l.b16 %v417
    %v810 = vunpack.c.h.b16 %v417
    %v811 = vunpack.c.l.b16 %v418
    %v812 = vunpack.c.h.b16 %v418
    %v813 = vpack.c.b16 %v561, %v557
    %v814 = vpack.c.b16 %v562, %v558
    %v815 = vpack.c.b16 %v563, %v559
    %v816 = vpack.c.b16 %v564, %v560
    %v817 = vpack.c.b16 %v569, %v565
    %v818 = vpack.c.b16 %v570, %v566
    %v819 = vpack.c.b16 %v571, %v567
    %v820 = vpack.c.b16 %v572, %v568
    %v821 = vpack.c.b16 %v577, %v573
    %v822 = vpack.c.b16 %v578, %v574
    %v823 = vpack.c.b16 %v579, %v575
    %v824 = vpack.c.b16 %v580, %v576
    %v825 = vpack.c.b16 %v585, %v581
    %v826 = vpack.c.b16 %v586, %v582
    %v827 = vpack.c.b16 %v587, %v583
    %v828 = vpack.c.b16 %v588, %v584
    %v829 = vpack.c.b16 %v593, %v589
    %v830 = vpack.c.b16 %v594, %v590
    %v831 = vpack.c.b16 %v595, %v591
    %v832 = vpack.c.b16 %v596, %v592
    %v833 = vpack.c.b16 %v601, %v597
    %v834 = vpack.c.b16 %v602, %v598
    %v835 = vpack.c.b16 %v603, %v599
    %v836 = vpack.c.b16 %v604, %v600
    %v837 = vpack.c.b16 %v609, %v605
    %v838 = vpack.c.b16 %v610, %v606
    %v839 = vpack.c.b16 %v611, %v607
    %v840 = vpack.c.b16 %v612, %v608
    %v841 = vpack.c.b16 %v617, %v613
    %v842 = vpack.c.b16 %v618, %v614
    %v843 = vpack.c.b16 %v619, %v615
    %v844 = vpack.c.b16 %v620, %v616
    %v845 = vpack.c.b16 %v625, %v621
    %v846 = vpack.c.b16 %v626, %v622
    %v847 = vpack.c.b16 %v627, %v623
    %v848 = vpack.c.b16 %v628, %v624
    %v849 = vpack.c.b16 %v633, %v629
    %v850 = vpack.c.b16 %v634, %v630
    %v851 = vpack.c.b16 %v635, %v631
    %v852 = vpack.c.b16 %v636, %v632
    %v853 = vpack.c.b16 %v641, %v637
    %v854 = vpack.c.b16 %v642, %v638
    %v855 = vpack.c.b16 %v643, %v639
    %v856 = vpack.c.b16 %v644, %v640
    %v857 = vpack.c.b16 %v649, %v645
    %v858 = vpack.c.b16 %v650, %v646
    %v859 = vpack.c.b16 %v651, %v647
    %v860 = vpack.c.b16 %v652, %v648
    %v861 = vpack.c.b16 %v657, %v653
    %v862 = vpack.c.b16 %v658, %v654
    %v863 = vpack.c.b16 %v659, %v655
    %v864 = vpack.c.b16 %v660, %v656
    %v865 = vpack.c.b16 %v665, %v661
    %v866 = vpack.c.b16 %v666, %v662
    %v867 = vpack.c.b16 %v667, %v663
    %v868 = vpack.c.b16 %v668, %v664
    %v869 = vpack.c.b16 %v673, %v669
    %v870 = vpack.c.b16 %v674, %v670
    %v871 = vpack.c.b16 %v675, %v671
    %v872 = vpack.c.b16 %v676, %v672
    %v873 = vpack.c.b16 %v681, %v677
    %v874 = vpack.c.b16 %v682, %v678
    %v875 = vpack.c.b16 %v683, %v679
    %v876 = vpack.c.b16 %v684, %v680
    %v877 = vpack.c.b16 %v689, %v685
    %v878 = vpack.c.b16 %v690, %v686
    %v879 = vpack.c.b16 %v691, %v687
    %v880 = vpack.c.b16 %v692, %v688
    %v881 = vpack.c.b16 %v697, %v693
    %v882 = vpack.c.b16 %v698, %v694
    %v883 = vpack.c.b16 %v699, %v695
    %v884 = vpack.c.b16 %v700, %v696
    %v885 = vpack.c.b16 %v705, %v701
    %v886 = vpack.c.b16 %v706, %v702
    %v887 = vpack.c.b16 %v707, %v703
    %v888 = vpack.c.b16 %v708, %v704
    %v889 = vpack.c.b16 %v713, %v709
    %v890 = vpack.c.b16 %v714, %v710
    %v891 = vpack.c.b16 %v715, %v711
    %v892 = vpack.c.b16 %v716, %v712
    %v893 = vpack.c.b16 %v721, %v717
    %v894 = vpack.c.b16 %v722, %v718
    %v895 = vpack.c.b16 %v723, %v719
    %v896 = vpack.c.b16 %v724, %v720
    %v897 = vpack.c.b16 %v729, %v725
    %v898 = vpack.c.b16 %v730, %v726
    %v899 = vpack.c.b16 %v731, %v727
    %v900 = vpack.c.b16 %v732, %v728
    %v901 = vpack.c.b16 %v737, %v733
    %v902 = vpack.c.b16 %v738, %v734
    %v903 = vpack.c.b16 %v739, %v735
    %v904 = vpack.c.b16 %v740, %v736
    %v905 = vpack.c.b16 %v745, %v741
    %v906 = vpack.c.b16 %v746, %v742
    %v907 = vpack.c.b16 %v747, %v743
    %v908 = vpack.c.b16 %v748, %v744
    %v909 = vpack.c.b16 %v753, %v749
    %v910 = vpack.c.b16 %v754, %v750
    %v911 = vpack.c.b16 %v755, %v751
    %v912 = vpack.c.b16 %v756, %v752
    %v913 = vpack.c.b16 %v761, %v757
    %v914 = vpack.c.b16 %v762, %v758
    %v915 = vpack.c.b16 %v763, %v759
    %v916 = vpack.c.b16 %v764, %v760
    %v917 = vpack.c.b16 %v769, %v765
    %v918 = vpack.c.b16 %v770, %v766
    %v919 = vpack.c.b16 %v771, %v767
    %v920 = vpack.c.b16 %v772, %v768
    %v921 = vpack.c.b16 %v777, %v773
    %v922 = vpack.c.b16 %v778, %v774
    %v923 = vpack.c.b16 %v779, %v775
    %v924 = vpack.c.b16 %v780, %v776
    %v925 = vpack.c.b16 %v785, %v781
    %v926 = vpack.c.b16 %v786, %v782
    %v927 = vpack.c.b16 %v787, %v783
    %v928 = vpack.c.b16 %v788, %v784
    %v929 = vpack.c.b16 %v793, %v789
    %v930 = vpack.c.b16 %v794, %v790
    %v931 = vpack.c.b16 %v795, %v791
    %v932 = vpack.c.b16 %v796, %v792
    %v933 = vpack.c.b16 %v801, %v797
    %v934 = vpack.c.b16 %v802, %v798
    %v935 = vpack.c.b16 %v803, %v799
    %v936 = vpack.c.b16 %v804, %v800
    %v937 = vpack.c.b16 %v809, %v805
    %v938 = vpack.c.b16 %v810, %v806
    %v939 = vpack.c.b16 %v811, %v807
    %v940 = vpack.c.b16 %v812, %v808
    %1069 = vmatpush.bf16.msra.mxu0 %v841
    %1070 = vmatpush.bf16.msra.mxu0 %v837
    %1071 = vmatpush.bf16.msra.mxu0 %v833
    %1072 = vmatpush.bf16.msra.mxu0 %v829
    %1073 = vmatpush.bf16.msra.mxu0 %v825
    %1074 = vmatpush.bf16.msra.mxu0 %v821
    %1075 = vmatpush.bf16.msra.mxu0 %v817
    %1076 = vmatpush.bf16.msra.mxu0 %v813
    %1077 = vmatmul.bf16.gmra.mxu0 %v287
    %v1078 = vpop.f32.mrf.mxu0
    %v1079 = vadd.f32 %v421, %v1078
    %v1080 = vpop.f32.mrf.mxu0
    %1081 = vdwg.mxu0
    %1082 = vmatpush.bf16.msra.mxu0 %v873
    %1083 = vmatpush.bf16.msra.mxu0 %v869
    %1084 = vmatpush.bf16.msra.mxu0 %v865
    %1085 = vmatpush.bf16.msra.mxu0 %v861
    %1086 = vmatpush.bf16.msra.mxu0 %v857
    %1087 = vmatpush.bf16.msra.mxu0 %v853
    %1088 = vmatpush.bf16.msra.mxu0 %v849
    %1089 = vmatpush.bf16.msra.mxu0 %v845
    %1090 = vmatmul.bf16.gmra.mxu0 %v288
    %v1091 = vpop.f32.mrf.mxu0
    %v1092 = vadd.f32 %v1079, %v1091
    %v1093 = vpop.f32.mrf.mxu0
    %1094 = vdwg.mxu0
    %1095 = vmatpush.bf16.msra.mxu0 %v905
    %1096 = vmatpush.bf16.msra.mxu0 %v901
    %1097 = vmatpush.bf16.msra.mxu0 %v897
    %1098 = vmatpush.bf16.msra.mxu0 %v893
    %1099 = vmatpush.bf16.msra.mxu0 %v889
    %1100 = vmatpush.bf16.msra.mxu0 %v885
    %1101 = vmatpush.bf16.msra.mxu0 %v881
    %1102 = vmatpush.bf16.msra.mxu0 %v877
    %1103 = vmatmul.bf16.gmra.mxu0 %v289
    %v1104 = vpop.f32.mrf.mxu0
    %v1105 = vadd.f32 %v1092, %v1104
    %v1106 = vpop.f32.mrf.mxu0
    %1107 = vdwg.mxu0
    %1108 = vmatpush.bf16.msra.mxu0 %v937
    %1109 = vmatpush.bf16.msra.mxu0 %v933
    %1110 = vmatpush.bf16.msra.mxu0 %v929
    %1111 = vmatpush.bf16.msra.mxu0 %v925
    %1112 = vmatpush.bf16.msra.mxu0 %v921
    %1113 = vmatpush.bf16.msra.mxu0 %v917
    %1114 = vmatpush.bf16.msra.mxu0 %v913
    %1115 = vmatpush.bf16.msra.mxu0 %v909
    %1116 = vmatmul.bf16.gmra.mxu0 %v290
    %v1117 = vpop.f32.mrf.mxu0
    %v1118 = vadd.f32 %v1105, %v1117
    %v1119 = vpop.f32.mrf.mxu0
    %1120 = vdwg.mxu0
    %1121 = vmatpush.bf16.msra.mxu0 %v842
    %1122 = vmatpush.bf16.msra.mxu0 %v838
    %1123 = vmatpush.bf16.msra.mxu0 %v834
    %1124 = vmatpush.bf16.msra.mxu0 %v830
    %1125 = vmatpush.bf16.msra.mxu0 %v826
    %1126 = vmatpush.bf16.msra.mxu0 %v822
    %1127 = vmatpush.bf16.msra.mxu0 %v818
    %1128 = vmatpush.bf16.msra.mxu0 %v814
    %1129 = vmatmul.bf16.gmra.mxu0 %v287
    %v1130 = vpop.f32.mrf.mxu0
    %v1131 = vadd.f32 %v422, %v1130
    %v1132 = vpop.f32.mrf.mxu0
    %1133 = vdwg.mxu0
    %1134 = vmatpush.bf16.msra.mxu0 %v874
    %1135 = vmatpush.bf16.msra.mxu0 %v870
    %1136 = vmatpush.bf16.msra.mxu0 %v866
    %1137 = vmatpush.bf16.msra.mxu0 %v862
    %1138 = vmatpush.bf16.msra.mxu0 %v858
    %1139 = vmatpush.bf16.msra.mxu0 %v854
    %1140 = vmatpush.bf16.msra.mxu0 %v850
    %1141 = vmatpush.bf16.msra.mxu0 %v846
    %1142 = vmatmul.bf16.gmra.mxu0 %v288
    %v1143 = vpop.f32.mrf.mxu0
    %v1144 = vadd.f32 %v1131, %v1143
    %v1145 = vpop.f32.mrf.mxu0
    %1146 = vdwg.mxu0
    %1147 = vmatpush.bf16.msra.mxu0 %v906
    %1148 = vmatpush.bf16.msra.mxu0 %v902
    %1149 = vmatpush.bf16.msra.mxu0 %v898
    %1150 = vmatpush.bf16.msra.mxu0 %v894
    %1151 = vmatpush.bf16.msra.mxu0 %v890
    %1152 = vmatpush.bf16.msra.mxu0 %v886
    %1153 = vmatpush.bf16.msra.mxu0 %v882
    %1154 = vmatpush.bf16.msra.mxu0 %v878
    %1155 = vmatmul.bf16.gmra.mxu0 %v289
    %v1156 = vpop.f32.mrf.mxu0
    %v1157 = vadd.f32 %v1144, %v1156
    %v1158 = vpop.f32.mrf.mxu0
    %1159 = vdwg.mxu0
    %1160 = vmatpush.bf16.msra.mxu0 %v938
    %1161 = vmatpush.bf16.msra.mxu0 %v934
    %1162 = vmatpush.bf16.msra.mxu0 %v930
    %1163 = vmatpush.bf16.msra.mxu0 %v926
    %1164 = vmatpush.bf16.msra.mxu0 %v922
    %1165 = vmatpush.bf16.msra.mxu0 %v918
    %1166 = vmatpush.bf16.msra.mxu0 %v914
    %1167 = vmatpush.bf16.msra.mxu0 %v910
    %1168 = vmatmul.bf16.gmra.mxu0 %v290
    %v1169 = vpop.f32.mrf.mxu0
    %v1170 = vadd.f32 %v1157, %v1169
    %v1171 = vpop.f32.mrf.mxu0
    %1172 = vdwg.mxu0
    %1173 = vmatpush.bf16.msra.mxu0 %v843
    %1174 = vmatpush.bf16.msra.mxu0 %v839
    %1175 = vmatpush.bf16.msra.mxu0 %v835
    %1176 = vmatpush.bf16.msra.mxu0 %v831
    %1177 = vmatpush.bf16.msra.mxu0 %v827
    %1178 = vmatpush.bf16.msra.mxu0 %v823
    %1179 = vmatpush.bf16.msra.mxu0 %v819
    %1180 = vmatpush.bf16.msra.mxu0 %v815
    %1181 = vmatmul.bf16.gmra.mxu0 %v287
    %v1182 = vpop.f32.mrf.mxu0
    %v1183 = vadd.f32 %v423, %v1182
    %v1184 = vpop.f32.mrf.mxu0
    %1185 = vdwg.mxu0
    %1186 = vmatpush.bf16.msra.mxu0 %v875
    %1187 = vmatpush.bf16.msra.mxu0 %v871
    %1188 = vmatpush.bf16.msra.mxu0 %v867
    %1189 = vmatpush.bf16.msra.mxu0 %v863
    %1190 = vmatpush.bf16.msra.mxu0 %v859
    %1191 = vmatpush.bf16.msra.mxu0 %v855
    %1192 = vmatpush.bf16.msra.mxu0 %v851
    %1193 = vmatpush.bf16.msra.mxu0 %v847
    %1194 = vmatmul.bf16.gmra.mxu0 %v288
    %v1195 = vpop.f32.mrf.mxu0
    %v1196 = vadd.f32 %v1183, %v1195
    %v1197 = vpop.f32.mrf.mxu0
    %1198 = vdwg.mxu0
    %1199 = vmatpush.bf16.msra.mxu0 %v907
    %1200 = vmatpush.bf16.msra.mxu0 %v903
    %1201 = vmatpush.bf16.msra.mxu0 %v899
    %1202 = vmatpush.bf16.msra.mxu0 %v895
    %1203 = vmatpush.bf16.msra.mxu0 %v891
    %1204 = vmatpush.bf16.msra.mxu0 %v887
    %1205 = vmatpush.bf16.msra.mxu0 %v883
    %1206 = vmatpush.bf16.msra.mxu0 %v879
    %1207 = vmatmul.bf16.gmra.mxu0 %v289
    %v1208 = vpop.f32.mrf.mxu0
    %v1209 = vadd.f32 %v1196, %v1208
    %v1210 = vpop.f32.mrf.mxu0
    %1211 = vdwg.mxu0
    %1212 = vmatpush.bf16.msra.mxu0 %v939
    %1213 = vmatpush.bf16.msra.mxu0 %v935
    %1214 = vmatpush.bf16.msra.mxu0 %v931
    %1215 = vmatpush.bf16.msra.mxu0 %v927
    %1216 = vmatpush.bf16.msra.mxu0 %v923
    %1217 = vmatpush.bf16.msra.mxu0 %v919
    %1218 = vmatpush.bf16.msra.mxu0 %v915
    %1219 = vmatpush.bf16.msra.mxu0 %v911
    %1220 = vmatmul.bf16.gmra.mxu0 %v290
    %v1221 = vpop.f32.mrf.mxu0
    %v1222 = vadd.f32 %v1209, %v1221
    %v1223 = vpop.f32.mrf.mxu0
    %1224 = vdwg.mxu0
    %1225 = vmatpush.bf16.msra.mxu0 %v844
    %1226 = vmatpush.bf16.msra.mxu0 %v840
    %1227 = vmatpush.bf16.msra.mxu0 %v836
    %1228 = vmatpush.bf16.msra.mxu0 %v832
    %1229 = vmatpush.bf16.msra.mxu0 %v828
    %1230 = vmatpush.bf16.msra.mxu0 %v824
    %1231 = vmatpush.bf16.msra.mxu0 %v820
    %1232 = vmatpush.bf16.msra.mxu0 %v816
    %1233 = vmatmul.bf16.gmra.mxu0 %v287
    %v1234 = vpop.f32.mrf.mxu0
    %v1235 = vadd.f32 %v424, %v1234
    %v1236 = vpop.f32.mrf.mxu0
    %1237 = vdwg.mxu0
    %1238 = vmatpush.bf16.msra.mxu0 %v876
    %1239 = vmatpush.bf16.msra.mxu0 %v872
    %1240 = vmatpush.bf16.msra.mxu0 %v868
    %1241 = vmatpush.bf16.msra.mxu0 %v864
    %1242 = vmatpush.bf16.msra.mxu0 %v860
    %1243 = vmatpush.bf16.msra.mxu0 %v856
    %1244 = vmatpush.bf16.msra.mxu0 %v852
    %1245 = vmatpush.bf16.msra.mxu0 %v848
    %1246 = vmatmul.bf16.gmra.mxu0 %v288
    %v1247 = vpop.f32.mrf.mxu0
    %v1248 = vadd.f32 %v1235, %v1247
    %v1249 = vpop.f32.mrf.mxu0
    %1250 = vdwg.mxu0
    %1251 = vmatpush.bf16.msra.mxu0 %v908
    %1252 = vmatpush.bf16.msra.mxu0 %v904
    %1253 = vmatpush.bf16.msra.mxu0 %v900
    %1254 = vmatpush.bf16.msra.mxu0 %v896
    %1255 = vmatpush.bf16.msra.mxu0 %v892
    %1256 = vmatpush.bf16.msra.mxu0 %v888
    %1257 = vmatpush.bf16.msra.mxu0 %v884
    %1258 = vmatpush.bf16.msra.mxu0 %v880
    %1259 = vmatmul.bf16.gmra.mxu0 %v289
    %v1260 = vpop.f32.mrf.mxu0
    %v1261 = vadd.f32 %v1248, %v1260
    %v1262 = vpop.f32.mrf.mxu0
    %1263 = vdwg.mxu0
    %1264 = vmatpush.bf16.msra.mxu0 %v940
    %1265 = vmatpush.bf16.msra.mxu0 %v936
    %1266 = vmatpush.bf16.msra.mxu0 %v932
    %1267 = vmatpush.bf16.msra.mxu0 %v928
    %1268 = vmatpush.bf16.msra.mxu0 %v924
    %1269 = vmatpush.bf16.msra.mxu0 %v920
    %1270 = vmatpush.bf16.msra.mxu0 %v916
    %1271 = vmatpush.bf16.msra.mxu0 %v912
    %1272 = vmatmul.bf16.gmra.mxu0 %v290
    %v1273 = vpop.f32.mrf.mxu0
    %v1274 = vadd.f32 %v1261, %v1273
    %v1275 = vpop.f32.mrf.mxu0
    %1276 = vdwg.mxu0
    %v1277 = vmax.f32 %v1118, 0.0
    %v1278 = vmax.f32 %v1170, 0.0
    %v1279 = vmax.f32 %v1222, 0.0
    %v1280 = vmax.f32 %v1274, 0.0
    %v1281 = vpack.c.bf16 %v1277, %v1277
    %v1282 = vpack.c.bf16 %v1278, %v1278
    %v1283 = vpack.c.bf16 %v1279, %v1279
    %v1284 = vpack.c.bf16 %v1280, %v1280
    %s1285 = scalar_lea.vmem [#allocation7], 1024
    %v1286 = vld [vmem:[%s1285] sm:$0xff]
    %v1287 = vld [vmem:[%s1285 + $0x8] sm:$0xff]
    %v1288 = vld [vmem:[%s1285 + $0x10] sm:$0xff]
    %v1289 = vld [vmem:[%s1285 + $0x18] sm:$0xff]
    %v1290 = vld [vmem:[%s1285 + $0x20] sm:$0xff]
    %v1291 = vld [vmem:[%s1285 + $0x28] sm:$0xff]
    %v1292 = vld [vmem:[%s1285 + $0x30] sm:$0xff]
    %v1293 = vld [vmem:[%s1285 + $0x38] sm:$0xff]
    %v1294 = vld [vmem:[%s1285 + $0x40] sm:$0xff]
    %v1295 = vld [vmem:[%s1285 + $0x48] sm:$0xff]
    %v1296 = vld [vmem:[%s1285 + $0x50] sm:$0xff]
    %v1297 = vld [vmem:[%s1285 + $0x58] sm:$0xff]
    %v1298 = vld [vmem:[%s1285 + $0x60] sm:$0xff]
    %v1299 = vld [vmem:[%s1285 + $0x68] sm:$0xff]
    %v1300 = vld [vmem:[%s1285 + $0x70] sm:$0xff]
    %v1301 = vld [vmem:[%s1285 + $0x78] sm:$0xff]
    %v1302 = vld [vmem:[%s1285 + $0x80] sm:$0xff]
    %v1303 = vld [vmem:[%s1285 + $0x88] sm:$0xff]
    %v1304 = vld [vmem:[%s1285 + $0x90] sm:$0xff]
    %v1305 = vld [vmem:[%s1285 + $0x98] sm:$0xff]
    %v1306 = vld [vmem:[%s1285 + $0xa0] sm:$0xff]
    %v1307 = vld [vmem:[%s1285 + $0xa8] sm:$0xff]
    %v1308 = vld [vmem:[%s1285 + $0xb0] sm:$0xff]
    %v1309 = vld [vmem:[%s1285 + $0xb8] sm:$0xff]
    %v1310 = vld [vmem:[%s1285 + $0xc0] sm:$0xff]
    %v1311 = vld [vmem:[%s1285 + $0xc8] sm:$0xff]
    %v1312 = vld [vmem:[%s1285 + $0xd0] sm:$0xff]
    %v1313 = vld [vmem:[%s1285 + $0xd8] sm:$0xff]
    %v1314 = vld [vmem:[%s1285 + $0xe0] sm:$0xff]
    %v1315 = vld [vmem:[%s1285 + $0xe8] sm:$0xff]
    %v1316 = vld [vmem:[%s1285 + $0xf0] sm:$0xff]
    %v1317 = vld [vmem:[%s1285 + $0xf8] sm:$0xff]
    %v1318 = vld [vmem:[%s1285 + $0x100] sm:$0xff]
    %v1319 = vld [vmem:[%s1285 + $0x108] sm:$0xff]
    %v1320 = vld [vmem:[%s1285 + $0x110] sm:$0xff]
    %v1321 = vld [vmem:[%s1285 + $0x118] sm:$0xff]
    %v1322 = vld [vmem:[%s1285 + $0x120] sm:$0xff]
    %v1323 = vld [vmem:[%s1285 + $0x128] sm:$0xff]
    %v1324 = vld [vmem:[%s1285 + $0x130] sm:$0xff]
    %v1325 = vld [vmem:[%s1285 + $0x138] sm:$0xff]
    %v1326 = vld [vmem:[%s1285 + $0x140] sm:$0xff]
    %v1327 = vld [vmem:[%s1285 + $0x148] sm:$0xff]
    %v1328 = vld [vmem:[%s1285 + $0x150] sm:$0xff]
    %v1329 = vld [vmem:[%s1285 + $0x158] sm:$0xff]
    %v1330 = vld [vmem:[%s1285 + $0x160] sm:$0xff]
    %v1331 = vld [vmem:[%s1285 + $0x168] sm:$0xff]
    %v1332 = vld [vmem:[%s1285 + $0x170] sm:$0xff]
    %v1333 = vld [vmem:[%s1285 + $0x178] sm:$0xff]
    %v1334 = vld [vmem:[%s1285 + $0x180] sm:$0xff]
    %v1335 = vld [vmem:[%s1285 + $0x188] sm:$0xff]
    %v1336 = vld [vmem:[%s1285 + $0x190] sm:$0xff]
    %v1337 = vld [vmem:[%s1285 + $0x198] sm:$0xff]
    %v1338 = vld [vmem:[%s1285 + $0x1a0] sm:$0xff]
    %v1339 = vld [vmem:[%s1285 + $0x1a8] sm:$0xff]
    %v1340 = vld [vmem:[%s1285 + $0x1b0] sm:$0xff]
    %v1341 = vld [vmem:[%s1285 + $0x1b8] sm:$0xff]
    %v1342 = vld [vmem:[%s1285 + $0x1c0] sm:$0xff]
    %v1343 = vld [vmem:[%s1285 + $0x1c8] sm:$0xff]
    %v1344 = vld [vmem:[%s1285 + $0x1d0] sm:$0xff]
    %v1345 = vld [vmem:[%s1285 + $0x1d8] sm:$0xff]
    %v1346 = vld [vmem:[%s1285 + $0x1e0] sm:$0xff]
    %v1347 = vld [vmem:[%s1285 + $0x1e8] sm:$0xff]
    %v1348 = vld [vmem:[%s1285 + $0x1f0] sm:$0xff]
    %v1349 = vld [vmem:[%s1285 + $0x1f8] sm:$0xff]
    %v1350 = vld [vmem:[%s1285 + $0x200] sm:$0xff]
    %v1351 = vld [vmem:[%s1285 + $0x208] sm:$0xff]
    %v1352 = vld [vmem:[%s1285 + $0x210] sm:$0xff]
    %v1353 = vld [vmem:[%s1285 + $0x218] sm:$0xff]
    %v1354 = vld [vmem:[%s1285 + $0x220] sm:$0xff]
    %v1355 = vld [vmem:[%s1285 + $0x228] sm:$0xff]
    %v1356 = vld [vmem:[%s1285 + $0x230] sm:$0xff]
    %v1357 = vld [vmem:[%s1285 + $0x238] sm:$0xff]
    %v1358 = vld [vmem:[%s1285 + $0x240] sm:$0xff]
    %v1359 = vld [vmem:[%s1285 + $0x248] sm:$0xff]
    %v1360 = vld [vmem:[%s1285 + $0x250] sm:$0xff]
    %v1361 = vld [vmem:[%s1285 + $0x258] sm:$0xff]
    %v1362 = vld [vmem:[%s1285 + $0x260] sm:$0xff]
    %v1363 = vld [vmem:[%s1285 + $0x268] sm:$0xff]
    %v1364 = vld [vmem:[%s1285 + $0x270] sm:$0xff]
    %v1365 = vld [vmem:[%s1285 + $0x278] sm:$0xff]
    %v1366 = vld [vmem:[%s1285 + $0x280] sm:$0xff]
    %v1367 = vld [vmem:[%s1285 + $0x288] sm:$0xff]
    %v1368 = vld [vmem:[%s1285 + $0x290] sm:$0xff]
    %v1369 = vld [vmem:[%s1285 + $0x298] sm:$0xff]
    %v1370 = vld [vmem:[%s1285 + $0x2a0] sm:$0xff]
    %v1371 = vld [vmem:[%s1285 + $0x2a8] sm:$0xff]
    %v1372 = vld [vmem:[%s1285 + $0x2b0] sm:$0xff]
    %v1373 = vld [vmem:[%s1285 + $0x2b8] sm:$0xff]
    %v1374 = vld [vmem:[%s1285 + $0x2c0] sm:$0xff]
    %v1375 = vld [vmem:[%s1285 + $0x2c8] sm:$0xff]
    %v1376 = vld [vmem:[%s1285 + $0x2d0] sm:$0xff]
    %v1377 = vld [vmem:[%s1285 + $0x2d8] sm:$0xff]
    %v1378 = vld [vmem:[%s1285 + $0x2e0] sm:$0xff]
    %v1379 = vld [vmem:[%s1285 + $0x2e8] sm:$0xff]
    %v1380 = vld [vmem:[%s1285 + $0x2f0] sm:$0xff]
    %v1381 = vld [vmem:[%s1285 + $0x2f8] sm:$0xff]
    %v1382 = vld [vmem:[%s1285 + $0x300] sm:$0xff]
    %v1383 = vld [vmem:[%s1285 + $0x308] sm:$0xff]
    %v1384 = vld [vmem:[%s1285 + $0x310] sm:$0xff]
    %v1385 = vld [vmem:[%s1285 + $0x318] sm:$0xff]
    %v1386 = vld [vmem:[%s1285 + $0x320] sm:$0xff]
    %v1387 = vld [vmem:[%s1285 + $0x328] sm:$0xff]
    %v1388 = vld [vmem:[%s1285 + $0x330] sm:$0xff]
    %v1389 = vld [vmem:[%s1285 + $0x338] sm:$0xff]
    %v1390 = vld [vmem:[%s1285 + $0x340] sm:$0xff]
    %v1391 = vld [vmem:[%s1285 + $0x348] sm:$0xff]
    %v1392 = vld [vmem:[%s1285 + $0x350] sm:$0xff]
    %v1393 = vld [vmem:[%s1285 + $0x358] sm:$0xff]
    %v1394 = vld [vmem:[%s1285 + $0x360] sm:$0xff]
    %v1395 = vld [vmem:[%s1285 + $0x368] sm:$0xff]
    %v1396 = vld [vmem:[%s1285 + $0x370] sm:$0xff]
    %v1397 = vld [vmem:[%s1285 + $0x378] sm:$0xff]
    %v1398 = vld [vmem:[%s1285 + $0x380] sm:$0xff]
    %v1399 = vld [vmem:[%s1285 + $0x388] sm:$0xff]
    %v1400 = vld [vmem:[%s1285 + $0x390] sm:$0xff]
    %v1401 = vld [vmem:[%s1285 + $0x398] sm:$0xff]
    %v1402 = vld [vmem:[%s1285 + $0x3a0] sm:$0xff]
    %v1403 = vld [vmem:[%s1285 + $0x3a8] sm:$0xff]
    %v1404 = vld [vmem:[%s1285 + $0x3b0] sm:$0xff]
    %v1405 = vld [vmem:[%s1285 + $0x3b8] sm:$0xff]
    %v1406 = vld [vmem:[%s1285 + $0x3c0] sm:$0xff]
    %v1407 = vld [vmem:[%s1285 + $0x3c8] sm:$0xff]
    %v1408 = vld [vmem:[%s1285 + $0x3d0] sm:$0xff]
    %v1409 = vld [vmem:[%s1285 + $0x3d8] sm:$0xff]
    %v1410 = vld [vmem:[%s1285 + $0x3e0] sm:$0xff]
    %v1411 = vld [vmem:[%s1285 + $0x3e8] sm:$0xff]
    %v1412 = vld [vmem:[%s1285 + $0x3f0] sm:$0xff]
    %v1413 = vld [vmem:[%s1285 + $0x3f8] sm:$0xff]
    %s1414 = scalar_lea.vmem [#allocation8], 4
    %v1415 = vld [vmem:[%s1414] sm:$0xf]
    %v1417 = vperm.slane %v1415, 0
    %v1418 = vperm.slane %v1415, 1
    %v1419 = vperm.slane %v1415, 2
    %v1420 = vperm.slane %v1415, 3
    %v1553 = vunpack.c.l.b16 %v1286
    %v1554 = vunpack.c.h.b16 %v1286
    %v1555 = vunpack.c.l.b16 %v1287
    %v1556 = vunpack.c.h.b16 %v1287
    %v1557 = vunpack.c.l.b16 %v1288
    %v1558 = vunpack.c.h.b16 %v1288
    %v1559 = vunpack.c.l.b16 %v1289
    %v1560 = vunpack.c.h.b16 %v1289
    %v1561 = vunpack.c.l.b16 %v1290
    %v1562 = vunpack.c.h.b16 %v1290
    %v1563 = vunpack.c.l.b16 %v1291
    %v1564 = vunpack.c.h.b16 %v1291
    %v1565 = vunpack.c.l.b16 %v1292
    %v1566 = vunpack.c.h.b16 %v1292
    %v1567 = vunpack.c.l.b16 %v1293
    %v1568 = vunpack.c.h.b16 %v1293
    %v1569 = vunpack.c.l.b16 %v1294
    %v1570 = vunpack.c.h.b16 %v1294
    %v1571 = vunpack.c.l.b16 %v1295
    %v1572 = vunpack.c.h.b16 %v1295
    %v1573 = vunpack.c.l.b16 %v1296
    %v1574 = vunpack.c.h.b16 %v1296
    %v1575 = vunpack.c.l.b16 %v1297
    %v1576 = vunpack.c.h.b16 %v1297
    %v1577 = vunpack.c.l.b16 %v1298
    %v1578 = vunpack.c.h.b16 %v1298
    %v1579 = vunpack.c.l.b16 %v1299
    %v1580 = vunpack.c.h.b16 %v1299
    %v1581 = vunpack.c.l.b16 %v1300
    %v1582 = vunpack.c.h.b16 %v1300
    %v1583 = vunpack.c.l.b16 %v1301
    %v1584 = vunpack.c.h.b16 %v1301
    %v1585 = vunpack.c.l.b16 %v1302
    %v1586 = vunpack.c.h.b16 %v1302
    %v1587 = vunpack.c.l.b16 %v1303
    %v1588 = vunpack.c.h.b16 %v1303
    %v1589 = vunpack.c.l.b16 %v1304
    %v1590 = vunpack.c.h.b16 %v1304
    %v1591 = vunpack.c.l.b16 %v1305
    %v1592 = vunpack.c.h.b16 %v1305
    %v1593 = vunpack.c.l.b16 %v1306
    %v1594 = vunpack.c.h.b16 %v1306
    %v1595 = vunpack.c.l.b16 %v1307
    %v1596 = vunpack.c.h.b16 %v1307
    %v1597 = vunpack.c.l.b16 %v1308
    %v1598 = vunpack.c.h.b16 %v1308
    %v1599 = vunpack.c.l.b16 %v1309
    %v1600 = vunpack.c.h.b16 %v1309
    %v1601 = vunpack.c.l.b16 %v1310
    %v1602 = vunpack.c.h.b16 %v1310
    %v1603 = vunpack.c.l.b16 %v1311
    %v1604 = vunpack.c.h.b16 %v1311
    %v1605 = vunpack.c.l.b16 %v1312
    %v1606 = vunpack.c.h.b16 %v1312
    %v1607 = vunpack.c.l.b16 %v1313
    %v1608 = vunpack.c.h.b16 %v1313
    %v1609 = vunpack.c.l.b16 %v1314
    %v1610 = vunpack.c.h.b16 %v1314
    %v1611 = vunpack.c.l.b16 %v1315
    %v1612 = vunpack.c.h.b16 %v1315
    %v1613 = vunpack.c.l.b16 %v1316
    %v1614 = vunpack.c.h.b16 %v1316
    %v1615 = vunpack.c.l.b16 %v1317
    %v1616 = vunpack.c.h.b16 %v1317
    %v1617 = vunpack.c.l.b16 %v1318
    %v1618 = vunpack.c.h.b16 %v1318
    %v1619 = vunpack.c.l.b16 %v1319
    %v1620 = vunpack.c.h.b16 %v1319
    %v1621 = vunpack.c.l.b16 %v1320
    %v1622 = vunpack.c.h.b16 %v1320
    %v1623 = vunpack.c.l.b16 %v1321
    %v1624 = vunpack.c.h.b16 %v1321
    %v1625 = vunpack.c.l.b16 %v1322
    %v1626 = vunpack.c.h.b16 %v1322
    %v1627 = vunpack.c.l.b16 %v1323
    %v1628 = vunpack.c.h.b16 %v1323
    %v1629 = vunpack.c.l.b16 %v1324
    %v1630 = vunpack.c.h.b16 %v1324
    %v1631 = vunpack.c.l.b16 %v1325
    %v1632 = vunpack.c.h.b16 %v1325
    %v1633 = vunpack.c.l.b16 %v1326
    %v1634 = vunpack.c.h.b16 %v1326
    %v1635 = vunpack.c.l.b16 %v1327
    %v1636 = vunpack.c.h.b16 %v1327
    %v1637 = vunpack.c.l.b16 %v1328
    %v1638 = vunpack.c.h.b16 %v1328
    %v1639 = vunpack.c.l.b16 %v1329
    %v1640 = vunpack.c.h.b16 %v1329
    %v1641 = vunpack.c.l.b16 %v1330
    %v1642 = vunpack.c.h.b16 %v1330
    %v1643 = vunpack.c.l.b16 %v1331
    %v1644 = vunpack.c.h.b16 %v1331
    %v1645 = vunpack.c.l.b16 %v1332
    %v1646 = vunpack.c.h.b16 %v1332
    %v1647 = vunpack.c.l.b16 %v1333
    %v1648 = vunpack.c.h.b16 %v1333
    %v1649 = vunpack.c.l.b16 %v1334
    %v1650 = vunpack.c.h.b16 %v1334
    %v1651 = vunpack.c.l.b16 %v1335
    %v1652 = vunpack.c.h.b16 %v1335
    %v1653 = vunpack.c.l.b16 %v1336
    %v1654 = vunpack.c.h.b16 %v1336
    %v1655 = vunpack.c.l.b16 %v1337
    %v1656 = vunpack.c.h.b16 %v1337
    %v1657 = vunpack.c.l.b16 %v1338
    %v1658 = vunpack.c.h.b16 %v1338
    %v1659 = vunpack.c.l.b16 %v1339
    %v1660 = vunpack.c.h.b16 %v1339
    %v1661 = vunpack.c.l.b16 %v1340
    %v1662 = vunpack.c.h.b16 %v1340
    %v1663 = vunpack.c.l.b16 %v1341
    %v1664 = vunpack.c.h.b16 %v1341
    %v1665 = vunpack.c.l.b16 %v1342
    %v1666 = vunpack.c.h.b16 %v1342
    %v1667 = vunpack.c.l.b16 %v1343
    %v1668 = vunpack.c.h.b16 %v1343
    %v1669 = vunpack.c.l.b16 %v1344
    %v1670 = vunpack.c.h.b16 %v1344
    %v1671 = vunpack.c.l.b16 %v1345
    %v1672 = vunpack.c.h.b16 %v1345
    %v1673 = vunpack.c.l.b16 %v1346
    %v1674 = vunpack.c.h.b16 %v1346
    %v1675 = vunpack.c.l.b16 %v1347
    %v1676 = vunpack.c.h.b16 %v1347
    %v1677 = vunpack.c.l.b16 %v1348
    %v1678 = vunpack.c.h.b16 %v1348
    %v1679 = vunpack.c.l.b16 %v1349
    %v1680 = vunpack.c.h.b16 %v1349
    %v1681 = vunpack.c.l.b16 %v1350
    %v1682 = vunpack.c.h.b16 %v1350
    %v1683 = vunpack.c.l.b16 %v1351
    %v1684 = vunpack.c.h.b16 %v1351
    %v1685 = vunpack.c.l.b16 %v1352
    %v1686 = vunpack.c.h.b16 %v1352
    %v1687 = vunpack.c.l.b16 %v1353
    %v1688 = vunpack.c.h.b16 %v1353
    %v1689 = vunpack.c.l.b16 %v1354
    %v1690 = vunpack.c.h.b16 %v1354
    %v1691 = vunpack.c.l.b16 %v1355
    %v1692 = vunpack.c.h.b16 %v1355
    %v1693 = vunpack.c.l.b16 %v1356
    %v1694 = vunpack.c.h.b16 %v1356
    %v1695 = vunpack.c.l.b16 %v1357
    %v1696 = vunpack.c.h.b16 %v1357
    %v1697 = vunpack.c.l.b16 %v1358
    %v1698 = vunpack.c.h.b16 %v1358
    %v1699 = vunpack.c.l.b16 %v1359
    %v1700 = vunpack.c.h.b16 %v1359
    %v1701 = vunpack.c.l.b16 %v1360
    %v1702 = vunpack.c.h.b16 %v1360
    %v1703 = vunpack.c.l.b16 %v1361
    %v1704 = vunpack.c.h.b16 %v1361
    %v1705 = vunpack.c.l.b16 %v1362
    %v1706 = vunpack.c.h.b16 %v1362
    %v1707 = vunpack.c.l.b16 %v1363
    %v1708 = vunpack.c.h.b16 %v1363
    %v1709 = vunpack.c.l.b16 %v1364
    %v1710 = vunpack.c.h.b16 %v1364
    %v1711 = vunpack.c.l.b16 %v1365
    %v1712 = vunpack.c.h.b16 %v1365
    %v1713 = vunpack.c.l.b16 %v1366
    %v1714 = vunpack.c.h.b16 %v1366
    %v1715 = vunpack.c.l.b16 %v1367
    %v1716 = vunpack.c.h.b16 %v1367
    %v1717 = vunpack.c.l.b16 %v1368
    %v1718 = vunpack.c.h.b16 %v1368
    %v1719 = vunpack.c.l.b16 %v1369
    %v1720 = vunpack.c.h.b16 %v1369
    %v1721 = vunpack.c.l.b16 %v1370
    %v1722 = vunpack.c.h.b16 %v1370
    %v1723 = vunpack.c.l.b16 %v1371
    %v1724 = vunpack.c.h.b16 %v1371
    %v1725 = vunpack.c.l.b16 %v1372
    %v1726 = vunpack.c.h.b16 %v1372
    %v1727 = vunpack.c.l.b16 %v1373
    %v1728 = vunpack.c.h.b16 %v1373
    %v1729 = vunpack.c.l.b16 %v1374
    %v1730 = vunpack.c.h.b16 %v1374
    %v1731 = vunpack.c.l.b16 %v1375
    %v1732 = vunpack.c.h.b16 %v1375
    %v1733 = vunpack.c.l.b16 %v1376
    %v1734 = vunpack.c.h.b16 %v1376
    %v1735 = vunpack.c.l.b16 %v1377
    %v1736 = vunpack.c.h.b16 %v1377
    %v1737 = vunpack.c.l.b16 %v1378
    %v1738 = vunpack.c.h.b16 %v1378
    %v1739 = vunpack.c.l.b16 %v1379
    %v1740 = vunpack.c.h.b16 %v1379
    %v1741 = vunpack.c.l.b16 %v1380
    %v1742 = vunpack.c.h.b16 %v1380
    %v1743 = vunpack.c.l.b16 %v1381
    %v1744 = vunpack.c.h.b16 %v1381
    %v1745 = vunpack.c.l.b16 %v1382
    %v1746 = vunpack.c.h.b16 %v1382
    %v1747 = vunpack.c.l.b16 %v1383
    %v1748 = vunpack.c.h.b16 %v1383
    %v1749 = vunpack.c.l.b16 %v1384
    %v1750 = vunpack.c.h.b16 %v1384
    %v1751 = vunpack.c.l.b16 %v1385
    %v1752 = vunpack.c.h.b16 %v1385
    %v1753 = vunpack.c.l.b16 %v1386
    %v1754 = vunpack.c.h.b16 %v1386
    %v1755 = vunpack.c.l.b16 %v1387
    %v1756 = vunpack.c.h.b16 %v1387
    %v1757 = vunpack.c.l.b16 %v1388
    %v1758 = vunpack.c.h.b16 %v1388
    %v1759 = vunpack.c.l.b16 %v1389
    %v1760 = vunpack.c.h.b16 %v1389
    %v1761 = vunpack.c.l.b16 %v1390
    %v1762 = vunpack.c.h.b16 %v1390
    %v1763 = vunpack.c.l.b16 %v1391
    %v1764 = vunpack.c.h.b16 %v1391
    %v1765 = vunpack.c.l.b16 %v1392
    %v1766 = vunpack.c.h.b16 %v1392
    %v1767 = vunpack.c.l.b16 %v1393
    %v1768 = vunpack.c.h.b16 %v1393
    %v1769 = vunpack.c.l.b16 %v1394
    %v1770 = vunpack.c.h.b16 %v1394
    %v1771 = vunpack.c.l.b16 %v1395
    %v1772 = vunpack.c.h.b16 %v1395
    %v1773 = vunpack.c.l.b16 %v1396
    %v1774 = vunpack.c.h.b16 %v1396
    %v1775 = vunpack.c.l.b16 %v1397
    %v1776 = vunpack.c.h.b16 %v1397
    %v1777 = vunpack.c.l.b16 %v1398
    %v1778 = vunpack.c.h.b16 %v1398
    %v1779 = vunpack.c.l.b16 %v1399
    %v1780 = vunpack.c.h.b16 %v1399
    %v1781 = vunpack.c.l.b16 %v1400
    %v1782 = vunpack.c.h.b16 %v1400
    %v1783 = vunpack.c.l.b16 %v1401
    %v1784 = vunpack.c.h.b16 %v1401
    %v1785 = vunpack.c.l.b16 %v1402
    %v1786 = vunpack.c.h.b16 %v1402
    %v1787 = vunpack.c.l.b16 %v1403
    %v1788 = vunpack.c.h.b16 %v1403
    %v1789 = vunpack.c.l.b16 %v1404
    %v1790 = vunpack.c.h.b16 %v1404
    %v1791 = vunpack.c.l.b16 %v1405
    %v1792 = vunpack.c.h.b16 %v1405
    %v1793 = vunpack.c.l.b16 %v1406
    %v1794 = vunpack.c.h.b16 %v1406
    %v1795 = vunpack.c.l.b16 %v1407
    %v1796 = vunpack.c.h.b16 %v1407
    %v1797 = vunpack.c.l.b16 %v1408
    %v1798 = vunpack.c.h.b16 %v1408
    %v1799 = vunpack.c.l.b16 %v1409
    %v1800 = vunpack.c.h.b16 %v1409
    %v1801 = vunpack.c.l.b16 %v1410
    %v1802 = vunpack.c.h.b16 %v1410
    %v1803 = vunpack.c.l.b16 %v1411
    %v1804 = vunpack.c.h.b16 %v1411
    %v1805 = vunpack.c.l.b16 %v1412
    %v1806 = vunpack.c.h.b16 %v1412
    %v1807 = vunpack.c.l.b16 %v1413
    %v1808 = vunpack.c.h.b16 %v1413
    %v1809 = vpack.c.b16 %v1557, %v1553
    %v1810 = vpack.c.b16 %v1558, %v1554
    %v1811 = vpack.c.b16 %v1559, %v1555
    %v1812 = vpack.c.b16 %v1560, %v1556
    %v1813 = vpack.c.b16 %v1565, %v1561
    %v1814 = vpack.c.b16 %v1566, %v1562
    %v1815 = vpack.c.b16 %v1567, %v1563
    %v1816 = vpack.c.b16 %v1568, %v1564
    %v1817 = vpack.c.b16 %v1573, %v1569
    %v1818 = vpack.c.b16 %v1574, %v1570
    %v1819 = vpack.c.b16 %v1575, %v1571
    %v1820 = vpack.c.b16 %v1576, %v1572
    %v1821 = vpack.c.b16 %v1581, %v1577
    %v1822 = vpack.c.b16 %v1582, %v1578
    %v1823 = vpack.c.b16 %v1583, %v1579
    %v1824 = vpack.c.b16 %v1584, %v1580
    %v1825 = vpack.c.b16 %v1589, %v1585
    %v1826 = vpack.c.b16 %v1590, %v1586
    %v1827 = vpack.c.b16 %v1591, %v1587
    %v1828 = vpack.c.b16 %v1592, %v1588
    %v1829 = vpack.c.b16 %v1597, %v1593
    %v1830 = vpack.c.b16 %v1598, %v1594
    %v1831 = vpack.c.b16 %v1599, %v1595
    %v1832 = vpack.c.b16 %v1600, %v1596
    %v1833 = vpack.c.b16 %v1605, %v1601
    %v1834 = vpack.c.b16 %v1606, %v1602
    %v1835 = vpack.c.b16 %v1607, %v1603
    %v1836 = vpack.c.b16 %v1608, %v1604
    %v1837 = vpack.c.b16 %v1613, %v1609
    %v1838 = vpack.c.b16 %v1614, %v1610
    %v1839 = vpack.c.b16 %v1615, %v1611
    %v1840 = vpack.c.b16 %v1616, %v1612
    %v1841 = vpack.c.b16 %v1621, %v1617
    %v1842 = vpack.c.b16 %v1622, %v1618
    %v1843 = vpack.c.b16 %v1623, %v1619
    %v1844 = vpack.c.b16 %v1624, %v1620
    %v1845 = vpack.c.b16 %v1629, %v1625
    %v1846 = vpack.c.b16 %v1630, %v1626
    %v1847 = vpack.c.b16 %v1631, %v1627
    %v1848 = vpack.c.b16 %v1632, %v1628
    %v1849 = vpack.c.b16 %v1637, %v1633
    %v1850 = vpack.c.b16 %v1638, %v1634
    %v1851 = vpack.c.b16 %v1639, %v1635
    %v1852 = vpack.c.b16 %v1640, %v1636
    %v1853 = vpack.c.b16 %v1645, %v1641
    %v1854 = vpack.c.b16 %v1646, %v1642
    %v1855 = vpack.c.b16 %v1647, %v1643
    %v1856 = vpack.c.b16 %v1648, %v1644
    %v1857 = vpack.c.b16 %v1653, %v1649
    %v1858 = vpack.c.b16 %v1654, %v1650
    %v1859 = vpack.c.b16 %v1655, %v1651
    %v1860 = vpack.c.b16 %v1656, %v1652
    %v1861 = vpack.c.b16 %v1661, %v1657
    %v1862 = vpack.c.b16 %v1662, %v1658
    %v1863 = vpack.c.b16 %v1663, %v1659
    %v1864 = vpack.c.b16 %v1664, %v1660
    %v1865 = vpack.c.b16 %v1669, %v1665
    %v1866 = vpack.c.b16 %v1670, %v1666
    %v1867 = vpack.c.b16 %v1671, %v1667
    %v1868 = vpack.c.b16 %v1672, %v1668
    %v1869 = vpack.c.b16 %v1677, %v1673
    %v1870 = vpack.c.b16 %v1678, %v1674
    %v1871 = vpack.c.b16 %v1679, %v1675
    %v1872 = vpack.c.b16 %v1680, %v1676
    %v1873 = vpack.c.b16 %v1685, %v1681
    %v1874 = vpack.c.b16 %v1686, %v1682
    %v1875 = vpack.c.b16 %v1687, %v1683
    %v1876 = vpack.c.b16 %v1688, %v1684
    %v1877 = vpack.c.b16 %v1693, %v1689
    %v1878 = vpack.c.b16 %v1694, %v1690
    %v1879 = vpack.c.b16 %v1695, %v1691
    %v1880 = vpack.c.b16 %v1696, %v1692
    %v1881 = vpack.c.b16 %v1701, %v1697
    %v1882 = vpack.c.b16 %v1702, %v1698
    %v1883 = vpack.c.b16 %v1703, %v1699
    %v1884 = vpack.c.b16 %v1704, %v1700
    %v1885 = vpack.c.b16 %v1709, %v1705
    %v1886 = vpack.c.b16 %v1710, %v1706
    %v1887 = vpack.c.b16 %v1711, %v1707
    %v1888 = vpack.c.b16 %v1712, %v1708
    %v1889 = vpack.c.b16 %v1717, %v1713
    %v1890 = vpack.c.b16 %v1718, %v1714
    %v1891 = vpack.c.b16 %v1719, %v1715
    %v1892 = vpack.c.b16 %v1720, %v1716
    %v1893 = vpack.c.b16 %v1725, %v1721
    %v1894 = vpack.c.b16 %v1726, %v1722
    %v1895 = vpack.c.b16 %v1727, %v1723
    %v1896 = vpack.c.b16 %v1728, %v1724
    %v1897 = vpack.c.b16 %v1733, %v1729
    %v1898 = vpack.c.b16 %v1734, %v1730
    %v1899 = vpack.c.b16 %v1735, %v1731
    %v1900 = vpack.c.b16 %v1736, %v1732
    %v1901 = vpack.c.b16 %v1741, %v1737
    %v1902 = vpack.c.b16 %v1742, %v1738
    %v1903 = vpack.c.b16 %v1743, %v1739
    %v1904 = vpack.c.b16 %v1744, %v1740
    %v1905 = vpack.c.b16 %v1749, %v1745
    %v1906 = vpack.c.b16 %v1750, %v1746
    %v1907 = vpack.c.b16 %v1751, %v1747
    %v1908 = vpack.c.b16 %v1752, %v1748
    %v1909 = vpack.c.b16 %v1757, %v1753
    %v1910 = vpack.c.b16 %v1758, %v1754
    %v1911 = vpack.c.b16 %v1759, %v1755
    %v1912 = vpack.c.b16 %v1760, %v1756
    %v1913 = vpack.c.b16 %v1765, %v1761
    %v1914 = vpack.c.b16 %v1766, %v1762
    %v1915 = vpack.c.b16 %v1767, %v1763
    %v1916 = vpack.c.b16 %v1768, %v1764
    %v1917 = vpack.c.b16 %v1773, %v1769
    %v1918 = vpack.c.b16 %v1774, %v1770
    %v1919 = vpack.c.b16 %v1775, %v1771
    %v1920 = vpack.c.b16 %v1776, %v1772
    %v1921 = vpack.c.b16 %v1781, %v1777
    %v1922 = vpack.c.b16 %v1782, %v1778
    %v1923 = vpack.c.b16 %v1783, %v1779
    %v1924 = vpack.c.b16 %v1784, %v1780
    %v1925 = vpack.c.b16 %v1789, %v1785
    %v1926 = vpack.c.b16 %v1790, %v1786
    %v1927 = vpack.c.b16 %v1791, %v1787
    %v1928 = vpack.c.b16 %v1792, %v1788
    %v1929 = vpack.c.b16 %v1797, %v1793
    %v1930 = vpack.c.b16 %v1798, %v1794
    %v1931 = vpack.c.b16 %v1799, %v1795
    %v1932 = vpack.c.b16 %v1800, %v1796
    %v1933 = vpack.c.b16 %v1805, %v1801
    %v1934 = vpack.c.b16 %v1806, %v1802
    %v1935 = vpack.c.b16 %v1807, %v1803
    %v1936 = vpack.c.b16 %v1808, %v1804
    %2065 = vmatpush.bf16.msra.mxu0 %v1837
    %2066 = vmatpush.bf16.msra.mxu0 %v1833
    %2067 = vmatpush.bf16.msra.mxu0 %v1829
    %2068 = vmatpush.bf16.msra.mxu0 %v1825
    %2069 = vmatpush.bf16.msra.mxu0 %v1821
    %2070 = vmatpush.bf16.msra.mxu0 %v1817
    %2071 = vmatpush.bf16.msra.mxu0 %v1813
    %2072 = vmatpush.bf16.msra.mxu0 %v1809
    %2073 = vmatmul.bf16.gmra.mxu0 %v1281
    %v2074 = vpop.f32.mrf.mxu0
    %v2075 = vadd.f32 %v1417, %v2074
    %v2076 = vpop.f32.mrf.mxu0
    %2077 = vdwg.mxu0
    %2078 = vmatpush.bf16.msra.mxu0 %v1869
    %2079 = vmatpush.bf16.msra.mxu0 %v1865
    %2080 = vmatpush.bf16.msra.mxu0 %v1861
    %2081 = vmatpush.bf16.msra.mxu0 %v1857
    %2082 = vmatpush.bf16.msra.mxu0 %v1853
    %2083 = vmatpush.bf16.msra.mxu0 %v1849
    %2084 = vmatpush.bf16.msra.mxu0 %v1845
    %2085 = vmatpush.bf16.msra.mxu0 %v1841
    %2086 = vmatmul.bf16.gmra.mxu0 %v1282
    %v2087 = vpop.f32.mrf.mxu0
    %v2088 = vadd.f32 %v2075, %v2087
    %v2089 = vpop.f32.mrf.mxu0
    %2090 = vdwg.mxu0
    %2091 = vmatpush.bf16.msra.mxu0 %v1901
    %2092 = vmatpush.bf16.msra.mxu0 %v1897
    %2093 = vmatpush.bf16.msra.mxu0 %v1893
    %2094 = vmatpush.bf16.msra.mxu0 %v1889
    %2095 = vmatpush.bf16.msra.mxu0 %v1885
    %2096 = vmatpush.bf16.msra.mxu0 %v1881
    %2097 = vmatpush.bf16.msra.mxu0 %v1877
    %2098 = vmatpush.bf16.msra.mxu0 %v1873
    %2099 = vmatmul.bf16.gmra.mxu0 %v1283
    %v2100 = vpop.f32.mrf.mxu0
    %v2101 = vadd.f32 %v2088, %v2100
    %v2102 = vpop.f32.mrf.mxu0
    %2103 = vdwg.mxu0
    %2104 = vmatpush.bf16.msra.mxu0 %v1933
    %2105 = vmatpush.bf16.msra.mxu0 %v1929
    %2106 = vmatpush.bf16.msra.mxu0 %v1925
    %2107 = vmatpush.bf16.msra.mxu0 %v1921
    %2108 = vmatpush.bf16.msra.mxu0 %v1917
    %2109 = vmatpush.bf16.msra.mxu0 %v1913
    %2110 = vmatpush.bf16.msra.mxu0 %v1909
    %2111 = vmatpush.bf16.msra.mxu0 %v1905
    %2112 = vmatmul.bf16.gmra.mxu0 %v1284
    %v2113 = vpop.f32.mrf.mxu0
    %v2114 = vadd.f32 %v2101, %v2113
    %v2115 = vpop.f32.mrf.mxu0
    %2116 = vdwg.mxu0
    %2117 = vmatpush.bf16.msra.mxu0 %v1838
    %2118 = vmatpush.bf16.msra.mxu0 %v1834
    %2119 = vmatpush.bf16.msra.mxu0 %v1830
    %2120 = vmatpush.bf16.msra.mxu0 %v1826
    %2121 = vmatpush.bf16.msra.mxu0 %v1822
    %2122 = vmatpush.bf16.msra.mxu0 %v1818
    %2123 = vmatpush.bf16.msra.mxu0 %v1814
    %2124 = vmatpush.bf16.msra.mxu0 %v1810
    %2125 = vmatmul.bf16.gmra.mxu0 %v1281
    %v2126 = vpop.f32.mrf.mxu0
    %v2127 = vadd.f32 %v1418, %v2126
    %v2128 = vpop.f32.mrf.mxu0
    %2129 = vdwg.mxu0
    %2130 = vmatpush.bf16.msra.mxu0 %v1870
    %2131 = vmatpush.bf16.msra.mxu0 %v1866
    %2132 = vmatpush.bf16.msra.mxu0 %v1862
    %2133 = vmatpush.bf16.msra.mxu0 %v1858
    %2134 = vmatpush.bf16.msra.mxu0 %v1854
    %2135 = vmatpush.bf16.msra.mxu0 %v1850
    %2136 = vmatpush.bf16.msra.mxu0 %v1846
    %2137 = vmatpush.bf16.msra.mxu0 %v1842
    %2138 = vmatmul.bf16.gmra.mxu0 %v1282
    %v2139 = vpop.f32.mrf.mxu0
    %v2140 = vadd.f32 %v2127, %v2139
    %v2141 = vpop.f32.mrf.mxu0
    %2142 = vdwg.mxu0
    %2143 = vmatpush.bf16.msra.mxu0 %v1902
    %2144 = vmatpush.bf16.msra.mxu0 %v1898
    %2145 = vmatpush.bf16.msra.mxu0 %v1894
    %2146 = vmatpush.bf16.msra.mxu0 %v1890
    %2147 = vmatpush.bf16.msra.mxu0 %v1886
    %2148 = vmatpush.bf16.msra.mxu0 %v1882
    %2149 = vmatpush.bf16.msra.mxu0 %v1878
    %2150 = vmatpush.bf16.msra.mxu0 %v1874
    %2151 = vmatmul.bf16.gmra.mxu0 %v1283
    %v2152 = vpop.f32.mrf.mxu0
    %v2153 = vadd.f32 %v2140, %v2152
    %v2154 = vpop.f32.mrf.mxu0
    %2155 = vdwg.mxu0
    %2156 = vmatpush.bf16.msra.mxu0 %v1934
    %2157 = vmatpush.bf16.msra.mxu0 %v1930
    %2158 = vmatpush.bf16.msra.mxu0 %v1926
    %2159 = vmatpush.bf16.msra.mxu0 %v1922
    %2160 = vmatpush.bf16.msra.mxu0 %v1918
    %2161 = vmatpush.bf16.msra.mxu0 %v1914
    %2162 = vmatpush.bf16.msra.mxu0 %v1910
    %2163 = vmatpush.bf16.msra.mxu0 %v1906
    %2164 = vmatmul.bf16.gmra.mxu0 %v1284
    %v2165 = vpop.f32.mrf.mxu0
    %v2166 = vadd.f32 %v2153, %v2165
    %v2167 = vpop.f32.mrf.mxu0
    %2168 = vdwg.mxu0
    %2169 = vmatpush.bf16.msra.mxu0 %v1839
    %2170 = vmatpush.bf16.msra.mxu0 %v1835
    %2171 = vmatpush.bf16.msra.mxu0 %v1831
    %2172 = vmatpush.bf16.msra.mxu0 %v1827
    %2173 = vmatpush.bf16.msra.mxu0 %v1823
    %2174 = vmatpush.bf16.msra.mxu0 %v1819
    %2175 = vmatpush.bf16.msra.mxu0 %v1815
    %2176 = vmatpush.bf16.msra.mxu0 %v1811
    %2177 = vmatmul.bf16.gmra.mxu0 %v1281
    %v2178 = vpop.f32.mrf.mxu0
    %v2179 = vadd.f32 %v1419, %v2178
    %v2180 = vpop.f32.mrf.mxu0
    %2181 = vdwg.mxu0
    %2182 = vmatpush.bf16.msra.mxu0 %v1871
    %2183 = vmatpush.bf16.msra.mxu0 %v1867
    %2184 = vmatpush.bf16.msra.mxu0 %v1863
    %2185 = vmatpush.bf16.msra.mxu0 %v1859
    %2186 = vmatpush.bf16.msra.mxu0 %v1855
    %2187 = vmatpush.bf16.msra.mxu0 %v1851
    %2188 = vmatpush.bf16.msra.mxu0 %v1847
    %2189 = vmatpush.bf16.msra.mxu0 %v1843
    %2190 = vmatmul.bf16.gmra.mxu0 %v1282
    %v2191 = vpop.f32.mrf.mxu0
    %v2192 = vadd.f32 %v2179, %v2191
    %v2193 = vpop.f32.mrf.mxu0
    %2194 = vdwg.mxu0
    %2195 = vmatpush.bf16.msra.mxu0 %v1903
    %2196 = vmatpush.bf16.msra.mxu0 %v1899
    %2197 = vmatpush.bf16.msra.mxu0 %v1895
    %2198 = vmatpush.bf16.msra.mxu0 %v1891
    %2199 = vmatpush.bf16.msra.mxu0 %v1887
    %2200 = vmatpush.bf16.msra.mxu0 %v1883
    %2201 = vmatpush.bf16.msra.mxu0 %v1879
    %2202 = vmatpush.bf16.msra.mxu0 %v1875
    %2203 = vmatmul.bf16.gmra.mxu0 %v1283
    %v2204 = vpop.f32.mrf.mxu0
    %v2205 = vadd.f32 %v2192, %v2204
    %v2206 = vpop.f32.mrf.mxu0
    %2207 = vdwg.mxu0
    %2208 = vmatpush.bf16.msra.mxu0 %v1935
    %2209 = vmatpush.bf16.msra.mxu0 %v1931
    %2210 = vmatpush.bf16.msra.mxu0 %v1927
    %2211 = vmatpush.bf16.msra.mxu0 %v1923
    %2212 = vmatpush.bf16.msra.mxu0 %v1919
    %2213 = vmatpush.bf16.msra.mxu0 %v1915
    %2214 = vmatpush.bf16.msra.mxu0 %v1911
    %2215 = vmatpush.bf16.msra.mxu0 %v1907
    %2216 = vmatmul.bf16.gmra.mxu0 %v1284
    %v2217 = vpop.f32.mrf.mxu0
    %v2218 = vadd.f32 %v2205, %v2217
    %v2219 = vpop.f32.mrf.mxu0
    %2220 = vdwg.mxu0
    %2221 = vmatpush.bf16.msra.mxu0 %v1840
    %2222 = vmatpush.bf16.msra.mxu0 %v1836
    %2223 = vmatpush.bf16.msra.mxu0 %v1832
    %2224 = vmatpush.bf16.msra.mxu0 %v1828
    %2225 = vmatpush.bf16.msra.mxu0 %v1824
    %2226 = vmatpush.bf16.msra.mxu0 %v1820
    %2227 = vmatpush.bf16.msra.mxu0 %v1816
    %2228 = vmatpush.bf16.msra.mxu0 %v1812
    %2229 = vmatmul.bf16.gmra.mxu0 %v1281
    %v2230 = vpop.f32.mrf.mxu0
    %v2231 = vadd.f32 %v1420, %v2230
    %v2232 = vpop.f32.mrf.mxu0
    %2233 = vdwg.mxu0
    %2234 = vmatpush.bf16.msra.mxu0 %v1872
    %2235 = vmatpush.bf16.msra.mxu0 %v1868
    %2236 = vmatpush.bf16.msra.mxu0 %v1864
    %2237 = vmatpush.bf16.msra.mxu0 %v1860
    %2238 = vmatpush.bf16.msra.mxu0 %v1856
    %2239 = vmatpush.bf16.msra.mxu0 %v1852
    %2240 = vmatpush.bf16.msra.mxu0 %v1848
    %2241 = vmatpush.bf16.msra.mxu0 %v1844
    %2242 = vmatmul.bf16.gmra.mxu0 %v1282
    %v2243 = vpop.f32.mrf.mxu0
    %v2244 = vadd.f32 %v2231, %v2243
    %v2245 = vpop.f32.mrf.mxu0
    %2246 = vdwg.mxu0
    %2247 = vmatpush.bf16.msra.mxu0 %v1904
    %2248 = vmatpush.bf16.msra.mxu0 %v1900
    %2249 = vmatpush.bf16.msra.mxu0 %v1896
    %2250 = vmatpush.bf16.msra.mxu0 %v1892
    %2251 = vmatpush.bf16.msra.mxu0 %v1888
    %2252 = vmatpush.bf16.msra.mxu0 %v1884
    %2253 = vmatpush.bf16.msra.mxu0 %v1880
    %2254 = vmatpush.bf16.msra.mxu0 %v1876
    %2255 = vmatmul.bf16.gmra.mxu0 %v1283
    %v2256 = vpop.f32.mrf.mxu0
    %v2257 = vadd.f32 %v2244, %v2256
    %v2258 = vpop.f32.mrf.mxu0
    %2259 = vdwg.mxu0
    %2260 = vmatpush.bf16.msra.mxu0 %v1936
    %2261 = vmatpush.bf16.msra.mxu0 %v1932
    %2262 = vmatpush.bf16.msra.mxu0 %v1928
    %2263 = vmatpush.bf16.msra.mxu0 %v1924
    %2264 = vmatpush.bf16.msra.mxu0 %v1920
    %2265 = vmatpush.bf16.msra.mxu0 %v1916
    %2266 = vmatpush.bf16.msra.mxu0 %v1912
    %2267 = vmatpush.bf16.msra.mxu0 %v1908
    %2268 = vmatmul.bf16.gmra.mxu0 %v1284
    %v2269 = vpop.f32.mrf.mxu0
    %v2270 = vadd.f32 %v2257, %v2269
    %v2271 = vpop.f32.mrf.mxu0
    %2272 = vdwg.mxu0
    %v2273 = vmax.f32 %v2114, 0.0
    %v2274 = vmax.f32 %v2166, 0.0
    %v2275 = vmax.f32 %v2218, 0.0
    %v2276 = vmax.f32 %v2270, 0.0
    %v2277 = vpack.c.bf16 %v2273, %v2273
    %v2278 = vpack.c.bf16 %v2274, %v2274
    %v2279 = vpack.c.bf16 %v2275, %v2275
    %v2280 = vpack.c.bf16 %v2276, %v2276
    %s2281 = scalar_lea.vmem [#allocation7], 2048
    %v2282 = vld [vmem:[%s2281] sm:$0xff]
    %v2283 = vld [vmem:[%s2281 + $0x8] sm:$0xff]
    %v2284 = vld [vmem:[%s2281 + $0x10] sm:$0xff]
    %v2285 = vld [vmem:[%s2281 + $0x18] sm:$0xff]
    %v2286 = vld [vmem:[%s2281 + $0x20] sm:$0xff]
    %v2287 = vld [vmem:[%s2281 + $0x28] sm:$0xff]
    %v2288 = vld [vmem:[%s2281 + $0x30] sm:$0xff]
    %v2289 = vld [vmem:[%s2281 + $0x38] sm:$0xff]
    %v2290 = vld [vmem:[%s2281 + $0x40] sm:$0xff]
    %v2291 = vld [vmem:[%s2281 + $0x48] sm:$0xff]
    %v2292 = vld [vmem:[%s2281 + $0x50] sm:$0xff]
    %v2293 = vld [vmem:[%s2281 + $0x58] sm:$0xff]
    %v2294 = vld [vmem:[%s2281 + $0x60] sm:$0xff]
    %v2295 = vld [vmem:[%s2281 + $0x68] sm:$0xff]
    %v2296 = vld [vmem:[%s2281 + $0x70] sm:$0xff]
    %v2297 = vld [vmem:[%s2281 + $0x78] sm:$0xff]
    %v2298 = vld [vmem:[%s2281 + $0x80] sm:$0xff]
    %v2299 = vld [vmem:[%s2281 + $0x88] sm:$0xff]
    %v2300 = vld [vmem:[%s2281 + $0x90] sm:$0xff]
    %v2301 = vld [vmem:[%s2281 + $0x98] sm:$0xff]
    %v2302 = vld [vmem:[%s2281 + $0xa0] sm:$0xff]
    %v2303 = vld [vmem:[%s2281 + $0xa8] sm:$0xff]
    %v2304 = vld [vmem:[%s2281 + $0xb0] sm:$0xff]
    %v2305 = vld [vmem:[%s2281 + $0xb8] sm:$0xff]
    %v2306 = vld [vmem:[%s2281 + $0xc0] sm:$0xff]
    %v2307 = vld [vmem:[%s2281 + $0xc8] sm:$0xff]
    %v2308 = vld [vmem:[%s2281 + $0xd0] sm:$0xff]
    %v2309 = vld [vmem:[%s2281 + $0xd8] sm:$0xff]
    %v2310 = vld [vmem:[%s2281 + $0xe0] sm:$0xff]
    %v2311 = vld [vmem:[%s2281 + $0xe8] sm:$0xff]
    %v2312 = vld [vmem:[%s2281 + $0xf0] sm:$0xff]
    %v2313 = vld [vmem:[%s2281 + $0xf8] sm:$0xff]
    %v2314 = vld [vmem:[%s2281 + $0x100] sm:$0xff]
    %v2315 = vld [vmem:[%s2281 + $0x108] sm:$0xff]
    %v2316 = vld [vmem:[%s2281 + $0x110] sm:$0xff]
    %v2317 = vld [vmem:[%s2281 + $0x118] sm:$0xff]
    %v2318 = vld [vmem:[%s2281 + $0x120] sm:$0xff]
    %v2319 = vld [vmem:[%s2281 + $0x128] sm:$0xff]
    %v2320 = vld [vmem:[%s2281 + $0x130] sm:$0xff]
    %v2321 = vld [vmem:[%s2281 + $0x138] sm:$0xff]
    %v2322 = vld [vmem:[%s2281 + $0x140] sm:$0xff]
    %v2323 = vld [vmem:[%s2281 + $0x148] sm:$0xff]
    %v2324 = vld [vmem:[%s2281 + $0x150] sm:$0xff]
    %v2325 = vld [vmem:[%s2281 + $0x158] sm:$0xff]
    %v2326 = vld [vmem:[%s2281 + $0x160] sm:$0xff]
    %v2327 = vld [vmem:[%s2281 + $0x168] sm:$0xff]
    %v2328 = vld [vmem:[%s2281 + $0x170] sm:$0xff]
    %v2329 = vld [vmem:[%s2281 + $0x178] sm:$0xff]
    %v2330 = vld [vmem:[%s2281 + $0x180] sm:$0xff]
    %v2331 = vld [vmem:[%s2281 + $0x188] sm:$0xff]
    %v2332 = vld [vmem:[%s2281 + $0x190] sm:$0xff]
    %v2333 = vld [vmem:[%s2281 + $0x198] sm:$0xff]
    %v2334 = vld [vmem:[%s2281 + $0x1a0] sm:$0xff]
    %v2335 = vld [vmem:[%s2281 + $0x1a8] sm:$0xff]
    %v2336 = vld [vmem:[%s2281 + $0x1b0] sm:$0xff]
    %v2337 = vld [vmem:[%s2281 + $0x1b8] sm:$0xff]
    %v2338 = vld [vmem:[%s2281 + $0x1c0] sm:$0xff]
    %v2339 = vld [vmem:[%s2281 + $0x1c8] sm:$0xff]
    %v2340 = vld [vmem:[%s2281 + $0x1d0] sm:$0xff]
    %v2341 = vld [vmem:[%s2281 + $0x1d8] sm:$0xff]
    %v2342 = vld [vmem:[%s2281 + $0x1e0] sm:$0xff]
    %v2343 = vld [vmem:[%s2281 + $0x1e8] sm:$0xff]
    %v2344 = vld [vmem:[%s2281 + $0x1f0] sm:$0xff]
    %v2345 = vld [vmem:[%s2281 + $0x1f8] sm:$0xff]
    %v2346 = vld [vmem:[%s2281 + $0x200] sm:$0xff]
    %v2347 = vld [vmem:[%s2281 + $0x208] sm:$0xff]
    %v2348 = vld [vmem:[%s2281 + $0x210] sm:$0xff]
    %v2349 = vld [vmem:[%s2281 + $0x218] sm:$0xff]
    %v2350 = vld [vmem:[%s2281 + $0x220] sm:$0xff]
    %v2351 = vld [vmem:[%s2281 + $0x228] sm:$0xff]
    %v2352 = vld [vmem:[%s2281 + $0x230] sm:$0xff]
    %v2353 = vld [vmem:[%s2281 + $0x238] sm:$0xff]
    %v2354 = vld [vmem:[%s2281 + $0x240] sm:$0xff]
    %v2355 = vld [vmem:[%s2281 + $0x248] sm:$0xff]
    %v2356 = vld [vmem:[%s2281 + $0x250] sm:$0xff]
    %v2357 = vld [vmem:[%s2281 + $0x258] sm:$0xff]
    %v2358 = vld [vmem:[%s2281 + $0x260] sm:$0xff]
    %v2359 = vld [vmem:[%s2281 + $0x268] sm:$0xff]
    %v2360 = vld [vmem:[%s2281 + $0x270] sm:$0xff]
    %v2361 = vld [vmem:[%s2281 + $0x278] sm:$0xff]
    %v2362 = vld [vmem:[%s2281 + $0x280] sm:$0xff]
    %v2363 = vld [vmem:[%s2281 + $0x288] sm:$0xff]
    %v2364 = vld [vmem:[%s2281 + $0x290] sm:$0xff]
    %v2365 = vld [vmem:[%s2281 + $0x298] sm:$0xff]
    %v2366 = vld [vmem:[%s2281 + $0x2a0] sm:$0xff]
    %v2367 = vld [vmem:[%s2281 + $0x2a8] sm:$0xff]
    %v2368 = vld [vmem:[%s2281 + $0x2b0] sm:$0xff]
    %v2369 = vld [vmem:[%s2281 + $0x2b8] sm:$0xff]
    %v2370 = vld [vmem:[%s2281 + $0x2c0] sm:$0xff]
    %v2371 = vld [vmem:[%s2281 + $0x2c8] sm:$0xff]
    %v2372 = vld [vmem:[%s2281 + $0x2d0] sm:$0xff]
    %v2373 = vld [vmem:[%s2281 + $0x2d8] sm:$0xff]
    %v2374 = vld [vmem:[%s2281 + $0x2e0] sm:$0xff]
    %v2375 = vld [vmem:[%s2281 + $0x2e8] sm:$0xff]
    %v2376 = vld [vmem:[%s2281 + $0x2f0] sm:$0xff]
    %v2377 = vld [vmem:[%s2281 + $0x2f8] sm:$0xff]
    %v2378 = vld [vmem:[%s2281 + $0x300] sm:$0xff]
    %v2379 = vld [vmem:[%s2281 + $0x308] sm:$0xff]
    %v2380 = vld [vmem:[%s2281 + $0x310] sm:$0xff]
    %v2381 = vld [vmem:[%s2281 + $0x318] sm:$0xff]
    %v2382 = vld [vmem:[%s2281 + $0x320] sm:$0xff]
    %v2383 = vld [vmem:[%s2281 + $0x328] sm:$0xff]
    %v2384 = vld [vmem:[%s2281 + $0x330] sm:$0xff]
    %v2385 = vld [vmem:[%s2281 + $0x338] sm:$0xff]
    %v2386 = vld [vmem:[%s2281 + $0x340] sm:$0xff]
    %v2387 = vld [vmem:[%s2281 + $0x348] sm:$0xff]
    %v2388 = vld [vmem:[%s2281 + $0x350] sm:$0xff]
    %v2389 = vld [vmem:[%s2281 + $0x358] sm:$0xff]
    %v2390 = vld [vmem:[%s2281 + $0x360] sm:$0xff]
    %v2391 = vld [vmem:[%s2281 + $0x368] sm:$0xff]
    %v2392 = vld [vmem:[%s2281 + $0x370] sm:$0xff]
    %v2393 = vld [vmem:[%s2281 + $0x378] sm:$0xff]
    %v2394 = vld [vmem:[%s2281 + $0x380] sm:$0xff]
    %v2395 = vld [vmem:[%s2281 + $0x388] sm:$0xff]
    %v2396 = vld [vmem:[%s2281 + $0x390] sm:$0xff]
    %v2397 = vld [vmem:[%s2281 + $0x398] sm:$0xff]
    %v2398 = vld [vmem:[%s2281 + $0x3a0] sm:$0xff]
    %v2399 = vld [vmem:[%s2281 + $0x3a8] sm:$0xff]
    %v2400 = vld [vmem:[%s2281 + $0x3b0] sm:$0xff]
    %v2401 = vld [vmem:[%s2281 + $0x3b8] sm:$0xff]
    %v2402 = vld [vmem:[%s2281 + $0x3c0] sm:$0xff]
    %v2403 = vld [vmem:[%s2281 + $0x3c8] sm:$0xff]
    %v2404 = vld [vmem:[%s2281 + $0x3d0] sm:$0xff]
    %v2405 = vld [vmem:[%s2281 + $0x3d8] sm:$0xff]
    %v2406 = vld [vmem:[%s2281 + $0x3e0] sm:$0xff]
    %v2407 = vld [vmem:[%s2281 + $0x3e8] sm:$0xff]
    %v2408 = vld [vmem:[%s2281 + $0x3f0] sm:$0xff]
    %v2409 = vld [vmem:[%s2281 + $0x3f8] sm:$0xff]
    %s2410 = scalar_lea.vmem [#allocation8], 8
    %v2411 = vld [vmem:[%s2410] sm:$0xf]
    %v2413 = vperm.slane %v2411, 0
    %v2414 = vperm.slane %v2411, 1
    %v2415 = vperm.slane %v2411, 2
    %v2416 = vperm.slane %v2411, 3
    %v2549 = vunpack.c.l.b16 %v2282
    %v2550 = vunpack.c.h.b16 %v2282
    %v2551 = vunpack.c.l.b16 %v2283
    %v2552 = vunpack.c.h.b16 %v2283
    %v2553 = vunpack.c.l.b16 %v2284
    %v2554 = vunpack.c.h.b16 %v2284
    %v2555 = vunpack.c.l.b16 %v2285
    %v2556 = vunpack.c.h.b16 %v2285
    %v2557 = vunpack.c.l.b16 %v2286
    %v2558 = vunpack.c.h.b16 %v2286
    %v2559 = vunpack.c.l.b16 %v2287
    %v2560 = vunpack.c.h.b16 %v2287
    %v2561 = vunpack.c.l.b16 %v2288
    %v2562 = vunpack.c.h.b16 %v2288
    %v2563 = vunpack.c.l.b16 %v2289
    %v2564 = vunpack.c.h.b16 %v2289
    %v2565 = vunpack.c.l.b16 %v2290
    %v2566 = vunpack.c.h.b16 %v2290
    %v2567 = vunpack.c.l.b16 %v2291
    %v2568 = vunpack.c.h.b16 %v2291
    %v2569 = vunpack.c.l.b16 %v2292
    %v2570 = vunpack.c.h.b16 %v2292
    %v2571 = vunpack.c.l.b16 %v2293
    %v2572 = vunpack.c.h.b16 %v2293
    %v2573 = vunpack.c.l.b16 %v2294
    %v2574 = vunpack.c.h.b16 %v2294
    %v2575 = vunpack.c.l.b16 %v2295
    %v2576 = vunpack.c.h.b16 %v2295
    %v2577 = vunpack.c.l.b16 %v2296
    %v2578 = vunpack.c.h.b16 %v2296
    %v2579 = vunpack.c.l.b16 %v2297
    %v2580 = vunpack.c.h.b16 %v2297
    %v2581 = vunpack.c.l.b16 %v2298
    %v2582 = vunpack.c.h.b16 %v2298
    %v2583 = vunpack.c.l.b16 %v2299
    %v2584 = vunpack.c.h.b16 %v2299
    %v2585 = vunpack.c.l.b16 %v2300
    %v2586 = vunpack.c.h.b16 %v2300
    %v2587 = vunpack.c.l.b16 %v2301
    %v2588 = vunpack.c.h.b16 %v2301
    %v2589 = vunpack.c.l.b16 %v2302
    %v2590 = vunpack.c.h.b16 %v2302
    %v2591 = vunpack.c.l.b16 %v2303
    %v2592 = vunpack.c.h.b16 %v2303
    %v2593 = vunpack.c.l.b16 %v2304
    %v2594 = vunpack.c.h.b16 %v2304
    %v2595 = vunpack.c.l.b16 %v2305
    %v2596 = vunpack.c.h.b16 %v2305
    %v2597 = vunpack.c.l.b16 %v2306
    %v2598 = vunpack.c.h.b16 %v2306
    %v2599 = vunpack.c.l.b16 %v2307
    %v2600 = vunpack.c.h.b16 %v2307
    %v2601 = vunpack.c.l.b16 %v2308
    %v2602 = vunpack.c.h.b16 %v2308
    %v2603 = vunpack.c.l.b16 %v2309
    %v2604 = vunpack.c.h.b16 %v2309
    %v2605 = vunpack.c.l.b16 %v2310
    %v2606 = vunpack.c.h.b16 %v2310
    %v2607 = vunpack.c.l.b16 %v2311
    %v2608 = vunpack.c.h.b16 %v2311
    %v2609 = vunpack.c.l.b16 %v2312
    %v2610 = vunpack.c.h.b16 %v2312
    %v2611 = vunpack.c.l.b16 %v2313
    %v2612 = vunpack.c.h.b16 %v2313
    %v2613 = vunpack.c.l.b16 %v2314
    %v2614 = vunpack.c.h.b16 %v2314
    %v2615 = vunpack.c.l.b16 %v2315
    %v2616 = vunpack.c.h.b16 %v2315
    %v2617 = vunpack.c.l.b16 %v2316
    %v2618 = vunpack.c.h.b16 %v2316
    %v2619 = vunpack.c.l.b16 %v2317
    %v2620 = vunpack.c.h.b16 %v2317
    %v2621 = vunpack.c.l.b16 %v2318
    %v2622 = vunpack.c.h.b16 %v2318
    %v2623 = vunpack.c.l.b16 %v2319
    %v2624 = vunpack.c.h.b16 %v2319
    %v2625 = vunpack.c.l.b16 %v2320
    %v2626 = vunpack.c.h.b16 %v2320
    %v2627 = vunpack.c.l.b16 %v2321
    %v2628 = vunpack.c.h.b16 %v2321
    %v2629 = vunpack.c.l.b16 %v2322
    %v2630 = vunpack.c.h.b16 %v2322
    %v2631 = vunpack.c.l.b16 %v2323
    %v2632 = vunpack.c.h.b16 %v2323
    %v2633 = vunpack.c.l.b16 %v2324
    %v2634 = vunpack.c.h.b16 %v2324
    %v2635 = vunpack.c.l.b16 %v2325
    %v2636 = vunpack.c.h.b16 %v2325
    %v2637 = vunpack.c.l.b16 %v2326
    %v2638 = vunpack.c.h.b16 %v2326
    %v2639 = vunpack.c.l.b16 %v2327
    %v2640 = vunpack.c.h.b16 %v2327
    %v2641 = vunpack.c.l.b16 %v2328
    %v2642 = vunpack.c.h.b16 %v2328
    %v2643 = vunpack.c.l.b16 %v2329
    %v2644 = vunpack.c.h.b16 %v2329
    %v2645 = vunpack.c.l.b16 %v2330
    %v2646 = vunpack.c.h.b16 %v2330
    %v2647 = vunpack.c.l.b16 %v2331
    %v2648 = vunpack.c.h.b16 %v2331
    %v2649 = vunpack.c.l.b16 %v2332
    %v2650 = vunpack.c.h.b16 %v2332
    %v2651 = vunpack.c.l.b16 %v2333
    %v2652 = vunpack.c.h.b16 %v2333
    %v2653 = vunpack.c.l.b16 %v2334
    %v2654 = vunpack.c.h.b16 %v2334
    %v2655 = vunpack.c.l.b16 %v2335
    %v2656 = vunpack.c.h.b16 %v2335
    %v2657 = vunpack.c.l.b16 %v2336
    %v2658 = vunpack.c.h.b16 %v2336
    %v2659 = vunpack.c.l.b16 %v2337
    %v2660 = vunpack.c.h.b16 %v2337
    %v2661 = vunpack.c.l.b16 %v2338
    %v2662 = vunpack.c.h.b16 %v2338
    %v2663 = vunpack.c.l.b16 %v2339
    %v2664 = vunpack.c.h.b16 %v2339
    %v2665 = vunpack.c.l.b16 %v2340
    %v2666 = vunpack.c.h.b16 %v2340
    %v2667 = vunpack.c.l.b16 %v2341
    %v2668 = vunpack.c.h.b16 %v2341
    %v2669 = vunpack.c.l.b16 %v2342
    %v2670 = vunpack.c.h.b16 %v2342
    %v2671 = vunpack.c.l.b16 %v2343
    %v2672 = vunpack.c.h.b16 %v2343
    %v2673 = vunpack.c.l.b16 %v2344
    %v2674 = vunpack.c.h.b16 %v2344
    %v2675 = vunpack.c.l.b16 %v2345
    %v2676 = vunpack.c.h.b16 %v2345
    %v2677 = vunpack.c.l.b16 %v2346
    %v2678 = vunpack.c.h.b16 %v2346
    %v2679 = vunpack.c.l.b16 %v2347
    %v2680 = vunpack.c.h.b16 %v2347
    %v2681 = vunpack.c.l.b16 %v2348
    %v2682 = vunpack.c.h.b16 %v2348
    %v2683 = vunpack.c.l.b16 %v2349
    %v2684 = vunpack.c.h.b16 %v2349
    %v2685 = vunpack.c.l.b16 %v2350
    %v2686 = vunpack.c.h.b16 %v2350
    %v2687 = vunpack.c.l.b16 %v2351
    %v2688 = vunpack.c.h.b16 %v2351
    %v2689 = vunpack.c.l.b16 %v2352
    %v2690 = vunpack.c.h.b16 %v2352
    %v2691 = vunpack.c.l.b16 %v2353
    %v2692 = vunpack.c.h.b16 %v2353
    %v2693 = vunpack.c.l.b16 %v2354
    %v2694 = vunpack.c.h.b16 %v2354
    %v2695 = vunpack.c.l.b16 %v2355
    %v2696 = vunpack.c.h.b16 %v2355
    %v2697 = vunpack.c.l.b16 %v2356
    %v2698 = vunpack.c.h.b16 %v2356
    %v2699 = vunpack.c.l.b16 %v2357
    %v2700 = vunpack.c.h.b16 %v2357
    %v2701 = vunpack.c.l.b16 %v2358
    %v2702 = vunpack.c.h.b16 %v2358
    %v2703 = vunpack.c.l.b16 %v2359
    %v2704 = vunpack.c.h.b16 %v2359
    %v2705 = vunpack.c.l.b16 %v2360
    %v2706 = vunpack.c.h.b16 %v2360
    %v2707 = vunpack.c.l.b16 %v2361
    %v2708 = vunpack.c.h.b16 %v2361
    %v2709 = vunpack.c.l.b16 %v2362
    %v2710 = vunpack.c.h.b16 %v2362
    %v2711 = vunpack.c.l.b16 %v2363
    %v2712 = vunpack.c.h.b16 %v2363
    %v2713 = vunpack.c.l.b16 %v2364
    %v2714 = vunpack.c.h.b16 %v2364
    %v2715 = vunpack.c.l.b16 %v2365
    %v2716 = vunpack.c.h.b16 %v2365
    %v2717 = vunpack.c.l.b16 %v2366
    %v2718 = vunpack.c.h.b16 %v2366
    %v2719 = vunpack.c.l.b16 %v2367
    %v2720 = vunpack.c.h.b16 %v2367
    %v2721 = vunpack.c.l.b16 %v2368
    %v2722 = vunpack.c.h.b16 %v2368
    %v2723 = vunpack.c.l.b16 %v2369
    %v2724 = vunpack.c.h.b16 %v2369
    %v2725 = vunpack.c.l.b16 %v2370
    %v2726 = vunpack.c.h.b16 %v2370
    %v2727 = vunpack.c.l.b16 %v2371
    %v2728 = vunpack.c.h.b16 %v2371
    %v2729 = vunpack.c.l.b16 %v2372
    %v2730 = vunpack.c.h.b16 %v2372
    %v2731 = vunpack.c.l.b16 %v2373
    %v2732 = vunpack.c.h.b16 %v2373
    %v2733 = vunpack.c.l.b16 %v2374
    %v2734 = vunpack.c.h.b16 %v2374
    %v2735 = vunpack.c.l.b16 %v2375
    %v2736 = vunpack.c.h.b16 %v2375
    %v2737 = vunpack.c.l.b16 %v2376
    %v2738 = vunpack.c.h.b16 %v2376
    %v2739 = vunpack.c.l.b16 %v2377
    %v2740 = vunpack.c.h.b16 %v2377
    %v2741 = vunpack.c.l.b16 %v2378
    %v2742 = vunpack.c.h.b16 %v2378
    %v2743 = vunpack.c.l.b16 %v2379
    %v2744 = vunpack.c.h.b16 %v2379
    %v2745 = vunpack.c.l.b16 %v2380
    %v2746 = vunpack.c.h.b16 %v2380
    %v2747 = vunpack.c.l.b16 %v2381
    %v2748 = vunpack.c.h.b16 %v2381
    %v2749 = vunpack.c.l.b16 %v2382
    %v2750 = vunpack.c.h.b16 %v2382
    %v2751 = vunpack.c.l.b16 %v2383
    %v2752 = vunpack.c.h.b16 %v2383
    %v2753 = vunpack.c.l.b16 %v2384
    %v2754 = vunpack.c.h.b16 %v2384
    %v2755 = vunpack.c.l.b16 %v2385
    %v2756 = vunpack.c.h.b16 %v2385
    %v2757 = vunpack.c.l.b16 %v2386
    %v2758 = vunpack.c.h.b16 %v2386
    %v2759 = vunpack.c.l.b16 %v2387
    %v2760 = vunpack.c.h.b16 %v2387
    %v2761 = vunpack.c.l.b16 %v2388
    %v2762 = vunpack.c.h.b16 %v2388
    %v2763 = vunpack.c.l.b16 %v2389
    %v2764 = vunpack.c.h.b16 %v2389
    %v2765 = vunpack.c.l.b16 %v2390
    %v2766 = vunpack.c.h.b16 %v2390
    %v2767 = vunpack.c.l.b16 %v2391
    %v2768 = vunpack.c.h.b16 %v2391
    %v2769 = vunpack.c.l.b16 %v2392
    %v2770 = vunpack.c.h.b16 %v2392
    %v2771 = vunpack.c.l.b16 %v2393
    %v2772 = vunpack.c.h.b16 %v2393
    %v2773 = vunpack.c.l.b16 %v2394
    %v2774 = vunpack.c.h.b16 %v2394
    %v2775 = vunpack.c.l.b16 %v2395
    %v2776 = vunpack.c.h.b16 %v2395
    %v2777 = vunpack.c.l.b16 %v2396
    %v2778 = vunpack.c.h.b16 %v2396
    %v2779 = vunpack.c.l.b16 %v2397
    %v2780 = vunpack.c.h.b16 %v2397
    %v2781 = vunpack.c.l.b16 %v2398
    %v2782 = vunpack.c.h.b16 %v2398
    %v2783 = vunpack.c.l.b16 %v2399
    %v2784 = vunpack.c.h.b16 %v2399
    %v2785 = vunpack.c.l.b16 %v2400
    %v2786 = vunpack.c.h.b16 %v2400
    %v2787 = vunpack.c.l.b16 %v2401
    %v2788 = vunpack.c.h.b16 %v2401
    %v2789 = vunpack.c.l.b16 %v2402
    %v2790 = vunpack.c.h.b16 %v2402
    %v2791 = vunpack.c.l.b16 %v2403
    %v2792 = vunpack.c.h.b16 %v2403
    %v2793 = vunpack.c.l.b16 %v2404
    %v2794 = vunpack.c.h.b16 %v2404
    %v2795 = vunpack.c.l.b16 %v2405
    %v2796 = vunpack.c.h.b16 %v2405
    %v2797 = vunpack.c.l.b16 %v2406
    %v2798 = vunpack.c.h.b16 %v2406
    %v2799 = vunpack.c.l.b16 %v2407
    %v2800 = vunpack.c.h.b16 %v2407
    %v2801 = vunpack.c.l.b16 %v2408
    %v2802 = vunpack.c.h.b16 %v2408
    %v2803 = vunpack.c.l.b16 %v2409
    %v2804 = vunpack.c.h.b16 %v2409
    %v2805 = vpack.c.b16 %v2553, %v2549
    %v2806 = vpack.c.b16 %v2554, %v2550
    %v2807 = vpack.c.b16 %v2555, %v2551
    %v2808 = vpack.c.b16 %v2556, %v2552
    %v2809 = vpack.c.b16 %v2561, %v2557
    %v2810 = vpack.c.b16 %v2562, %v2558
    %v2811 = vpack.c.b16 %v2563, %v2559
    %v2812 = vpack.c.b16 %v2564, %v2560
    %v2813 = vpack.c.b16 %v2569, %v2565
    %v2814 = vpack.c.b16 %v2570, %v2566
    %v2815 = vpack.c.b16 %v2571, %v2567
    %v2816 = vpack.c.b16 %v2572, %v2568
    %v2817 = vpack.c.b16 %v2577, %v2573
    %v2818 = vpack.c.b16 %v2578, %v2574
    %v2819 = vpack.c.b16 %v2579, %v2575
    %v2820 = vpack.c.b16 %v2580, %v2576
    %v2821 = vpack.c.b16 %v2585, %v2581
    %v2822 = vpack.c.b16 %v2586, %v2582
    %v2823 = vpack.c.b16 %v2587, %v2583
    %v2824 = vpack.c.b16 %v2588, %v2584
    %v2825 = vpack.c.b16 %v2593, %v2589
    %v2826 = vpack.c.b16 %v2594, %v2590
    %v2827 = vpack.c.b16 %v2595, %v2591
    %v2828 = vpack.c.b16 %v2596, %v2592
    %v2829 = vpack.c.b16 %v2601, %v2597
    %v2830 = vpack.c.b16 %v2602, %v2598
    %v2831 = vpack.c.b16 %v2603, %v2599
    %v2832 = vpack.c.b16 %v2604, %v2600
    %v2833 = vpack.c.b16 %v2609, %v2605
    %v2834 = vpack.c.b16 %v2610, %v2606
    %v2835 = vpack.c.b16 %v2611, %v2607
    %v2836 = vpack.c.b16 %v2612, %v2608
    %v2837 = vpack.c.b16 %v2617, %v2613
    %v2838 = vpack.c.b16 %v2618, %v2614
    %v2839 = vpack.c.b16 %v2619, %v2615
    %v2840 = vpack.c.b16 %v2620, %v2616
    %v2841 = vpack.c.b16 %v2625, %v2621
    %v2842 = vpack.c.b16 %v2626, %v2622
    %v2843 = vpack.c.b16 %v2627, %v2623
    %v2844 = vpack.c.b16 %v2628, %v2624
    %v2845 = vpack.c.b16 %v2633, %v2629
    %v2846 = vpack.c.b16 %v2634, %v2630
    %v2847 = vpack.c.b16 %v2635, %v2631
    %v2848 = vpack.c.b16 %v2636, %v2632
    %v2849 = vpack.c.b16 %v2641, %v2637
    %v2850 = vpack.c.b16 %v2642, %v2638
    %v2851 = vpack.c.b16 %v2643, %v2639
    %v2852 = vpack.c.b16 %v2644, %v2640
    %v2853 = vpack.c.b16 %v2649, %v2645
    %v2854 = vpack.c.b16 %v2650, %v2646
    %v2855 = vpack.c.b16 %v2651, %v2647
    %v2856 = vpack.c.b16 %v2652, %v2648
    %v2857 = vpack.c.b16 %v2657, %v2653
    %v2858 = vpack.c.b16 %v2658, %v2654
    %v2859 = vpack.c.b16 %v2659, %v2655
    %v2860 = vpack.c.b16 %v2660, %v2656
    %v2861 = vpack.c.b16 %v2665, %v2661
    %v2862 = vpack.c.b16 %v2666, %v2662
    %v2863 = vpack.c.b16 %v2667, %v2663
    %v2864 = vpack.c.b16 %v2668, %v2664
    %v2865 = vpack.c.b16 %v2673, %v2669
    %v2866 = vpack.c.b16 %v2674, %v2670
    %v2867 = vpack.c.b16 %v2675, %v2671
    %v2868 = vpack.c.b16 %v2676, %v2672
    %v2869 = vpack.c.b16 %v2681, %v2677
    %v2870 = vpack.c.b16 %v2682, %v2678
    %v2871 = vpack.c.b16 %v2683, %v2679
    %v2872 = vpack.c.b16 %v2684, %v2680
    %v2873 = vpack.c.b16 %v2689, %v2685
    %v2874 = vpack.c.b16 %v2690, %v2686
    %v2875 = vpack.c.b16 %v2691, %v2687
    %v2876 = vpack.c.b16 %v2692, %v2688
    %v2877 = vpack.c.b16 %v2697, %v2693
    %v2878 = vpack.c.b16 %v2698, %v2694
    %v2879 = vpack.c.b16 %v2699, %v2695
    %v2880 = vpack.c.b16 %v2700, %v2696
    %v2881 = vpack.c.b16 %v2705, %v2701
    %v2882 = vpack.c.b16 %v2706, %v2702
    %v2883 = vpack.c.b16 %v2707, %v2703
    %v2884 = vpack.c.b16 %v2708, %v2704
    %v2885 = vpack.c.b16 %v2713, %v2709
    %v2886 = vpack.c.b16 %v2714, %v2710
    %v2887 = vpack.c.b16 %v2715, %v2711
    %v2888 = vpack.c.b16 %v2716, %v2712
    %v2889 = vpack.c.b16 %v2721, %v2717
    %v2890 = vpack.c.b16 %v2722, %v2718
    %v2891 = vpack.c.b16 %v2723, %v2719
    %v2892 = vpack.c.b16 %v2724, %v2720
    %v2893 = vpack.c.b16 %v2729, %v2725
    %v2894 = vpack.c.b16 %v2730, %v2726
    %v2895 = vpack.c.b16 %v2731, %v2727
    %v2896 = vpack.c.b16 %v2732, %v2728
    %v2897 = vpack.c.b16 %v2737, %v2733
    %v2898 = vpack.c.b16 %v2738, %v2734
    %v2899 = vpack.c.b16 %v2739, %v2735
    %v2900 = vpack.c.b16 %v2740, %v2736
    %v2901 = vpack.c.b16 %v2745, %v2741
    %v2902 = vpack.c.b16 %v2746, %v2742
    %v2903 = vpack.c.b16 %v2747, %v2743
    %v2904 = vpack.c.b16 %v2748, %v2744
    %v2905 = vpack.c.b16 %v2753, %v2749
    %v2906 = vpack.c.b16 %v2754, %v2750
    %v2907 = vpack.c.b16 %v2755, %v2751
    %v2908 = vpack.c.b16 %v2756, %v2752
    %v2909 = vpack.c.b16 %v2761, %v2757
    %v2910 = vpack.c.b16 %v2762, %v2758
    %v2911 = vpack.c.b16 %v2763, %v2759
    %v2912 = vpack.c.b16 %v2764, %v2760
    %v2913 = vpack.c.b16 %v2769, %v2765
    %v2914 = vpack.c.b16 %v2770, %v2766
    %v2915 = vpack.c.b16 %v2771, %v2767
    %v2916 = vpack.c.b16 %v2772, %v2768
    %v2917 = vpack.c.b16 %v2777, %v2773
    %v2918 = vpack.c.b16 %v2778, %v2774
    %v2919 = vpack.c.b16 %v2779, %v2775
    %v2920 = vpack.c.b16 %v2780, %v2776
    %v2921 = vpack.c.b16 %v2785, %v2781
    %v2922 = vpack.c.b16 %v2786, %v2782
    %v2923 = vpack.c.b16 %v2787, %v2783
    %v2924 = vpack.c.b16 %v2788, %v2784
    %v2925 = vpack.c.b16 %v2793, %v2789
    %v2926 = vpack.c.b16 %v2794, %v2790
    %v2927 = vpack.c.b16 %v2795, %v2791
    %v2928 = vpack.c.b16 %v2796, %v2792
    %v2929 = vpack.c.b16 %v2801, %v2797
    %v2930 = vpack.c.b16 %v2802, %v2798
    %v2931 = vpack.c.b16 %v2803, %v2799
    %v2932 = vpack.c.b16 %v2804, %v2800
    %3061 = vmatpush.bf16.msra.mxu0 %v2833
    %3062 = vmatpush.bf16.msra.mxu0 %v2829
    %3063 = vmatpush.bf16.msra.mxu0 %v2825
    %3064 = vmatpush.bf16.msra.mxu0 %v2821
    %3065 = vmatpush.bf16.msra.mxu0 %v2817
    %3066 = vmatpush.bf16.msra.mxu0 %v2813
    %3067 = vmatpush.bf16.msra.mxu0 %v2809
    %3068 = vmatpush.bf16.msra.mxu0 %v2805
    %3069 = vmatmul.bf16.gmra.mxu0 %v2277
    %v3070 = vpop.f32.mrf.mxu0
    %v3071 = vadd.f32 %v2413, %v3070
    %v3072 = vpop.f32.mrf.mxu0
    %3073 = vdwg.mxu0
    %3074 = vmatpush.bf16.msra.mxu0 %v2865
    %3075 = vmatpush.bf16.msra.mxu0 %v2861
    %3076 = vmatpush.bf16.msra.mxu0 %v2857
    %3077 = vmatpush.bf16.msra.mxu0 %v2853
    %3078 = vmatpush.bf16.msra.mxu0 %v2849
    %3079 = vmatpush.bf16.msra.mxu0 %v2845
    %3080 = vmatpush.bf16.msra.mxu0 %v2841
    %3081 = vmatpush.bf16.msra.mxu0 %v2837
    %3082 = vmatmul.bf16.gmra.mxu0 %v2278
    %v3083 = vpop.f32.mrf.mxu0
    %v3084 = vadd.f32 %v3071, %v3083
    %v3085 = vpop.f32.mrf.mxu0
    %3086 = vdwg.mxu0
    %3087 = vmatpush.bf16.msra.mxu0 %v2897
    %3088 = vmatpush.bf16.msra.mxu0 %v2893
    %3089 = vmatpush.bf16.msra.mxu0 %v2889
    %3090 = vmatpush.bf16.msra.mxu0 %v2885
    %3091 = vmatpush.bf16.msra.mxu0 %v2881
    %3092 = vmatpush.bf16.msra.mxu0 %v2877
    %3093 = vmatpush.bf16.msra.mxu0 %v2873
    %3094 = vmatpush.bf16.msra.mxu0 %v2869
    %3095 = vmatmul.bf16.gmra.mxu0 %v2279
    %v3096 = vpop.f32.mrf.mxu0
    %v3097 = vadd.f32 %v3084, %v3096
    %v3098 = vpop.f32.mrf.mxu0
    %3099 = vdwg.mxu0
    %3100 = vmatpush.bf16.msra.mxu0 %v2929
    %3101 = vmatpush.bf16.msra.mxu0 %v2925
    %3102 = vmatpush.bf16.msra.mxu0 %v2921
    %3103 = vmatpush.bf16.msra.mxu0 %v2917
    %3104 = vmatpush.bf16.msra.mxu0 %v2913
    %3105 = vmatpush.bf16.msra.mxu0 %v2909
    %3106 = vmatpush.bf16.msra.mxu0 %v2905
    %3107 = vmatpush.bf16.msra.mxu0 %v2901
    %3108 = vmatmul.bf16.gmra.mxu0 %v2280
    %v3109 = vpop.f32.mrf.mxu0
    %v3110 = vadd.f32 %v3097, %v3109
    %v3111 = vpop.f32.mrf.mxu0
    %3112 = vdwg.mxu0
    %3113 = vmatpush.bf16.msra.mxu0 %v2834
    %3114 = vmatpush.bf16.msra.mxu0 %v2830
    %3115 = vmatpush.bf16.msra.mxu0 %v2826
    %3116 = vmatpush.bf16.msra.mxu0 %v2822
    %3117 = vmatpush.bf16.msra.mxu0 %v2818
    %3118 = vmatpush.bf16.msra.mxu0 %v2814
    %3119 = vmatpush.bf16.msra.mxu0 %v2810
    %3120 = vmatpush.bf16.msra.mxu0 %v2806
    %3121 = vmatmul.bf16.gmra.mxu0 %v2277
    %v3122 = vpop.f32.mrf.mxu0
    %v3123 = vadd.f32 %v2414, %v3122
    %v3124 = vpop.f32.mrf.mxu0
    %3125 = vdwg.mxu0
    %3126 = vmatpush.bf16.msra.mxu0 %v2866
    %3127 = vmatpush.bf16.msra.mxu0 %v2862
    %3128 = vmatpush.bf16.msra.mxu0 %v2858
    %3129 = vmatpush.bf16.msra.mxu0 %v2854
    %3130 = vmatpush.bf16.msra.mxu0 %v2850
    %3131 = vmatpush.bf16.msra.mxu0 %v2846
    %3132 = vmatpush.bf16.msra.mxu0 %v2842
    %3133 = vmatpush.bf16.msra.mxu0 %v2838
    %3134 = vmatmul.bf16.gmra.mxu0 %v2278
    %v3135 = vpop.f32.mrf.mxu0
    %v3136 = vadd.f32 %v3123, %v3135
    %v3137 = vpop.f32.mrf.mxu0
    %3138 = vdwg.mxu0
    %3139 = vmatpush.bf16.msra.mxu0 %v2898
    %3140 = vmatpush.bf16.msra.mxu0 %v2894
    %3141 = vmatpush.bf16.msra.mxu0 %v2890
    %3142 = vmatpush.bf16.msra.mxu0 %v2886
    %3143 = vmatpush.bf16.msra.mxu0 %v2882
    %3144 = vmatpush.bf16.msra.mxu0 %v2878
    %3145 = vmatpush.bf16.msra.mxu0 %v2874
    %3146 = vmatpush.bf16.msra.mxu0 %v2870
    %3147 = vmatmul.bf16.gmra.mxu0 %v2279
    %v3148 = vpop.f32.mrf.mxu0
    %v3149 = vadd.f32 %v3136, %v3148
    %v3150 = vpop.f32.mrf.mxu0
    %3151 = vdwg.mxu0
    %3152 = vmatpush.bf16.msra.mxu0 %v2930
    %3153 = vmatpush.bf16.msra.mxu0 %v2926
    %3154 = vmatpush.bf16.msra.mxu0 %v2922
    %3155 = vmatpush.bf16.msra.mxu0 %v2918
    %3156 = vmatpush.bf16.msra.mxu0 %v2914
    %3157 = vmatpush.bf16.msra.mxu0 %v2910
    %3158 = vmatpush.bf16.msra.mxu0 %v2906
    %3159 = vmatpush.bf16.msra.mxu0 %v2902
    %3160 = vmatmul.bf16.gmra.mxu0 %v2280
    %v3161 = vpop.f32.mrf.mxu0
    %v3162 = vadd.f32 %v3149, %v3161
    %v3163 = vpop.f32.mrf.mxu0
    %3164 = vdwg.mxu0
    %3165 = vmatpush.bf16.msra.mxu0 %v2835
    %3166 = vmatpush.bf16.msra.mxu0 %v2831
    %3167 = vmatpush.bf16.msra.mxu0 %v2827
    %3168 = vmatpush.bf16.msra.mxu0 %v2823
    %3169 = vmatpush.bf16.msra.mxu0 %v2819
    %3170 = vmatpush.bf16.msra.mxu0 %v2815
    %3171 = vmatpush.bf16.msra.mxu0 %v2811
    %3172 = vmatpush.bf16.msra.mxu0 %v2807
    %3173 = vmatmul.bf16.gmra.mxu0 %v2277
    %v3174 = vpop.f32.mrf.mxu0
    %v3175 = vadd.f32 %v2415, %v3174
    %v3176 = vpop.f32.mrf.mxu0
    %3177 = vdwg.mxu0
    %3178 = vmatpush.bf16.msra.mxu0 %v2867
    %3179 = vmatpush.bf16.msra.mxu0 %v2863
    %3180 = vmatpush.bf16.msra.mxu0 %v2859
    %3181 = vmatpush.bf16.msra.mxu0 %v2855
    %3182 = vmatpush.bf16.msra.mxu0 %v2851
    %3183 = vmatpush.bf16.msra.mxu0 %v2847
    %3184 = vmatpush.bf16.msra.mxu0 %v2843
    %3185 = vmatpush.bf16.msra.mxu0 %v2839
    %3186 = vmatmul.bf16.gmra.mxu0 %v2278
    %v3187 = vpop.f32.mrf.mxu0
    %v3188 = vadd.f32 %v3175, %v3187
    %v3189 = vpop.f32.mrf.mxu0
    %3190 = vdwg.mxu0
    %3191 = vmatpush.bf16.msra.mxu0 %v2899
    %3192 = vmatpush.bf16.msra.mxu0 %v2895
    %3193 = vmatpush.bf16.msra.mxu0 %v2891
    %3194 = vmatpush.bf16.msra.mxu0 %v2887
    %3195 = vmatpush.bf16.msra.mxu0 %v2883
    %3196 = vmatpush.bf16.msra.mxu0 %v2879
    %3197 = vmatpush.bf16.msra.mxu0 %v2875
    %3198 = vmatpush.bf16.msra.mxu0 %v2871
    %3199 = vmatmul.bf16.gmra.mxu0 %v2279
    %v3200 = vpop.f32.mrf.mxu0
    %v3201 = vadd.f32 %v3188, %v3200
    %v3202 = vpop.f32.mrf.mxu0
    %3203 = vdwg.mxu0
    %3204 = vmatpush.bf16.msra.mxu0 %v2931
    %3205 = vmatpush.bf16.msra.mxu0 %v2927
    %3206 = vmatpush.bf16.msra.mxu0 %v2923
    %3207 = vmatpush.bf16.msra.mxu0 %v2919
    %3208 = vmatpush.bf16.msra.mxu0 %v2915
    %3209 = vmatpush.bf16.msra.mxu0 %v2911
    %3210 = vmatpush.bf16.msra.mxu0 %v2907
    %3211 = vmatpush.bf16.msra.mxu0 %v2903
    %3212 = vmatmul.bf16.gmra.mxu0 %v2280
    %v3213 = vpop.f32.mrf.mxu0
    %v3214 = vadd.f32 %v3201, %v3213
    %v3215 = vpop.f32.mrf.mxu0
    %3216 = vdwg.mxu0
    %3217 = vmatpush.bf16.msra.mxu0 %v2836
    %3218 = vmatpush.bf16.msra.mxu0 %v2832
    %3219 = vmatpush.bf16.msra.mxu0 %v2828
    %3220 = vmatpush.bf16.msra.mxu0 %v2824
    %3221 = vmatpush.bf16.msra.mxu0 %v2820
    %3222 = vmatpush.bf16.msra.mxu0 %v2816
    %3223 = vmatpush.bf16.msra.mxu0 %v2812
    %3224 = vmatpush.bf16.msra.mxu0 %v2808
    %3225 = vmatmul.bf16.gmra.mxu0 %v2277
    %v3226 = vpop.f32.mrf.mxu0
    %v3227 = vadd.f32 %v2416, %v3226
    %v3228 = vpop.f32.mrf.mxu0
    %3229 = vdwg.mxu0
    %3230 = vmatpush.bf16.msra.mxu0 %v2868
    %3231 = vmatpush.bf16.msra.mxu0 %v2864
    %3232 = vmatpush.bf16.msra.mxu0 %v2860
    %3233 = vmatpush.bf16.msra.mxu0 %v2856
    %3234 = vmatpush.bf16.msra.mxu0 %v2852
    %3235 = vmatpush.bf16.msra.mxu0 %v2848
    %3236 = vmatpush.bf16.msra.mxu0 %v2844
    %3237 = vmatpush.bf16.msra.mxu0 %v2840
    %3238 = vmatmul.bf16.gmra.mxu0 %v2278
    %v3239 = vpop.f32.mrf.mxu0
    %v3240 = vadd.f32 %v3227, %v3239
    %v3241 = vpop.f32.mrf.mxu0
    %3242 = vdwg.mxu0
    %3243 = vmatpush.bf16.msra.mxu0 %v2900
    %3244 = vmatpush.bf16.msra.mxu0 %v2896
    %3245 = vmatpush.bf16.msra.mxu0 %v2892
    %3246 = vmatpush.bf16.msra.mxu0 %v2888
    %3247 = vmatpush.bf16.msra.mxu0 %v2884
    %3248 = vmatpush.bf16.msra.mxu0 %v2880
    %3249 = vmatpush.bf16.msra.mxu0 %v2876
    %3250 = vmatpush.bf16.msra.mxu0 %v2872
    %3251 = vmatmul.bf16.gmra.mxu0 %v2279
    %v3252 = vpop.f32.mrf.mxu0
    %v3253 = vadd.f32 %v3240, %v3252
    %v3254 = vpop.f32.mrf.mxu0
    %3255 = vdwg.mxu0
    %3256 = vmatpush.bf16.msra.mxu0 %v2932
    %3257 = vmatpush.bf16.msra.mxu0 %v2928
    %3258 = vmatpush.bf16.msra.mxu0 %v2924
    %3259 = vmatpush.bf16.msra.mxu0 %v2920
    %3260 = vmatpush.bf16.msra.mxu0 %v2916
    %3261 = vmatpush.bf16.msra.mxu0 %v2912
    %3262 = vmatpush.bf16.msra.mxu0 %v2908
    %3263 = vmatpush.bf16.msra.mxu0 %v2904
    %3264 = vmatmul.bf16.gmra.mxu0 %v2280
    %v3265 = vpop.f32.mrf.mxu0
    %v3266 = vadd.f32 %v3253, %v3265
    %v3267 = vpop.f32.mrf.mxu0
    %3268 = vdwg.mxu0
    %v3269 = vmax.f32 %v3110, 0.0
    %v3270 = vmax.f32 %v3162, 0.0
    %v3271 = vmax.f32 %v3214, 0.0
    %v3272 = vmax.f32 %v3266, 0.0
    %v3273 = vpack.c.bf16 %v3269, %v3269
    %v3274 = vpack.c.bf16 %v3270, %v3270
    %v3275 = vpack.c.bf16 %v3271, %v3271
    %v3276 = vpack.c.bf16 %v3272, %v3272
    %s3277 = scalar_lea.vmem [#allocation7], 3072
    %v3278 = vld [vmem:[%s3277] sm:$0xff]
    %v3279 = vld [vmem:[%s3277 + $0x8] sm:$0xff]
    %v3280 = vld [vmem:[%s3277 + $0x10] sm:$0xff]
    %v3281 = vld [vmem:[%s3277 + $0x18] sm:$0xff]
    %v3282 = vld [vmem:[%s3277 + $0x20] sm:$0xff]
    %v3283 = vld [vmem:[%s3277 + $0x28] sm:$0xff]
    %v3284 = vld [vmem:[%s3277 + $0x30] sm:$0xff]
    %v3285 = vld [vmem:[%s3277 + $0x38] sm:$0xff]
    %v3286 = vld [vmem:[%s3277 + $0x40] sm:$0xff]
    %v3287 = vld [vmem:[%s3277 + $0x48] sm:$0xff]
    %v3288 = vld [vmem:[%s3277 + $0x50] sm:$0xff]
    %v3289 = vld [vmem:[%s3277 + $0x58] sm:$0xff]
    %v3290 = vld [vmem:[%s3277 + $0x60] sm:$0xff]
    %v3291 = vld [vmem:[%s3277 + $0x68] sm:$0xff]
    %v3292 = vld [vmem:[%s3277 + $0x70] sm:$0xff]
    %v3293 = vld [vmem:[%s3277 + $0x78] sm:$0xff]
    %v3294 = vld [vmem:[%s3277 + $0x80] sm:$0xff]
    %v3295 = vld [vmem:[%s3277 + $0x88] sm:$0xff]
    %v3296 = vld [vmem:[%s3277 + $0x90] sm:$0xff]
    %v3297 = vld [vmem:[%s3277 + $0x98] sm:$0xff]
    %v3298 = vld [vmem:[%s3277 + $0xa0] sm:$0xff]
    %v3299 = vld [vmem:[%s3277 + $0xa8] sm:$0xff]
    %v3300 = vld [vmem:[%s3277 + $0xb0] sm:$0xff]
    %v3301 = vld [vmem:[%s3277 + $0xb8] sm:$0xff]
    %v3302 = vld [vmem:[%s3277 + $0xc0] sm:$0xff]
    %v3303 = vld [vmem:[%s3277 + $0xc8] sm:$0xff]
    %v3304 = vld [vmem:[%s3277 + $0xd0] sm:$0xff]
    %v3305 = vld [vmem:[%s3277 + $0xd8] sm:$0xff]
    %v3306 = vld [vmem:[%s3277 + $0xe0] sm:$0xff]
    %v3307 = vld [vmem:[%s3277 + $0xe8] sm:$0xff]
    %v3308 = vld [vmem:[%s3277 + $0xf0] sm:$0xff]
    %v3309 = vld [vmem:[%s3277 + $0xf8] sm:$0xff]
    %v3310 = vld [vmem:[%s3277 + $0x100] sm:$0xff]
    %v3311 = vld [vmem:[%s3277 + $0x108] sm:$0xff]
    %v3312 = vld [vmem:[%s3277 + $0x110] sm:$0xff]
    %v3313 = vld [vmem:[%s3277 + $0x118] sm:$0xff]
    %v3314 = vld [vmem:[%s3277 + $0x120] sm:$0xff]
    %v3315 = vld [vmem:[%s3277 + $0x128] sm:$0xff]
    %v3316 = vld [vmem:[%s3277 + $0x130] sm:$0xff]
    %v3317 = vld [vmem:[%s3277 + $0x138] sm:$0xff]
    %v3318 = vld [vmem:[%s3277 + $0x140] sm:$0xff]
    %v3319 = vld [vmem:[%s3277 + $0x148] sm:$0xff]
    %v3320 = vld [vmem:[%s3277 + $0x150] sm:$0xff]
    %v3321 = vld [vmem:[%s3277 + $0x158] sm:$0xff]
    %v3322 = vld [vmem:[%s3277 + $0x160] sm:$0xff]
    %v3323 = vld [vmem:[%s3277 + $0x168] sm:$0xff]
    %v3324 = vld [vmem:[%s3277 + $0x170] sm:$0xff]
    %v3325 = vld [vmem:[%s3277 + $0x178] sm:$0xff]
    %v3326 = vld [vmem:[%s3277 + $0x180] sm:$0xff]
    %v3327 = vld [vmem:[%s3277 + $0x188] sm:$0xff]
    %v3328 = vld [vmem:[%s3277 + $0x190] sm:$0xff]
    %v3329 = vld [vmem:[%s3277 + $0x198] sm:$0xff]
    %v3330 = vld [vmem:[%s3277 + $0x1a0] sm:$0xff]
    %v3331 = vld [vmem:[%s3277 + $0x1a8] sm:$0xff]
    %v3332 = vld [vmem:[%s3277 + $0x1b0] sm:$0xff]
    %v3333 = vld [vmem:[%s3277 + $0x1b8] sm:$0xff]
    %v3334 = vld [vmem:[%s3277 + $0x1c0] sm:$0xff]
    %v3335 = vld [vmem:[%s3277 + $0x1c8] sm:$0xff]
    %v3336 = vld [vmem:[%s3277 + $0x1d0] sm:$0xff]
    %v3337 = vld [vmem:[%s3277 + $0x1d8] sm:$0xff]
    %v3338 = vld [vmem:[%s3277 + $0x1e0] sm:$0xff]
    %v3339 = vld [vmem:[%s3277 + $0x1e8] sm:$0xff]
    %v3340 = vld [vmem:[%s3277 + $0x1f0] sm:$0xff]
    %v3341 = vld [vmem:[%s3277 + $0x1f8] sm:$0xff]
    %v3342 = vld [vmem:[%s3277 + $0x200] sm:$0xff]
    %v3343 = vld [vmem:[%s3277 + $0x208] sm:$0xff]
    %v3344 = vld [vmem:[%s3277 + $0x210] sm:$0xff]
    %v3345 = vld [vmem:[%s3277 + $0x218] sm:$0xff]
    %v3346 = vld [vmem:[%s3277 + $0x220] sm:$0xff]
    %v3347 = vld [vmem:[%s3277 + $0x228] sm:$0xff]
    %v3348 = vld [vmem:[%s3277 + $0x230] sm:$0xff]
    %v3349 = vld [vmem:[%s3277 + $0x238] sm:$0xff]
    %v3350 = vld [vmem:[%s3277 + $0x240] sm:$0xff]
    %v3351 = vld [vmem:[%s3277 + $0x248] sm:$0xff]
    %v3352 = vld [vmem:[%s3277 + $0x250] sm:$0xff]
    %v3353 = vld [vmem:[%s3277 + $0x258] sm:$0xff]
    %v3354 = vld [vmem:[%s3277 + $0x260] sm:$0xff]
    %v3355 = vld [vmem:[%s3277 + $0x268] sm:$0xff]
    %v3356 = vld [vmem:[%s3277 + $0x270] sm:$0xff]
    %v3357 = vld [vmem:[%s3277 + $0x278] sm:$0xff]
    %v3358 = vld [vmem:[%s3277 + $0x280] sm:$0xff]
    %v3359 = vld [vmem:[%s3277 + $0x288] sm:$0xff]
    %v3360 = vld [vmem:[%s3277 + $0x290] sm:$0xff]
    %v3361 = vld [vmem:[%s3277 + $0x298] sm:$0xff]
    %v3362 = vld [vmem:[%s3277 + $0x2a0] sm:$0xff]
    %v3363 = vld [vmem:[%s3277 + $0x2a8] sm:$0xff]
    %v3364 = vld [vmem:[%s3277 + $0x2b0] sm:$0xff]
    %v3365 = vld [vmem:[%s3277 + $0x2b8] sm:$0xff]
    %v3366 = vld [vmem:[%s3277 + $0x2c0] sm:$0xff]
    %v3367 = vld [vmem:[%s3277 + $0x2c8] sm:$0xff]
    %v3368 = vld [vmem:[%s3277 + $0x2d0] sm:$0xff]
    %v3369 = vld [vmem:[%s3277 + $0x2d8] sm:$0xff]
    %v3370 = vld [vmem:[%s3277 + $0x2e0] sm:$0xff]
    %v3371 = vld [vmem:[%s3277 + $0x2e8] sm:$0xff]
    %v3372 = vld [vmem:[%s3277 + $0x2f0] sm:$0xff]
    %v3373 = vld [vmem:[%s3277 + $0x2f8] sm:$0xff]
    %v3374 = vld [vmem:[%s3277 + $0x300] sm:$0xff]
    %v3375 = vld [vmem:[%s3277 + $0x308] sm:$0xff]
    %v3376 = vld [vmem:[%s3277 + $0x310] sm:$0xff]
    %v3377 = vld [vmem:[%s3277 + $0x318] sm:$0xff]
    %v3378 = vld [vmem:[%s3277 + $0x320] sm:$0xff]
    %v3379 = vld [vmem:[%s3277 + $0x328] sm:$0xff]
    %v3380 = vld [vmem:[%s3277 + $0x330] sm:$0xff]
    %v3381 = vld [vmem:[%s3277 + $0x338] sm:$0xff]
    %v3382 = vld [vmem:[%s3277 + $0x340] sm:$0xff]
    %v3383 = vld [vmem:[%s3277 + $0x348] sm:$0xff]
    %v3384 = vld [vmem:[%s3277 + $0x350] sm:$0xff]
    %v3385 = vld [vmem:[%s3277 + $0x358] sm:$0xff]
    %v3386 = vld [vmem:[%s3277 + $0x360] sm:$0xff]
    %v3387 = vld [vmem:[%s3277 + $0x368] sm:$0xff]
    %v3388 = vld [vmem:[%s3277 + $0x370] sm:$0xff]
    %v3389 = vld [vmem:[%s3277 + $0x378] sm:$0xff]
    %v3390 = vld [vmem:[%s3277 + $0x380] sm:$0xff]
    %v3391 = vld [vmem:[%s3277 + $0x388] sm:$0xff]
    %v3392 = vld [vmem:[%s3277 + $0x390] sm:$0xff]
    %v3393 = vld [vmem:[%s3277 + $0x398] sm:$0xff]
    %v3394 = vld [vmem:[%s3277 + $0x3a0] sm:$0xff]
    %v3395 = vld [vmem:[%s3277 + $0x3a8] sm:$0xff]
    %v3396 = vld [vmem:[%s3277 + $0x3b0] sm:$0xff]
    %v3397 = vld [vmem:[%s3277 + $0x3b8] sm:$0xff]
    %v3398 = vld [vmem:[%s3277 + $0x3c0] sm:$0xff]
    %v3399 = vld [vmem:[%s3277 + $0x3c8] sm:$0xff]
    %v3400 = vld [vmem:[%s3277 + $0x3d0] sm:$0xff]
    %v3401 = vld [vmem:[%s3277 + $0x3d8] sm:$0xff]
    %v3402 = vld [vmem:[%s3277 + $0x3e0] sm:$0xff]
    %v3403 = vld [vmem:[%s3277 + $0x3e8] sm:$0xff]
    %v3404 = vld [vmem:[%s3277 + $0x3f0] sm:$0xff]
    %v3405 = vld [vmem:[%s3277 + $0x3f8] sm:$0xff]
    %s3406 = scalar_lea.vmem [#allocation8], 12
    %v3407 = vld [vmem:[%s3406] sm:$0xf]
    %v3409 = vperm.slane %v3407, 0
    %v3410 = vperm.slane %v3407, 1
    %v3411 = vperm.slane %v3407, 2
    %v3412 = vperm.slane %v3407, 3
    %v3545 = vunpack.c.l.b16 %v3278
    %v3546 = vunpack.c.h.b16 %v3278
    %v3547 = vunpack.c.l.b16 %v3279
    %v3548 = vunpack.c.h.b16 %v3279
    %v3549 = vunpack.c.l.b16 %v3280
    %v3550 = vunpack.c.h.b16 %v3280
    %v3551 = vunpack.c.l.b16 %v3281
    %v3552 = vunpack.c.h.b16 %v3281
    %v3553 = vunpack.c.l.b16 %v3282
    %v3554 = vunpack.c.h.b16 %v3282
    %v3555 = vunpack.c.l.b16 %v3283
    %v3556 = vunpack.c.h.b16 %v3283
    %v3557 = vunpack.c.l.b16 %v3284
    %v3558 = vunpack.c.h.b16 %v3284
    %v3559 = vunpack.c.l.b16 %v3285
    %v3560 = vunpack.c.h.b16 %v3285
    %v3561 = vunpack.c.l.b16 %v3286
    %v3562 = vunpack.c.h.b16 %v3286
    %v3563 = vunpack.c.l.b16 %v3287
    %v3564 = vunpack.c.h.b16 %v3287
    %v3565 = vunpack.c.l.b16 %v3288
    %v3566 = vunpack.c.h.b16 %v3288
    %v3567 = vunpack.c.l.b16 %v3289
    %v3568 = vunpack.c.h.b16 %v3289
    %v3569 = vunpack.c.l.b16 %v3290
    %v3570 = vunpack.c.h.b16 %v3290
    %v3571 = vunpack.c.l.b16 %v3291
    %v3572 = vunpack.c.h.b16 %v3291
    %v3573 = vunpack.c.l.b16 %v3292
    %v3574 = vunpack.c.h.b16 %v3292
    %v3575 = vunpack.c.l.b16 %v3293
    %v3576 = vunpack.c.h.b16 %v3293
    %v3577 = vunpack.c.l.b16 %v3294
    %v3578 = vunpack.c.h.b16 %v3294
    %v3579 = vunpack.c.l.b16 %v3295
    %v3580 = vunpack.c.h.b16 %v3295
    %v3581 = vunpack.c.l.b16 %v3296
    %v3582 = vunpack.c.h.b16 %v3296
    %v3583 = vunpack.c.l.b16 %v3297
    %v3584 = vunpack.c.h.b16 %v3297
    %v3585 = vunpack.c.l.b16 %v3298
    %v3586 = vunpack.c.h.b16 %v3298
    %v3587 = vunpack.c.l.b16 %v3299
    %v3588 = vunpack.c.h.b16 %v3299
    %v3589 = vunpack.c.l.b16 %v3300
    %v3590 = vunpack.c.h.b16 %v3300
    %v3591 = vunpack.c.l.b16 %v3301
    %v3592 = vunpack.c.h.b16 %v3301
    %v3593 = vunpack.c.l.b16 %v3302
    %v3594 = vunpack.c.h.b16 %v3302
    %v3595 = vunpack.c.l.b16 %v3303
    %v3596 = vunpack.c.h.b16 %v3303
    %v3597 = vunpack.c.l.b16 %v3304
    %v3598 = vunpack.c.h.b16 %v3304
    %v3599 = vunpack.c.l.b16 %v3305
    %v3600 = vunpack.c.h.b16 %v3305
    %v3601 = vunpack.c.l.b16 %v3306
    %v3602 = vunpack.c.h.b16 %v3306
    %v3603 = vunpack.c.l.b16 %v3307
    %v3604 = vunpack.c.h.b16 %v3307
    %v3605 = vunpack.c.l.b16 %v3308
    %v3606 = vunpack.c.h.b16 %v3308
    %v3607 = vunpack.c.l.b16 %v3309
    %v3608 = vunpack.c.h.b16 %v3309
    %v3609 = vunpack.c.l.b16 %v3310
    %v3610 = vunpack.c.h.b16 %v3310
    %v3611 = vunpack.c.l.b16 %v3311
    %v3612 = vunpack.c.h.b16 %v3311
    %v3613 = vunpack.c.l.b16 %v3312
    %v3614 = vunpack.c.h.b16 %v3312
    %v3615 = vunpack.c.l.b16 %v3313
    %v3616 = vunpack.c.h.b16 %v3313
    %v3617 = vunpack.c.l.b16 %v3314
    %v3618 = vunpack.c.h.b16 %v3314
    %v3619 = vunpack.c.l.b16 %v3315
    %v3620 = vunpack.c.h.b16 %v3315
    %v3621 = vunpack.c.l.b16 %v3316
    %v3622 = vunpack.c.h.b16 %v3316
    %v3623 = vunpack.c.l.b16 %v3317
    %v3624 = vunpack.c.h.b16 %v3317
    %v3625 = vunpack.c.l.b16 %v3318
    %v3626 = vunpack.c.h.b16 %v3318
    %v3627 = vunpack.c.l.b16 %v3319
    %v3628 = vunpack.c.h.b16 %v3319
    %v3629 = vunpack.c.l.b16 %v3320
    %v3630 = vunpack.c.h.b16 %v3320
    %v3631 = vunpack.c.l.b16 %v3321
    %v3632 = vunpack.c.h.b16 %v3321
    %v3633 = vunpack.c.l.b16 %v3322
    %v3634 = vunpack.c.h.b16 %v3322
    %v3635 = vunpack.c.l.b16 %v3323
    %v3636 = vunpack.c.h.b16 %v3323
    %v3637 = vunpack.c.l.b16 %v3324
    %v3638 = vunpack.c.h.b16 %v3324
    %v3639 = vunpack.c.l.b16 %v3325
    %v3640 = vunpack.c.h.b16 %v3325
    %v3641 = vunpack.c.l.b16 %v3326
    %v3642 = vunpack.c.h.b16 %v3326
    %v3643 = vunpack.c.l.b16 %v3327
    %v3644 = vunpack.c.h.b16 %v3327
    %v3645 = vunpack.c.l.b16 %v3328
    %v3646 = vunpack.c.h.b16 %v3328
    %v3647 = vunpack.c.l.b16 %v3329
    %v3648 = vunpack.c.h.b16 %v3329
    %v3649 = vunpack.c.l.b16 %v3330
    %v3650 = vunpack.c.h.b16 %v3330
    %v3651 = vunpack.c.l.b16 %v3331
    %v3652 = vunpack.c.h.b16 %v3331
    %v3653 = vunpack.c.l.b16 %v3332
    %v3654 = vunpack.c.h.b16 %v3332
    %v3655 = vunpack.c.l.b16 %v3333
    %v3656 = vunpack.c.h.b16 %v3333
    %v3657 = vunpack.c.l.b16 %v3334
    %v3658 = vunpack.c.h.b16 %v3334
    %v3659 = vunpack.c.l.b16 %v3335
    %v3660 = vunpack.c.h.b16 %v3335
    %v3661 = vunpack.c.l.b16 %v3336
    %v3662 = vunpack.c.h.b16 %v3336
    %v3663 = vunpack.c.l.b16 %v3337
    %v3664 = vunpack.c.h.b16 %v3337
    %v3665 = vunpack.c.l.b16 %v3338
    %v3666 = vunpack.c.h.b16 %v3338
    %v3667 = vunpack.c.l.b16 %v3339
    %v3668 = vunpack.c.h.b16 %v3339
    %v3669 = vunpack.c.l.b16 %v3340
    %v3670 = vunpack.c.h.b16 %v3340
    %v3671 = vunpack.c.l.b16 %v3341
    %v3672 = vunpack.c.h.b16 %v3341
    %v3673 = vunpack.c.l.b16 %v3342
    %v3674 = vunpack.c.h.b16 %v3342
    %v3675 = vunpack.c.l.b16 %v3343
    %v3676 = vunpack.c.h.b16 %v3343
    %v3677 = vunpack.c.l.b16 %v3344
    %v3678 = vunpack.c.h.b16 %v3344
    %v3679 = vunpack.c.l.b16 %v3345
    %v3680 = vunpack.c.h.b16 %v3345
    %v3681 = vunpack.c.l.b16 %v3346
    %v3682 = vunpack.c.h.b16 %v3346
    %v3683 = vunpack.c.l.b16 %v3347
    %v3684 = vunpack.c.h.b16 %v3347
    %v3685 = vunpack.c.l.b16 %v3348
    %v3686 = vunpack.c.h.b16 %v3348
    %v3687 = vunpack.c.l.b16 %v3349
    %v3688 = vunpack.c.h.b16 %v3349
    %v3689 = vunpack.c.l.b16 %v3350
    %v3690 = vunpack.c.h.b16 %v3350
    %v3691 = vunpack.c.l.b16 %v3351
    %v3692 = vunpack.c.h.b16 %v3351
    %v3693 = vunpack.c.l.b16 %v3352
    %v3694 = vunpack.c.h.b16 %v3352
    %v3695 = vunpack.c.l.b16 %v3353
    %v3696 = vunpack.c.h.b16 %v3353
    %v3697 = vunpack.c.l.b16 %v3354
    %v3698 = vunpack.c.h.b16 %v3354
    %v3699 = vunpack.c.l.b16 %v3355
    %v3700 = vunpack.c.h.b16 %v3355
    %v3701 = vunpack.c.l.b16 %v3356
    %v3702 = vunpack.c.h.b16 %v3356
    %v3703 = vunpack.c.l.b16 %v3357
    %v3704 = vunpack.c.h.b16 %v3357
    %v3705 = vunpack.c.l.b16 %v3358
    %v3706 = vunpack.c.h.b16 %v3358
    %v3707 = vunpack.c.l.b16 %v3359
    %v3708 = vunpack.c.h.b16 %v3359
    %v3709 = vunpack.c.l.b16 %v3360
    %v3710 = vunpack.c.h.b16 %v3360
    %v3711 = vunpack.c.l.b16 %v3361
    %v3712 = vunpack.c.h.b16 %v3361
    %v3713 = vunpack.c.l.b16 %v3362
    %v3714 = vunpack.c.h.b16 %v3362
    %v3715 = vunpack.c.l.b16 %v3363
    %v3716 = vunpack.c.h.b16 %v3363
    %v3717 = vunpack.c.l.b16 %v3364
    %v3718 = vunpack.c.h.b16 %v3364
    %v3719 = vunpack.c.l.b16 %v3365
    %v3720 = vunpack.c.h.b16 %v3365
    %v3721 = vunpack.c.l.b16 %v3366
    %v3722 = vunpack.c.h.b16 %v3366
    %v3723 = vunpack.c.l.b16 %v3367
    %v3724 = vunpack.c.h.b16 %v3367
    %v3725 = vunpack.c.l.b16 %v3368
    %v3726 = vunpack.c.h.b16 %v3368
    %v3727 = vunpack.c.l.b16 %v3369
    %v3728 = vunpack.c.h.b16 %v3369
    %v3729 = vunpack.c.l.b16 %v3370
    %v3730 = vunpack.c.h.b16 %v3370
    %v3731 = vunpack.c.l.b16 %v3371
    %v3732 = vunpack.c.h.b16 %v3371
    %v3733 = vunpack.c.l.b16 %v3372
    %v3734 = vunpack.c.h.b16 %v3372
    %v3735 = vunpack.c.l.b16 %v3373
    %v3736 = vunpack.c.h.b16 %v3373
    %v3737 = vunpack.c.l.b16 %v3374
    %v3738 = vunpack.c.h.b16 %v3374
    %v3739 = vunpack.c.l.b16 %v3375
    %v3740 = vunpack.c.h.b16 %v3375
    %v3741 = vunpack.c.l.b16 %v3376
    %v3742 = vunpack.c.h.b16 %v3376
    %v3743 = vunpack.c.l.b16 %v3377
    %v3744 = vunpack.c.h.b16 %v3377
    %v3745 = vunpack.c.l.b16 %v3378
    %v3746 = vunpack.c.h.b16 %v3378
    %v3747 = vunpack.c.l.b16 %v3379
    %v3748 = vunpack.c.h.b16 %v3379
    %v3749 = vunpack.c.l.b16 %v3380
    %v3750 = vunpack.c.h.b16 %v3380
    %v3751 = vunpack.c.l.b16 %v3381
    %v3752 = vunpack.c.h.b16 %v3381
    %v3753 = vunpack.c.l.b16 %v3382
    %v3754 = vunpack.c.h.b16 %v3382
    %v3755 = vunpack.c.l.b16 %v3383
    %v3756 = vunpack.c.h.b16 %v3383
    %v3757 = vunpack.c.l.b16 %v3384
    %v3758 = vunpack.c.h.b16 %v3384
    %v3759 = vunpack.c.l.b16 %v3385
    %v3760 = vunpack.c.h.b16 %v3385
    %v3761 = vunpack.c.l.b16 %v3386
    %v3762 = vunpack.c.h.b16 %v3386
    %v3763 = vunpack.c.l.b16 %v3387
    %v3764 = vunpack.c.h.b16 %v3387
    %v3765 = vunpack.c.l.b16 %v3388
    %v3766 = vunpack.c.h.b16 %v3388
    %v3767 = vunpack.c.l.b16 %v3389
    %v3768 = vunpack.c.h.b16 %v3389
    %v3769 = vunpack.c.l.b16 %v3390
    %v3770 = vunpack.c.h.b16 %v3390
    %v3771 = vunpack.c.l.b16 %v3391
    %v3772 = vunpack.c.h.b16 %v3391
    %v3773 = vunpack.c.l.b16 %v3392
    %v3774 = vunpack.c.h.b16 %v3392
    %v3775 = vunpack.c.l.b16 %v3393
    %v3776 = vunpack.c.h.b16 %v3393
    %v3777 = vunpack.c.l.b16 %v3394
    %v3778 = vunpack.c.h.b16 %v3394
    %v3779 = vunpack.c.l.b16 %v3395
    %v3780 = vunpack.c.h.b16 %v3395
    %v3781 = vunpack.c.l.b16 %v3396
    %v3782 = vunpack.c.h.b16 %v3396
    %v3783 = vunpack.c.l.b16 %v3397
    %v3784 = vunpack.c.h.b16 %v3397
    %v3785 = vunpack.c.l.b16 %v3398
    %v3786 = vunpack.c.h.b16 %v3398
    %v3787 = vunpack.c.l.b16 %v3399
    %v3788 = vunpack.c.h.b16 %v3399
    %v3789 = vunpack.c.l.b16 %v3400
    %v3790 = vunpack.c.h.b16 %v3400
    %v3791 = vunpack.c.l.b16 %v3401
    %v3792 = vunpack.c.h.b16 %v3401
    %v3793 = vunpack.c.l.b16 %v3402
    %v3794 = vunpack.c.h.b16 %v3402
    %v3795 = vunpack.c.l.b16 %v3403
    %v3796 = vunpack.c.h.b16 %v3403
    %v3797 = vunpack.c.l.b16 %v3404
    %v3798 = vunpack.c.h.b16 %v3404
    %v3799 = vunpack.c.l.b16 %v3405
    %v3800 = vunpack.c.h.b16 %v3405
    %v3801 = vpack.c.b16 %v3549, %v3545
    %v3802 = vpack.c.b16 %v3550, %v3546
    %v3803 = vpack.c.b16 %v3551, %v3547
    %v3804 = vpack.c.b16 %v3552, %v3548
    %v3805 = vpack.c.b16 %v3557, %v3553
    %v3806 = vpack.c.b16 %v3558, %v3554
    %v3807 = vpack.c.b16 %v3559, %v3555
    %v3808 = vpack.c.b16 %v3560, %v3556
    %v3809 = vpack.c.b16 %v3565, %v3561
    %v3810 = vpack.c.b16 %v3566, %v3562
    %v3811 = vpack.c.b16 %v3567, %v3563
    %v3812 = vpack.c.b16 %v3568, %v3564
    %v3813 = vpack.c.b16 %v3573, %v3569
    %v3814 = vpack.c.b16 %v3574, %v3570
    %v3815 = vpack.c.b16 %v3575, %v3571
    %v3816 = vpack.c.b16 %v3576, %v3572
    %v3817 = vpack.c.b16 %v3581, %v3577
    %v3818 = vpack.c.b16 %v3582, %v3578
    %v3819 = vpack.c.b16 %v3583, %v3579
    %v3820 = vpack.c.b16 %v3584, %v3580
    %v3821 = vpack.c.b16 %v3589, %v3585
    %v3822 = vpack.c.b16 %v3590, %v3586
    %v3823 = vpack.c.b16 %v3591, %v3587
    %v3824 = vpack.c.b16 %v3592, %v3588
    %v3825 = vpack.c.b16 %v3597, %v3593
    %v3826 = vpack.c.b16 %v3598, %v3594
    %v3827 = vpack.c.b16 %v3599, %v3595
    %v3828 = vpack.c.b16 %v3600, %v3596
    %v3829 = vpack.c.b16 %v3605, %v3601
    %v3830 = vpack.c.b16 %v3606, %v3602
    %v3831 = vpack.c.b16 %v3607, %v3603
    %v3832 = vpack.c.b16 %v3608, %v3604
    %v3833 = vpack.c.b16 %v3613, %v3609
    %v3834 = vpack.c.b16 %v3614, %v3610
    %v3835 = vpack.c.b16 %v3615, %v3611
    %v3836 = vpack.c.b16 %v3616, %v3612
    %v3837 = vpack.c.b16 %v3621, %v3617
    %v3838 = vpack.c.b16 %v3622, %v3618
    %v3839 = vpack.c.b16 %v3623, %v3619
    %v3840 = vpack.c.b16 %v3624, %v3620
    %v3841 = vpack.c.b16 %v3629, %v3625
    %v3842 = vpack.c.b16 %v3630, %v3626
    %v3843 = vpack.c.b16 %v3631, %v3627
    %v3844 = vpack.c.b16 %v3632, %v3628
    %v3845 = vpack.c.b16 %v3637, %v3633
    %v3846 = vpack.c.b16 %v3638, %v3634
    %v3847 = vpack.c.b16 %v3639, %v3635
    %v3848 = vpack.c.b16 %v3640, %v3636
    %v3849 = vpack.c.b16 %v3645, %v3641
    %v3850 = vpack.c.b16 %v3646, %v3642
    %v3851 = vpack.c.b16 %v3647, %v3643
    %v3852 = vpack.c.b16 %v3648, %v3644
    %v3853 = vpack.c.b16 %v3653, %v3649
    %v3854 = vpack.c.b16 %v3654, %v3650
    %v3855 = vpack.c.b16 %v3655, %v3651
    %v3856 = vpack.c.b16 %v3656, %v3652
    %v3857 = vpack.c.b16 %v3661, %v3657
    %v3858 = vpack.c.b16 %v3662, %v3658
    %v3859 = vpack.c.b16 %v3663, %v3659
    %v3860 = vpack.c.b16 %v3664, %v3660
    %v3861 = vpack.c.b16 %v3669, %v3665
    %v3862 = vpack.c.b16 %v3670, %v3666
    %v3863 = vpack.c.b16 %v3671, %v3667
    %v3864 = vpack.c.b16 %v3672, %v3668
    %v3865 = vpack.c.b16 %v3677, %v3673
    %v3866 = vpack.c.b16 %v3678, %v3674
    %v3867 = vpack.c.b16 %v3679, %v3675
    %v3868 = vpack.c.b16 %v3680, %v3676
    %v3869 = vpack.c.b16 %v3685, %v3681
    %v3870 = vpack.c.b16 %v3686, %v3682
    %v3871 = vpack.c.b16 %v3687, %v3683
    %v3872 = vpack.c.b16 %v3688, %v3684
    %v3873 = vpack.c.b16 %v3693, %v3689
    %v3874 = vpack.c.b16 %v3694, %v3690
    %v3875 = vpack.c.b16 %v3695, %v3691
    %v3876 = vpack.c.b16 %v3696, %v3692
    %v3877 = vpack.c.b16 %v3701, %v3697
    %v3878 = vpack.c.b16 %v3702, %v3698
    %v3879 = vpack.c.b16 %v3703, %v3699
    %v3880 = vpack.c.b16 %v3704, %v3700
    %v3881 = vpack.c.b16 %v3709, %v3705
    %v3882 = vpack.c.b16 %v3710, %v3706
    %v3883 = vpack.c.b16 %v3711, %v3707
    %v3884 = vpack.c.b16 %v3712, %v3708
    %v3885 = vpack.c.b16 %v3717, %v3713
    %v3886 = vpack.c.b16 %v3718, %v3714
    %v3887 = vpack.c.b16 %v3719, %v3715
    %v3888 = vpack.c.b16 %v3720, %v3716
    %v3889 = vpack.c.b16 %v3725, %v3721
    %v3890 = vpack.c.b16 %v3726, %v3722
    %v3891 = vpack.c.b16 %v3727, %v3723
    %v3892 = vpack.c.b16 %v3728, %v3724
    %v3893 = vpack.c.b16 %v3733, %v3729
    %v3894 = vpack.c.b16 %v3734, %v3730
    %v3895 = vpack.c.b16 %v3735, %v3731
    %v3896 = vpack.c.b16 %v3736, %v3732
    %v3897 = vpack.c.b16 %v3741, %v3737
    %v3898 = vpack.c.b16 %v3742, %v3738
    %v3899 = vpack.c.b16 %v3743, %v3739
    %v3900 = vpack.c.b16 %v3744, %v3740
    %v3901 = vpack.c.b16 %v3749, %v3745
    %v3902 = vpack.c.b16 %v3750, %v3746
    %v3903 = vpack.c.b16 %v3751, %v3747
    %v3904 = vpack.c.b16 %v3752, %v3748
    %v3905 = vpack.c.b16 %v3757, %v3753
    %v3906 = vpack.c.b16 %v3758, %v3754
    %v3907 = vpack.c.b16 %v3759, %v3755
    %v3908 = vpack.c.b16 %v3760, %v3756
    %v3909 = vpack.c.b16 %v3765, %v3761
    %v3910 = vpack.c.b16 %v3766, %v3762
    %v3911 = vpack.c.b16 %v3767, %v3763
    %v3912 = vpack.c.b16 %v3768, %v3764
    %v3913 = vpack.c.b16 %v3773, %v3769
    %v3914 = vpack.c.b16 %v3774, %v3770
    %v3915 = vpack.c.b16 %v3775, %v3771
    %v3916 = vpack.c.b16 %v3776, %v3772
    %v3917 = vpack.c.b16 %v3781, %v3777
    %v3918 = vpack.c.b16 %v3782, %v3778
    %v3919 = vpack.c.b16 %v3783, %v3779
    %v3920 = vpack.c.b16 %v3784, %v3780
    %v3921 = vpack.c.b16 %v3789, %v3785
    %v3922 = vpack.c.b16 %v3790, %v3786
    %v3923 = vpack.c.b16 %v3791, %v3787
    %v3924 = vpack.c.b16 %v3792, %v3788
    %v3925 = vpack.c.b16 %v3797, %v3793
    %v3926 = vpack.c.b16 %v3798, %v3794
    %v3927 = vpack.c.b16 %v3799, %v3795
    %v3928 = vpack.c.b16 %v3800, %v3796
    %4057 = vmatpush.bf16.msra.mxu0 %v3829
    %4058 = vmatpush.bf16.msra.mxu0 %v3825
    %4059 = vmatpush.bf16.msra.mxu0 %v3821
    %4060 = vmatpush.bf16.msra.mxu0 %v3817
    %4061 = vmatpush.bf16.msra.mxu0 %v3813
    %4062 = vmatpush.bf16.msra.mxu0 %v3809
    %4063 = vmatpush.bf16.msra.mxu0 %v3805
    %4064 = vmatpush.bf16.msra.mxu0 %v3801
    %4065 = vmatmul.bf16.gmra.mxu0 %v3273
    %v4066 = vpop.f32.mrf.mxu0
    %v4067 = vadd.f32 %v3409, %v4066
    %v4068 = vpop.f32.mrf.mxu0
    %4069 = vdwg.mxu0
    %4070 = vmatpush.bf16.msra.mxu0 %v3861
    %4071 = vmatpush.bf16.msra.mxu0 %v3857
    %4072 = vmatpush.bf16.msra.mxu0 %v3853
    %4073 = vmatpush.bf16.msra.mxu0 %v3849
    %4074 = vmatpush.bf16.msra.mxu0 %v3845
    %4075 = vmatpush.bf16.msra.mxu0 %v3841
    %4076 = vmatpush.bf16.msra.mxu0 %v3837
    %4077 = vmatpush.bf16.msra.mxu0 %v3833
    %4078 = vmatmul.bf16.gmra.mxu0 %v3274
    %v4079 = vpop.f32.mrf.mxu0
    %v4080 = vadd.f32 %v4067, %v4079
    %v4081 = vpop.f32.mrf.mxu0
    %4082 = vdwg.mxu0
    %4083 = vmatpush.bf16.msra.mxu0 %v3893
    %4084 = vmatpush.bf16.msra.mxu0 %v3889
    %4085 = vmatpush.bf16.msra.mxu0 %v3885
    %4086 = vmatpush.bf16.msra.mxu0 %v3881
    %4087 = vmatpush.bf16.msra.mxu0 %v3877
    %4088 = vmatpush.bf16.msra.mxu0 %v3873
    %4089 = vmatpush.bf16.msra.mxu0 %v3869
    %4090 = vmatpush.bf16.msra.mxu0 %v3865
    %4091 = vmatmul.bf16.gmra.mxu0 %v3275
    %v4092 = vpop.f32.mrf.mxu0
    %v4093 = vadd.f32 %v4080, %v4092
    %v4094 = vpop.f32.mrf.mxu0
    %4095 = vdwg.mxu0
    %4096 = vmatpush.bf16.msra.mxu0 %v3925
    %4097 = vmatpush.bf16.msra.mxu0 %v3921
    %4098 = vmatpush.bf16.msra.mxu0 %v3917
    %4099 = vmatpush.bf16.msra.mxu0 %v3913
    %4100 = vmatpush.bf16.msra.mxu0 %v3909
    %4101 = vmatpush.bf16.msra.mxu0 %v3905
    %4102 = vmatpush.bf16.msra.mxu0 %v3901
    %4103 = vmatpush.bf16.msra.mxu0 %v3897
    %4104 = vmatmul.bf16.gmra.mxu0 %v3276
    %v4105 = vpop.f32.mrf.mxu0
    %v4106 = vadd.f32 %v4093, %v4105
    %v4107 = vpop.f32.mrf.mxu0
    %4108 = vdwg.mxu0
    %4109 = vmatpush.bf16.msra.mxu0 %v3830
    %4110 = vmatpush.bf16.msra.mxu0 %v3826
    %4111 = vmatpush.bf16.msra.mxu0 %v3822
    %4112 = vmatpush.bf16.msra.mxu0 %v3818
    %4113 = vmatpush.bf16.msra.mxu0 %v3814
    %4114 = vmatpush.bf16.msra.mxu0 %v3810
    %4115 = vmatpush.bf16.msra.mxu0 %v3806
    %4116 = vmatpush.bf16.msra.mxu0 %v3802
    %4117 = vmatmul.bf16.gmra.mxu0 %v3273
    %v4118 = vpop.f32.mrf.mxu0
    %v4119 = vadd.f32 %v3410, %v4118
    %v4120 = vpop.f32.mrf.mxu0
    %4121 = vdwg.mxu0
    %4122 = vmatpush.bf16.msra.mxu0 %v3862
    %4123 = vmatpush.bf16.msra.mxu0 %v3858
    %4124 = vmatpush.bf16.msra.mxu0 %v3854
    %4125 = vmatpush.bf16.msra.mxu0 %v3850
    %4126 = vmatpush.bf16.msra.mxu0 %v3846
    %4127 = vmatpush.bf16.msra.mxu0 %v3842
    %4128 = vmatpush.bf16.msra.mxu0 %v3838
    %4129 = vmatpush.bf16.msra.mxu0 %v3834
    %4130 = vmatmul.bf16.gmra.mxu0 %v3274
    %v4131 = vpop.f32.mrf.mxu0
    %v4132 = vadd.f32 %v4119, %v4131
    %v4133 = vpop.f32.mrf.mxu0
    %4134 = vdwg.mxu0
    %4135 = vmatpush.bf16.msra.mxu0 %v3894
    %4136 = vmatpush.bf16.msra.mxu0 %v3890
    %4137 = vmatpush.bf16.msra.mxu0 %v3886
    %4138 = vmatpush.bf16.msra.mxu0 %v3882
    %4139 = vmatpush.bf16.msra.mxu0 %v3878
    %4140 = vmatpush.bf16.msra.mxu0 %v3874
    %4141 = vmatpush.bf16.msra.mxu0 %v3870
    %4142 = vmatpush.bf16.msra.mxu0 %v3866
    %4143 = vmatmul.bf16.gmra.mxu0 %v3275
    %v4144 = vpop.f32.mrf.mxu0
    %v4145 = vadd.f32 %v4132, %v4144
    %v4146 = vpop.f32.mrf.mxu0
    %4147 = vdwg.mxu0
    %4148 = vmatpush.bf16.msra.mxu0 %v3926
    %4149 = vmatpush.bf16.msra.mxu0 %v3922
    %4150 = vmatpush.bf16.msra.mxu0 %v3918
    %4151 = vmatpush.bf16.msra.mxu0 %v3914
    %4152 = vmatpush.bf16.msra.mxu0 %v3910
    %4153 = vmatpush.bf16.msra.mxu0 %v3906
    %4154 = vmatpush.bf16.msra.mxu0 %v3902
    %4155 = vmatpush.bf16.msra.mxu0 %v3898
    %4156 = vmatmul.bf16.gmra.mxu0 %v3276
    %v4157 = vpop.f32.mrf.mxu0
    %v4158 = vadd.f32 %v4145, %v4157
    %v4159 = vpop.f32.mrf.mxu0
    %4160 = vdwg.mxu0
    %4161 = vmatpush.bf16.msra.mxu0 %v3831
    %4162 = vmatpush.bf16.msra.mxu0 %v3827
    %4163 = vmatpush.bf16.msra.mxu0 %v3823
    %4164 = vmatpush.bf16.msra.mxu0 %v3819
    %4165 = vmatpush.bf16.msra.mxu0 %v3815
    %4166 = vmatpush.bf16.msra.mxu0 %v3811
    %4167 = vmatpush.bf16.msra.mxu0 %v3807
    %4168 = vmatpush.bf16.msra.mxu0 %v3803
    %4169 = vmatmul.bf16.gmra.mxu0 %v3273
    %v4170 = vpop.f32.mrf.mxu0
    %v4171 = vadd.f32 %v3411, %v4170
    %v4172 = vpop.f32.mrf.mxu0
    %4173 = vdwg.mxu0
    %4174 = vmatpush.bf16.msra.mxu0 %v3863
    %4175 = vmatpush.bf16.msra.mxu0 %v3859
    %4176 = vmatpush.bf16.msra.mxu0 %v3855
    %4177 = vmatpush.bf16.msra.mxu0 %v3851
    %4178 = vmatpush.bf16.msra.mxu0 %v3847
    %4179 = vmatpush.bf16.msra.mxu0 %v3843
    %4180 = vmatpush.bf16.msra.mxu0 %v3839
    %4181 = vmatpush.bf16.msra.mxu0 %v3835
    %4182 = vmatmul.bf16.gmra.mxu0 %v3274
    %v4183 = vpop.f32.mrf.mxu0
    %v4184 = vadd.f32 %v4171, %v4183
    %v4185 = vpop.f32.mrf.mxu0
    %4186 = vdwg.mxu0
    %4187 = vmatpush.bf16.msra.mxu0 %v3895
    %4188 = vmatpush.bf16.msra.mxu0 %v3891
    %4189 = vmatpush.bf16.msra.mxu0 %v3887
    %4190 = vmatpush.bf16.msra.mxu0 %v3883
    %4191 = vmatpush.bf16.msra.mxu0 %v3879
    %4192 = vmatpush.bf16.msra.mxu0 %v3875
    %4193 = vmatpush.bf16.msra.mxu0 %v3871
    %4194 = vmatpush.bf16.msra.mxu0 %v3867
    %4195 = vmatmul.bf16.gmra.mxu0 %v3275
    %v4196 = vpop.f32.mrf.mxu0
    %v4197 = vadd.f32 %v4184, %v4196
    %v4198 = vpop.f32.mrf.mxu0
    %4199 = vdwg.mxu0
    %4200 = vmatpush.bf16.msra.mxu0 %v3927
    %4201 = vmatpush.bf16.msra.mxu0 %v3923
    %4202 = vmatpush.bf16.msra.mxu0 %v3919
    %4203 = vmatpush.bf16.msra.mxu0 %v3915
    %4204 = vmatpush.bf16.msra.mxu0 %v3911
    %4205 = vmatpush.bf16.msra.mxu0 %v3907
    %4206 = vmatpush.bf16.msra.mxu0 %v3903
    %4207 = vmatpush.bf16.msra.mxu0 %v3899
    %4208 = vmatmul.bf16.gmra.mxu0 %v3276
    %v4209 = vpop.f32.mrf.mxu0
    %v4210 = vadd.f32 %v4197, %v4209
    %v4211 = vpop.f32.mrf.mxu0
    %4212 = vdwg.mxu0
    %4213 = vmatpush.bf16.msra.mxu0 %v3832
    %4214 = vmatpush.bf16.msra.mxu0 %v3828
    %4215 = vmatpush.bf16.msra.mxu0 %v3824
    %4216 = vmatpush.bf16.msra.mxu0 %v3820
    %4217 = vmatpush.bf16.msra.mxu0 %v3816
    %4218 = vmatpush.bf16.msra.mxu0 %v3812
    %4219 = vmatpush.bf16.msra.mxu0 %v3808
    %4220 = vmatpush.bf16.msra.mxu0 %v3804
    %4221 = vmatmul.bf16.gmra.mxu0 %v3273
    %v4222 = vpop.f32.mrf.mxu0
    %v4223 = vadd.f32 %v3412, %v4222
    %v4224 = vpop.f32.mrf.mxu0
    %4225 = vdwg.mxu0
    %4226 = vmatpush.bf16.msra.mxu0 %v3864
    %4227 = vmatpush.bf16.msra.mxu0 %v3860
    %4228 = vmatpush.bf16.msra.mxu0 %v3856
    %4229 = vmatpush.bf16.msra.mxu0 %v3852
    %4230 = vmatpush.bf16.msra.mxu0 %v3848
    %4231 = vmatpush.bf16.msra.mxu0 %v3844
    %4232 = vmatpush.bf16.msra.mxu0 %v3840
    %4233 = vmatpush.bf16.msra.mxu0 %v3836
    %4234 = vmatmul.bf16.gmra.mxu0 %v3274
    %v4235 = vpop.f32.mrf.mxu0
    %v4236 = vadd.f32 %v4223, %v4235
    %v4237 = vpop.f32.mrf.mxu0
    %4238 = vdwg.mxu0
    %4239 = vmatpush.bf16.msra.mxu0 %v3896
    %4240 = vmatpush.bf16.msra.mxu0 %v3892
    %4241 = vmatpush.bf16.msra.mxu0 %v3888
    %4242 = vmatpush.bf16.msra.mxu0 %v3884
    %4243 = vmatpush.bf16.msra.mxu0 %v3880
    %4244 = vmatpush.bf16.msra.mxu0 %v3876
    %4245 = vmatpush.bf16.msra.mxu0 %v3872
    %4246 = vmatpush.bf16.msra.mxu0 %v3868
    %4247 = vmatmul.bf16.gmra.mxu0 %v3275
    %v4248 = vpop.f32.mrf.mxu0
    %v4249 = vadd.f32 %v4236, %v4248
    %v4250 = vpop.f32.mrf.mxu0
    %4251 = vdwg.mxu0
    %4252 = vmatpush.bf16.msra.mxu0 %v3928
    %4253 = vmatpush.bf16.msra.mxu0 %v3924
    %4254 = vmatpush.bf16.msra.mxu0 %v3920
    %4255 = vmatpush.bf16.msra.mxu0 %v3916
    %4256 = vmatpush.bf16.msra.mxu0 %v3912
    %4257 = vmatpush.bf16.msra.mxu0 %v3908
    %4258 = vmatpush.bf16.msra.mxu0 %v3904
    %4259 = vmatpush.bf16.msra.mxu0 %v3900
    %4260 = vmatmul.bf16.gmra.mxu0 %v3276
    %v4261 = vpop.f32.mrf.mxu0
    %v4262 = vadd.f32 %v4249, %v4261
    %v4263 = vpop.f32.mrf.mxu0
    %4264 = vdwg.mxu0
    %v4265 = vmax.f32 %v4106, 0.0
    %v4266 = vmax.f32 %v4158, 0.0
    %v4267 = vmax.f32 %v4210, 0.0
    %v4268 = vmax.f32 %v4262, 0.0
    %v4269 = vadd.f32 %v4265, %v283
    %v4270 = vadd.f32 %v4266, %v284
    %v4271 = vadd.f32 %v4267, %v285
    %v4272 = vadd.f32 %v4268, %v286
    %v4273 = vpack.c.bf16 %v4269, %v4269
    %v4274 = vpack.c.bf16 %v4270, %v4270
    %v4275 = vpack.c.bf16 %v4271, %v4271
    %v4276 = vpack.c.bf16 %v4272, %v4272
    %v4277 = vld [vmem:[#allocation10] sm:$0xf]
    %v4278 = vld [vmem:[#allocation10 + $0x4] sm:$0xf]
    %v4279 = vld [vmem:[#allocation10 + $0x8] sm:$0xf]
    %v4280 = vld [vmem:[#allocation10 + $0xc] sm:$0xf]
    %v4281 = vld [vmem:[#allocation10 + $0x10] sm:$0xf]
    %v4282 = vld [vmem:[#allocation10 + $0x14] sm:$0xf]
    %v4283 = vld [vmem:[#allocation10 + $0x18] sm:$0xf]
    %v4284 = vld [vmem:[#allocation10 + $0x1c] sm:$0xf]
    %v4285 = vld [vmem:[#allocation10 + $0x20] sm:$0xf]
    %v4286 = vld [vmem:[#allocation10 + $0x24] sm:$0xf]
    %v4287 = vld [vmem:[#allocation10 + $0x28] sm:$0xf]
    %v4288 = vld [vmem:[#allocation10 + $0x2c] sm:$0xf]
    %v4289 = vld [vmem:[#allocation10 + $0x30] sm:$0xf]
    %v4290 = vld [vmem:[#allocation10 + $0x34] sm:$0xf]
    %v4291 = vld [vmem:[#allocation10 + $0x38] sm:$0xf]
    %v4292 = vld [vmem:[#allocation10 + $0x3c] sm:$0xf]
    %v4293 = vld [vmem:[#allocation10 + $0x40] sm:$0xf]
    %v4294 = vld [vmem:[#allocation10 + $0x44] sm:$0xf]
    %v4295 = vld [vmem:[#allocation10 + $0x48] sm:$0xf]
    %v4296 = vld [vmem:[#allocation10 + $0x4c] sm:$0xf]
    %v4297 = vld [vmem:[#allocation10 + $0x50] sm:$0xf]
    %v4298 = vld [vmem:[#allocation10 + $0x54] sm:$0xf]
    %v4299 = vld [vmem:[#allocation10 + $0x58] sm:$0xf]
    %v4300 = vld [vmem:[#allocation10 + $0x5c] sm:$0xf]
    %v4301 = vld [vmem:[#allocation10 + $0x60] sm:$0xf]
    %v4302 = vld [vmem:[#allocation10 + $0x64] sm:$0xf]
    %v4303 = vld [vmem:[#allocation10 + $0x68] sm:$0xf]
    %v4304 = vld [vmem:[#allocation10 + $0x6c] sm:$0xf]
    %v4305 = vld [vmem:[#allocation10 + $0x70] sm:$0xf]
    %v4306 = vld [vmem:[#allocation10 + $0x74] sm:$0xf]
    %v4307 = vld [vmem:[#allocation10 + $0x78] sm:$0xf]
    %v4308 = vld [vmem:[#allocation10 + $0x7c] sm:$0xf]
    %v4309 = vld [vmem:[#allocation10 + $0x80] sm:$0xf]
    %v4310 = vld [vmem:[#allocation10 + $0x84] sm:$0xf]
    %v4311 = vld [vmem:[#allocation10 + $0x88] sm:$0xf]
    %v4312 = vld [vmem:[#allocation10 + $0x8c] sm:$0xf]
    %v4313 = vld [vmem:[#allocation10 + $0x90] sm:$0xf]
    %v4314 = vld [vmem:[#allocation10 + $0x94] sm:$0xf]
    %v4315 = vld [vmem:[#allocation10 + $0x98] sm:$0xf]
    %v4316 = vld [vmem:[#allocation10 + $0x9c] sm:$0xf]
    %v4317 = vld [vmem:[#allocation10 + $0xa0] sm:$0xf]
    %v4318 = vld [vmem:[#allocation10 + $0xa4] sm:$0xf]
    %v4319 = vld [vmem:[#allocation10 + $0xa8] sm:$0xf]
    %v4320 = vld [vmem:[#allocation10 + $0xac] sm:$0xf]
    %v4321 = vld [vmem:[#allocation10 + $0xb0] sm:$0xf]
    %v4322 = vld [vmem:[#allocation10 + $0xb4] sm:$0xf]
    %v4323 = vld [vmem:[#allocation10 + $0xb8] sm:$0xf]
    %v4324 = vld [vmem:[#allocation10 + $0xbc] sm:$0xf]
    %v4325 = vld [vmem:[#allocation10 + $0xc0] sm:$0xf]
    %v4326 = vld [vmem:[#allocation10 + $0xc4] sm:$0xf]
    %v4327 = vld [vmem:[#allocation10 + $0xc8] sm:$0xf]
    %v4328 = vld [vmem:[#allocation10 + $0xcc] sm:$0xf]
    %v4329 = vld [vmem:[#allocation10 + $0xd0] sm:$0xf]
    %v4330 = vld [vmem:[#allocation10 + $0xd4] sm:$0xf]
    %v4331 = vld [vmem:[#allocation10 + $0xd8] sm:$0xf]
    %v4332 = vld [vmem:[#allocation10 + $0xdc] sm:$0xf]
    %v4333 = vld [vmem:[#allocation10 + $0xe0] sm:$0xf]
    %v4334 = vld [vmem:[#allocation10 + $0xe4] sm:$0xf]
    %v4335 = vld [vmem:[#allocation10 + $0xe8] sm:$0xf]
    %v4336 = vld [vmem:[#allocation10 + $0xec] sm:$0xf]
    %v4337 = vld [vmem:[#allocation10 + $0xf0] sm:$0xf]
    %v4338 = vld [vmem:[#allocation10 + $0xf4] sm:$0xf]
    %v4339 = vld [vmem:[#allocation10 + $0xf8] sm:$0xf]
    %v4340 = vld [vmem:[#allocation10 + $0xfc] sm:$0xf]
    %v4341 = vld [vmem:[#allocation11] sm:$0x1]
    %v4343 = vperm.slane %v4341, 0
    %v4409 = vunpack.c.l.b16 %v4277
    %v4410 = vunpack.c.l.b16 %v4278
    %v4411 = vunpack.c.l.b16 %v4279
    %v4412 = vunpack.c.l.b16 %v4280
    %v4413 = vunpack.c.l.b16 %v4281
    %v4414 = vunpack.c.l.b16 %v4282
    %v4415 = vunpack.c.l.b16 %v4283
    %v4416 = vunpack.c.l.b16 %v4284
    %v4417 = vunpack.c.l.b16 %v4285
    %v4418 = vunpack.c.l.b16 %v4286
    %v4419 = vunpack.c.l.b16 %v4287
    %v4420 = vunpack.c.l.b16 %v4288
    %v4421 = vunpack.c.l.b16 %v4289
    %v4422 = vunpack.c.l.b16 %v4290
    %v4423 = vunpack.c.l.b16 %v4291
    %v4424 = vunpack.c.l.b16 %v4292
    %v4425 = vunpack.c.l.b16 %v4293
    %v4426 = vunpack.c.l.b16 %v4294
    %v4427 = vunpack.c.l.b16 %v4295
    %v4428 = vunpack.c.l.b16 %v4296
    %v4429 = vunpack.c.l.b16 %v4297
    %v4430 = vunpack.c.l.b16 %v4298
    %v4431 = vunpack.c.l.b16 %v4299
    %v4432 = vunpack.c.l.b16 %v4300
    %v4433 = vunpack.c.l.b16 %v4301
    %v4434 = vunpack.c.l.b16 %v4302
    %v4435 = vunpack.c.l.b16 %v4303
    %v4436 = vunpack.c.l.b16 %v4304
    %v4437 = vunpack.c.l.b16 %v4305
    %v4438 = vunpack.c.l.b16 %v4306
    %v4439 = vunpack.c.l.b16 %v4307
    %v4440 = vunpack.c.l.b16 %v4308
    %v4441 = vunpack.c.l.b16 %v4309
    %v4442 = vunpack.c.l.b16 %v4310
    %v4443 = vunpack.c.l.b16 %v4311
    %v4444 = vunpack.c.l.b16 %v4312
    %v4445 = vunpack.c.l.b16 %v4313
    %v4446 = vunpack.c.l.b16 %v4314
    %v4447 = vunpack.c.l.b16 %v4315
    %v4448 = vunpack.c.l.b16 %v4316
    %v4449 = vunpack.c.l.b16 %v4317
    %v4450 = vunpack.c.l.b16 %v4318
    %v4451 = vunpack.c.l.b16 %v4319
    %v4452 = vunpack.c.l.b16 %v4320
    %v4453 = vunpack.c.l.b16 %v4321
    %v4454 = vunpack.c.l.b16 %v4322
    %v4455 = vunpack.c.l.b16 %v4323
    %v4456 = vunpack.c.l.b16 %v4324
    %v4457 = vunpack.c.l.b16 %v4325
    %v4458 = vunpack.c.l.b16 %v4326
    %v4459 = vunpack.c.l.b16 %v4327
    %v4460 = vunpack.c.l.b16 %v4328
    %v4461 = vunpack.c.l.b16 %v4329
    %v4462 = vunpack.c.l.b16 %v4330
    %v4463 = vunpack.c.l.b16 %v4331
    %v4464 = vunpack.c.l.b16 %v4332
    %v4465 = vunpack.c.l.b16 %v4333
    %v4466 = vunpack.c.l.b16 %v4334
    %v4467 = vunpack.c.l.b16 %v4335
    %v4468 = vunpack.c.l.b16 %v4336
    %v4469 = vunpack.c.l.b16 %v4337
    %v4470 = vunpack.c.l.b16 %v4338
    %v4471 = vunpack.c.l.b16 %v4339
    %v4472 = vunpack.c.l.b16 %v4340
    %v4473 = vpack.c.b16 %v4410, %v4409
    %v4474 = vpack.c.b16 %v4412, %v4411
    %v4475 = vpack.c.b16 %v4414, %v4413
    %v4476 = vpack.c.b16 %v4416, %v4415
    %v4477 = vpack.c.b16 %v4418, %v4417
    %v4478 = vpack.c.b16 %v4420, %v4419
    %v4479 = vpack.c.b16 %v4422, %v4421
    %v4480 = vpack.c.b16 %v4424, %v4423
    %v4481 = vpack.c.b16 %v4426, %v4425
    %v4482 = vpack.c.b16 %v4428, %v4427
    %v4483 = vpack.c.b16 %v4430, %v4429
    %v4484 = vpack.c.b16 %v4432, %v4431
    %v4485 = vpack.c.b16 %v4434, %v4433
    %v4486 = vpack.c.b16 %v4436, %v4435
    %v4487 = vpack.c.b16 %v4438, %v4437
    %v4488 = vpack.c.b16 %v4440, %v4439
    %v4489 = vpack.c.b16 %v4442, %v4441
    %v4490 = vpack.c.b16 %v4444, %v4443
    %v4491 = vpack.c.b16 %v4446, %v4445
    %v4492 = vpack.c.b16 %v4448, %v4447
    %v4493 = vpack.c.b16 %v4450, %v4449
    %v4494 = vpack.c.b16 %v4452, %v4451
    %v4495 = vpack.c.b16 %v4454, %v4453
    %v4496 = vpack.c.b16 %v4456, %v4455
    %v4497 = vpack.c.b16 %v4458, %v4457
    %v4498 = vpack.c.b16 %v4460, %v4459
    %v4499 = vpack.c.b16 %v4462, %v4461
    %v4500 = vpack.c.b16 %v4464, %v4463
    %v4501 = vpack.c.b16 %v4466, %v4465
    %v4502 = vpack.c.b16 %v4468, %v4467
    %v4503 = vpack.c.b16 %v4470, %v4469
    %v4504 = vpack.c.b16 %v4472, %v4471
    %4537 = vmatpush.bf16.msra.mxu0 %v4480
    %4538 = vmatpush.bf16.msra.mxu0 %v4479
    %4539 = vmatpush.bf16.msra.mxu0 %v4478
    %4540 = vmatpush.bf16.msra.mxu0 %v4477
    %4541 = vmatpush.bf16.msra.mxu0 %v4476
    %4542 = vmatpush.bf16.msra.mxu0 %v4475
    %4543 = vmatpush.bf16.msra.mxu0 %v4474
    %4544 = vmatpush.bf16.msra.mxu0 %v4473
    %4545 = vmatmul.bf16.gmra.mxu0 %v4273
    %v4546 = vpop.f32.mrf.mxu0
    %v4547 = vadd.f32 %v4343, %v4546
    %v4548 = vpop.f32.mrf.mxu0
    %4549 = vdwg.mxu0
    %4550 = vmatpush.bf16.msra.mxu0 %v4488
    %4551 = vmatpush.bf16.msra.mxu0 %v4487
    %4552 = vmatpush.bf16.msra.mxu0 %v4486
    %4553 = vmatpush.bf16.msra.mxu0 %v4485
    %4554 = vmatpush.bf16.msra.mxu0 %v4484
    %4555 = vmatpush.bf16.msra.mxu0 %v4483
    %4556 = vmatpush.bf16.msra.mxu0 %v4482
    %4557 = vmatpush.bf16.msra.mxu0 %v4481
    %4558 = vmatmul.bf16.gmra.mxu0 %v4274
    %v4559 = vpop.f32.mrf.mxu0
    %v4560 = vadd.f32 %v4547, %v4559
    %v4561 = vpop.f32.mrf.mxu0
    %4562 = vdwg.mxu0
    %4563 = vmatpush.bf16.msra.mxu0 %v4496
    %4564 = vmatpush.bf16.msra.mxu0 %v4495
    %4565 = vmatpush.bf16.msra.mxu0 %v4494
    %4566 = vmatpush.bf16.msra.mxu0 %v4493
    %4567 = vmatpush.bf16.msra.mxu0 %v4492
    %4568 = vmatpush.bf16.msra.mxu0 %v4491
    %4569 = vmatpush.bf16.msra.mxu0 %v4490
    %4570 = vmatpush.bf16.msra.mxu0 %v4489
    %4571 = vmatmul.bf16.gmra.mxu0 %v4275
    %v4572 = vpop.f32.mrf.mxu0
    %v4573 = vadd.f32 %v4560, %v4572
    %v4574 = vpop.f32.mrf.mxu0
    %4575 = vdwg.mxu0
    %4576 = vmatpush.bf16.msra.mxu0 %v4504
    %4577 = vmatpush.bf16.msra.mxu0 %v4503
    %4578 = vmatpush.bf16.msra.mxu0 %v4502
    %4579 = vmatpush.bf16.msra.mxu0 %v4501
    %4580 = vmatpush.bf16.msra.mxu0 %v4500
    %4581 = vmatpush.bf16.msra.mxu0 %v4499
    %4582 = vmatpush.bf16.msra.mxu0 %v4498
    %4583 = vmatpush.bf16.msra.mxu0 %v4497
    %4584 = vmatmul.bf16.gmra.mxu0 %v4276
    %v4585 = vpop.f32.mrf.mxu0
    %v4586 = vadd.f32 %v4573, %v4585
    %v4587 = vpop.f32.mrf.mxu0
    %4588 = vdwg.mxu0
    %4589 = vst [vmem:[#allocation13] sm:$0xff] %v4586
    // Predicated region
    $region54: #{tpu_custom_call.1} parent=1 // pred_check
      _
    $region55: #{tpu_custom_call.1} parent=1 // pred_check_branch
      %4591 = sbr.rel (0) target = $region57
    $region56: #{tpu_custom_call.1} parent=1 // pred_region
      %4593 = vsyncadd [#allocation4], 0
      %s4595 = sshll.u32 [#allocation13], 4
      %s4596 = int_to_ptr.vmem [resolvable:$true] %s4595
      %s4597 = sshll.u32 %s7, 4
      %s4598 = int_to_ptr.hbm [resolvable:$true] %s4597
      %4600 = dma.vmem_to_hbm [thread:$0]  %s4596, 128, %s4598, [#allocation4]
    $region57: #{tpu_custom_call.1} parent=1 // pred_fallthru
      _
    // Predicated region
    $region58: #{tpu_custom_call.1} parent=1 // pred_check
      _
    $region59: #{tpu_custom_call.1} parent=1 // pred_check_branch
      %4602 = sbr.rel (0) target = $region61
    $region60: #{tpu_custom_call.1} parent=1 // pred_region
      %4604 = dma.done [#allocation4], 128
    $region61: #{tpu_custom_call.1} parent=1 // pred_fallthru
      _
    %4605 = vsyncpa [#allocation3], 1
    %4606 = vsyncpa [#allocation6], 1
    %4607 = vsyncpa [#allocation9], 1
    %4608 = vsyncpa [#allocation12], 1
    %4609 = vsyncpa [#allocation4], 1

</llo_original>
